<compile_context>
chip_gen: v7x
topology: tpu7x:2x2x1
jax: 0.10.0
libtpu: 0.0.40
codegen_flags: <defaults>
</compile_context>

<pallas_src>
import functools

import jax
import jax.numpy as jnp
from jax.experimental import pallas as pl
from jax.experimental.pallas import tpu as pltpu


# ----------------------------------------------------------------------------
# Pallas kernel: one (M-block, time-block) tile of one SubBandGRULayer
# ----------------------------------------------------------------------------
def gru_layer_kernel(xg_ref, wh_ref, wun_ref, y_ref, h_scr, *,
                     hidden_size, alpha_n, time_block):
    """Shapes (M = lane-dim tile of padded B*F):
         xg_ref : [TB, 3H, M]   precomputed Wx_fused @ x_t + fused biases
         wh_ref : [3H, aN]      fused [weight_h ; weight_h_new_gate]
         wun_ref: [2aN, 2H]     block-diag [Wu 0; 0 Wn] (one dot -> [u; c])
         y_ref  : [TB, aN, M]   per-step hidden states (output)
         h_scr  : [aN, M]       recurrent state in f32 (persists across the
                                sequential time-block grid axis)
    """
    H = hidden_size
    aN = alpha_n

    # Zero initial hidden state (module default); re-init per M block.
    @pl.when(pl.program_id(1) == 0)
    def _():
        h_scr[...] = jnp.zeros_like(h_scr)

    wh = wh_ref[...]        # resident, possibly bf16
    wun = wun_ref[...]      # resident, possibly bf16
    mxu_dtype = wh.dtype

    def step(t_loc, h):
        # xg only feeds element-wise math: cast to f32 right after the load
        # (keeps gate slices 8-aligned on the sublane dim for any dtype).
        xg = xg_ref[t_loc].astype(jnp.float32)                        # [3H, M]
        hg = jnp.dot(wh, h.astype(mxu_dtype),
                     preferred_element_type=jnp.float32)              # [3H, M]
        gates = xg[:2 * H] + hg[:2 * H]                               # aligned slices
        r = jax.nn.sigmoid(gates[:H])
        z = jax.nn.sigmoid(gates[H:])
        n = jnp.tanh(xg[2 * H:] + r * hg[2 * H:])
        # Fused post-gate projection: one MXU round-trip gives [u ; c].
        zn = jnp.concatenate([z, n], axis=0).astype(mxu_dtype)        # [2H, M]
        uc = jnp.dot(wun, zn, preferred_element_type=jnp.float32)     # [2aN, M]
        u = uc[:aN]
        c = uc[aN:]
        h_new = (1.0 - u) * c + u * h                                 # f32
        y_ref[t_loc] = h_new.astype(y_ref.dtype)                      # lane-dense store
        return h_new

    h = h_scr[...]
    if time_block <= 8:
        # Small static trip-count: fully-unrolled straight-line code.
        for t in range(time_block):
            h = step(t, h)
    else:
        # Larger TB: bound vreg live ranges but keep LLO scheduling visibility.
        unroll = 4 if time_block % 4 == 0 else (2 if time_block % 2 == 0 else 1)
        h = jax.lax.fori_loop(0, time_block, step, h, unroll=unroll)
    h_scr[...] = h


def run_gru_layer(xg, wh_f, w_un, *, hidden_size, alpha_n, time_block,
                  m_tile, out_dtype):
    """xg: [T_pad, 3H, M_pad]; returns y: [T_pad, aN, M_pad] (out_dtype)."""
    T_pad, H3, M_pad = xg.shape
    assert T_pad % time_block == 0 and M_pad % m_tile == 0
    n_t = T_pad // time_block
    n_m = M_pad // m_tile

    kernel = functools.partial(
        gru_layer_kernel,
        hidden_size=hidden_size,
        alpha_n=alpha_n,
        time_block=time_block,
    )

    # Explicit scoped-VMEM budget (v5e default is only 16 MiB); capped well
    # under v7x's 64 MiB physical VMEM.
    w_bytes = (wh_f.size + w_un.size) * jnp.dtype(wh_f.dtype).itemsize
    need = (2 * time_block * H3 * m_tile * jnp.dtype(xg.dtype).itemsize        # xg stream
            + 2 * time_block * alpha_n * m_tile * jnp.dtype(out_dtype).itemsize  # y stream
            + w_bytes                                                          # weights
            + alpha_n * m_tile * 4)                                            # h scratch
    vmem_limit = int(min(56 << 20, max(32 << 20, 2 * need)))

    out_shape = jax.ShapeDtypeStruct((T_pad, alpha_n, M_pad), out_dtype)

    def call(single_buffer_weights):
        if single_buffer_weights:
            # Grid-invariant operands: no point double-buffering them.
            def wspec(shape):
                return pl.BlockSpec(shape, lambda m, t: (0, 0),
                                    pipeline_mode=pl.Buffered(1))
        else:
            def wspec(shape):
                return pl.BlockSpec(shape, lambda m, t: (0, 0))

        grid_spec = pltpu.PrefetchScalarGridSpec(
            num_scalar_prefetch=0,
            # m (lane blocks of B*F): independent -> "parallel" (v7x megacore);
            # t (time blocks): sequential recurrence -> "arbitrary".
            grid=(n_m, n_t),
            in_specs=[
                pl.BlockSpec((time_block, H3, m_tile), lambda m, t: (t, 0, m)),
                wspec(wh_f.shape),
                wspec(w_un.shape),
            ],
            out_specs=pl.BlockSpec((time_block, alpha_n, m_tile),
                                   lambda m, t: (t, 0, m)),
            scratch_shapes=[pltpu.VMEM((alpha_n, m_tile), jnp.float32)],
        )
        return pl.pallas_call(
            kernel,
            out_shape=out_shape,
            grid_spec=grid_spec,
            compiler_params=pltpu.CompilerParams(
                dimension_semantics=("parallel", "arbitrary"),
                vmem_limit_bytes=vmem_limit),
        )(xg, wh_f, w_un)

    try:
        return call(True)
    except Exception:
        # Fallback if this jax version rejects pipeline_mode=pl.Buffered(1).
        return call(False)


# ----------------------------------------------------------------------------
# Parameter init (deterministic, synthetic) and the SubBandGRU wrapper
# ----------------------------------------------------------------------------
def init_params(key, input_size, sub_band_size, hidden_size, alpha, num_layers):
    aN = alpha * sub_band_size
    layer_dims = [(input_size, hidden_size)] + [(aN, aN)] * (num_layers - 1)
    params = []
    scale = 0.1
    for (d_in, H) in layer_dims:
        keys = jax.random.split(key, 11)
        key = keys[0]
        ks = keys[1:]
        params.append(dict(
            wx=jax.random.normal(ks[0], (2 * H, d_in), jnp.float32) * scale,
            wh=jax.random.normal(ks[1], (2 * H, aN), jnp.float32) * scale,
            bx=jax.random.normal(ks[2], (2 * H,), jnp.float32) * scale,
            bh=jax.random.normal(ks[3], (2 * H,), jnp.float32) * scale,
            wxn=jax.random.normal(ks[4], (H, d_in), jnp.float32) * scale,
            whn=jax.random.normal(ks[5], (H, aN), jnp.float32) * scale,
            bxn=jax.random.normal(ks[6], (H,), jnp.float32) * scale,
            bhn=jax.random.normal(ks[7], (H,), jnp.float32) * scale,
            wu=jax.random.normal(ks[8], (aN, H), jnp.float32) * scale,
            wn=jax.random.normal(ks[9], (aN, H), jnp.float32) * scale,
        ))
    return params


def sub_band_gru_forward(x, params, sub_band_size, hidden_size, alpha,
                         time_block=8, compute_dtype=jnp.float32):
    """x: [B, F, N, T] -> (output [B, F, aN, T], output_states [L, B, F, aN])."""
    B, F, N, T = x.shape
    aN = alpha * sub_band_size
    M = B * F

    # M = B*F is the lane dimension.  Split it into lane blocks (multiple of
    # 128, target ~512 so the 256-wide v6e/v7x MXU is filled); the M axis is
    # the "parallel" grid dim so both v7x TensorCores get work.
    n_m = max(1, -(-M // 512))
    m_tile = ((-(-M // n_m) + 127) // 128) * 128
    M_pad = m_tile * n_m

    TB = max(1, min(time_block, T))
    T_pad = ((T + TB - 1) // TB) * TB

    assert hidden_size % 8 == 0 and aN % 8 == 0, \
        "gate slices must land on sublane-tile boundaries"
    # TODO(synk): pad the fused weight rows if H / aN are not multiples of 8.

    use_low_precision = jnp.dtype(compute_dtype) != jnp.dtype(jnp.float32)

    # One-time boundary layout change: [B, F, D, T] -> [T, D, M_pad].
    cur = jnp.transpose(x, (3, 2, 0, 1)).reshape(T, N, M)
    cur = jnp.pad(cur, ((0, 0), (0, 0), (0, M_pad - M)))
    if use_low_precision:
        cur = cur.astype(compute_dtype)

    states = []
    for i, p in enumerate(params):
        H = hidden_size if i == 0 else aN
        # Fused x-side weights + folded biases.  NOTE: in this module bhn sits
        # OUTSIDE the r*(Whn@h) product, so folding it into xg is exact.
        wx_f = jnp.concatenate([p["wx"], p["wxn"]], axis=0)          # [3H, D_in]
        b_f = jnp.concatenate([p["bx"] + p["bh"],
                               p["bxn"] + p["bhn"]], axis=0)         # [3H]
        wh_f = jnp.concatenate([p["wh"], p["whn"]], axis=0)          # [3H, aN]
        # Block-diagonal fusion of the two post-gate projections:
        # [Wu 0; 0 Wn] @ [z; n] = [u; c]  (one MXU round-trip per step).
        w_un = jnp.zeros((2 * aN, 2 * H), jnp.float32)
        w_un = w_un.at[:aN, :H].set(p["wu"]).at[aN:, H:].set(p["wn"])

        # Hoisted x-side projection for all timesteps: one batched matmul.
        xg = jnp.einsum("hd,tdm->thm",
                        wx_f.astype(compute_dtype),
                        cur.astype(compute_dtype),
                        preferred_element_type=jnp.float32)
        xg = (xg + b_f[None, :, None]).astype(compute_dtype)
        if T_pad != T:
            xg = jnp.pad(xg, ((0, T_pad - T), (0, 0), (0, 0)))

        y = run_gru_layer(xg,
                          wh_f.astype(compute_dtype),
                          w_un.astype(compute_dtype),
                          hidden_size=H, alpha_n=aN, time_block=TB,
                          m_tile=m_tile, out_dtype=compute_dtype)
        y = y[:T]                                  # drop padded timesteps
        states.append(y[T - 1])                    # final hidden = last output
        cur = y                                    # stay in [T, aN, M_pad]

    out = jnp.transpose(cur[:, :, :M].astype(jnp.float32), (2, 1, 0))
    out = out.reshape(B, F, aN, T)
    st = jnp.stack(states, axis=0)[:, :, :M].astype(jnp.float32)   # [L, aN, M]
    st = jnp.transpose(st, (0, 2, 1)).reshape(len(params), B, F, aN)
    return out, st


# ----------------------------------------------------------------------------
# Pure-JAX reference (mirrors the PyTorch forward exactly) for verification
# ----------------------------------------------------------------------------
def ref_forward(x, params, sub_band_size, hidden_size, alpha):
    B, F, N, T = x.shape
    aN = alpha * sub_band_size
    output = x
    output_states = []
    for i, p in enumerate(params):
        H = hidden_size if i == 0 else aN
        h = jnp.zeros((B * F, aN), jnp.float32)
        ys = []
        for t in range(T):
            xt = output[..., t].reshape(B * F, -1)
            gates = xt @ p["wx"].T + p["bx"] + h @ p["wh"].T + p["bh"]
            r = jax.nn.sigmoid(gates[:, :H])
            z = jax.nn.sigmoid(gates[:, H:])
            n = jnp.tanh(xt @ p["wxn"].T + p["bxn"]
                         + r * (h @ p["whn"].T) + p["bhn"])
            u = z @ p["wu"].T
            g = n @ p["wn"].T
            h = (1.0 - u) * g + u * h
            ys.append(h)
        output = jnp.stack(ys, axis=-1).reshape(B, F, aN, T)
        output_states.append(h.reshape(B, F, aN))
    return output, jnp.stack(output_states, axis=0)


# ----------------------------------------------------------------------------
if __name__ == "__main__":
    # Small shapes consistent with the module.
    # Note: the PyTorch cell requires input_size == sub_band_size for layer 0.
    B, F, N, T = 2, 3, 8, 12
    input_size = N
    sub_band_size = N
    hidden_size = 16
    alpha = 2
    num_layers = 2
    aN = alpha * sub_band_size

    key = jax.random.PRNGKey(0)
    kx, kp = jax.random.split(key)
    x = jax.random.normal(kx, (B, F, N, T), jnp.float32)
    params = init_params(kp, input_size, sub_band_size, hidden_size,
                         alpha, num_layers)

    ref_out, ref_states = ref_forward(x, params, sub_band_size,
                                      hidden_size, alpha)

    # ---- strict f32 path (TB=8 -> fully-unrolled inner loop) ----
    out, states = sub_band_gru_forward(x, params, sub_band_size, hidden_size,
                                       alpha, time_block=8,
                                       compute_dtype=jnp.float32)
    out = jax.block_until_ready(out)
    states = jax.block_until_ready(states)
    assert out.shape == (B, F, aN, T)
    assert states.shape == (num_layers, B, F, aN)
    assert jnp.allclose(out, ref_out, atol=1e-4, rtol=1e-4), \
        float(jnp.max(jnp.abs(out - ref_out)))
    assert jnp.allclose(states, ref_states, atol=1e-4, rtol=1e-4)

    # ---- bf16 MXU / streamed-operand path (TB>8 -> fori_loop inner loop) ----
    # Relaxed tolerance: bf16 xg / weights / y per the performance review.
    out16, states16 = sub_band_gru_forward(x, params, sub_band_size,
                                           hidden_size, alpha, time_block=16,
                                           compute_dtype=jnp.bfloat16)
    out16 = jax.block_until_ready(out16)
    states16 = jax.block_until_ready(states16)
    assert jnp.allclose(out16, ref_out, atol=1e-1, rtol=1e-1)
    assert jnp.allclose(states16, ref_states, atol=1e-1, rtol=1e-1)

    print("KERNEL_OK")
</pallas_src>

<mosaic_0001>
module attributes {stable_mosaic.version = 11 : i64} {
  func.func @gru_layer_kernel(%arg0: i32, %arg1: i32, %arg2: memref<8x48x128xf32, #tpu.memory_space<vmem>>, %arg3: memref<48x16xf32, #tpu.memory_space<vmem>>, %arg4: memref<32x32xf32, #tpu.memory_space<vmem>>, %arg5: memref<8x16x128xf32, #tpu.memory_space<vmem>>, %arg6: memref<16x128xf32, #tpu.memory_space<vmem>>) attributes {dimension_semantics = [#tpu.dimension_semantics<parallel>, #tpu.dimension_semantics<arbitrary>], iteration_bounds = array<i64: 1, 2>, scalar_prefetch = 0 : i64, scratch_operands = 1 : i64, tpu.core_type = #tpu.core_type<tc>, window_params = [{transform_indices = @transform_0, window_bounds = array<i64: 8, 48, 128>}, {pipeline_mode = #tpu.pipeline_mode<synchronous>, transform_indices = @transform_1, window_bounds = array<i64: 48, 16>}, {pipeline_mode = #tpu.pipeline_mode<synchronous>, transform_indices = @transform_2, window_bounds = array<i64: 32, 32>}, {transform_indices = @transform_3, window_bounds = array<i64: 8, 16, 128>}]} {
    %c0_i32 = arith.constant 0 : i32
    %0 = arith.cmpi eq, %arg1, %c0_i32 : i32
    %1 = arith.extui %0 : i1 to i32
    %c0_i32_0 = arith.constant 0 : i32
    %2 = arith.cmpi ne, %1, %c0_i32_0 : i32
    scf.if %2 {
      %cst_88 = arith.constant 0.000000e+00 : f32
      %287 = vector.broadcast %cst_88 : f32 to vector<16x128xf32>
      %c0_89 = arith.constant 0 : index
      %c0_90 = arith.constant 0 : index
      %288 = vector.load %arg6[%c0_89, %c0_90] : memref<16x128xf32, #tpu.memory_space<vmem>>, vector<16x128xf32>
      tpu.vector_store %arg6[%c0_89, %c0_90], %287 {strides = array<i32>} : memref<16x128xf32, #tpu.memory_space<vmem>>, vector<16x128xf32>,
    } else {
    }
    %c0 = arith.constant 0 : index
    %c0_1 = arith.constant 0 : index
    %3 = vector.load %arg3[%c0, %c0_1] : memref<48x16xf32, #tpu.memory_space<vmem>>, vector<48x16xf32>
    %c0_2 = arith.constant 0 : index
    %c0_3 = arith.constant 0 : index
    %4 = vector.load %arg4[%c0_2, %c0_3] : memref<32x32xf32, #tpu.memory_space<vmem>>, vector<32x32xf32>
    %c0_4 = arith.constant 0 : index
    %c0_5 = arith.constant 0 : index
    %5 = vector.load %arg6[%c0_4, %c0_5] : memref<16x128xf32, #tpu.memory_space<vmem>>, vector<16x128xf32>
    %c0_6 = arith.constant 0 : index
    %c0_7 = arith.constant 0 : index
    %c0_8 = arith.constant 0 : index
    %6 = vector.load %arg2[%c0_6, %c0_7, %c0_8] : memref<8x48x128xf32, #tpu.memory_space<vmem>>, vector<1x48x128xf32>
    %7 = vector.shape_cast %6 : vector<1x48x128xf32> to vector<48x128xf32>
    %cst = arith.constant dense<0.000000e+00> : vector<48x128xf32>
    %8 = tpu.matmul %3, %5, %cst {dimension_numbers = #tpu.dot_dimension_numbers<[1], [0], [0], [1], [0, 0, 1, 1], [], []>} : vector<48x16xf32>, vector<16x128xf32>, vector<48x128xf32> -> vector<48x128xf32>
    %9 = vector.extract_strided_slice %7 {offsets = [0, 0], sizes = [32, 128], strides = [1, 1]} : vector<48x128xf32> to vector<32x128xf32>
    %10 = vector.extract_strided_slice %8 {offsets = [0, 0], sizes = [32, 128], strides = [1, 1]} : vector<48x128xf32> to vector<32x128xf32>
    %11 = arith.addf %9, %10 : vector<32x128xf32>
    %12 = vector.extract_strided_slice %11 {offsets = [0, 0], sizes = [16, 128], strides = [1, 1]} : vector<32x128xf32> to vector<16x128xf32>
    %13 = arith.negf %12 : vector<16x128xf32>
    %14 = math.exp %13 : vector<16x128xf32>
    %cst_9 = arith.constant 1.000000e+00 : f32
    %15 = vector.broadcast %cst_9 : f32 to vector<16x128xf32>
    %16 = arith.addf %15, %14 : vector<16x128xf32>
    %17 = arith.divf %15, %16 : vector<16x128xf32>
    %18 = vector.extract_strided_slice %11 {offsets = [16, 0], sizes = [16, 128], strides = [1, 1]} : vector<32x128xf32> to vector<16x128xf32>
    %19 = arith.negf %18 : vector<16x128xf32>
    %20 = math.exp %19 : vector<16x128xf32>
    %cst_10 = arith.constant 1.000000e+00 : f32
    %21 = vector.broadcast %cst_10 : f32 to vector<16x128xf32>
    %22 = arith.addf %21, %20 : vector<16x128xf32>
    %23 = arith.divf %21, %22 : vector<16x128xf32>
    %24 = vector.extract_strided_slice %7 {offsets = [32, 0], sizes = [16, 128], strides = [1, 1]} : vector<48x128xf32> to vector<16x128xf32>
    %25 = vector.extract_strided_slice %8 {offsets = [32, 0], sizes = [16, 128], strides = [1, 1]} : vector<48x128xf32> to vector<16x128xf32>
    %26 = arith.mulf %17, %25 : vector<16x128xf32>
    %27 = arith.addf %24, %26 : vector<16x128xf32>
    %28 = math.tanh %27 : vector<16x128xf32>
    %29 = tpu.concatenate %23, %28 in 0 : vector<16x128xf32>, vector<16x128xf32> -> vector<32x128xf32>
    %cst_11 = arith.constant dense<0.000000e+00> : vector<32x128xf32>
    %30 = tpu.matmul %4, %29, %cst_11 {dimension_numbers = #tpu.dot_dimension_numbers<[1], [0], [0], [1], [0, 0, 1, 1], [], []>} : vector<32x32xf32>, vector<32x128xf32>, vector<32x128xf32> -> vector<32x128xf32>
    %31 = vector.extract_strided_slice %30 {offsets = [0, 0], sizes = [16, 128], strides = [1, 1]} : vector<32x128xf32> to vector<16x128xf32>
    %32 = vector.extract_strided_slice %30 {offsets = [16, 0], sizes = [16, 128], strides = [1, 1]} : vector<32x128xf32> to vector<16x128xf32>
    %cst_12 = arith.constant 1.000000e+00 : f32
    %33 = vector.broadcast %cst_12 : f32 to vector<16x128xf32>
    %34 = arith.subf %33, %31 : vector<16x128xf32>
    %35 = arith.mulf %34, %32 : vector<16x128xf32>
    %36 = arith.mulf %31, %5 : vector<16x128xf32>
    %37 = arith.addf %35, %36 : vector<16x128xf32>
    %c0_13 = arith.constant 0 : index
    %c0_14 = arith.constant 0 : index
    %c0_15 = arith.constant 0 : index
    %38 = vector.load %arg5[%c0_13, %c0_14, %c0_15] : memref<8x16x128xf32, #tpu.memory_space<vmem>>, vector<1x16x128xf32>
    %39 = vector.shape_cast %38 : vector<1x16x128xf32> to vector<16x128xf32>
    %40 = vector.shape_cast %37 : vector<16x128xf32> to vector<1x16x128xf32>
    tpu.vector_store %arg5[%c0_13, %c0_14, %c0_15], %40 {strides = array<i32>} : memref<8x16x128xf32, #tpu.memory_space<vmem>>, vector<1x16x128xf32>,
    %c1 = arith.constant 1 : index
    %c0_16 = arith.constant 0 : index
    %c0_17 = arith.constant 0 : index
    %41 = vector.load %arg2[%c1, %c0_16, %c0_17] : memref<8x48x128xf32, #tpu.memory_space<vmem>>, vector<1x48x128xf32>
    %42 = vector.shape_cast %41 : vector<1x48x128xf32> to vector<48x128xf32>
    %cst_18 = arith.constant dense<0.000000e+00> : vector<48x128xf32>
    %43 = tpu.matmul %3, %37, %cst_18 {dimension_numbers = #tpu.dot_dimension_numbers<[1], [0], [0], [1], [0, 0, 1, 1], [], []>} : vector<48x16xf32>, vector<16x128xf32>, vector<48x128xf32> -> vector<48x128xf32>
    %44 = vector.extract_strided_slice %42 {offsets = [0, 0], sizes = [32, 128], strides = [1, 1]} : vector<48x128xf32> to vector<32x128xf32>
    %45 = vector.extract_strided_slice %43 {offsets = [0, 0], sizes = [32, 128], strides = [1, 1]} : vector<48x128xf32> to vector<32x128xf32>
    %46 = arith.addf %44, %45 : vector<32x128xf32>
    %47 = vector.extract_strided_slice %46 {offsets = [0, 0], sizes = [16, 128], strides = [1, 1]} : vector<32x128xf32> to vector<16x128xf32>
    %48 = arith.negf %47 : vector<16x128xf32>
    %49 = math.exp %48 : vector<16x128xf32>
    %cst_19 = arith.constant 1.000000e+00 : f32
    %50 = vector.broadcast %cst_19 : f32 to vector<16x128xf32>
    %51 = arith.addf %50, %49 : vector<16x128xf32>
    %52 = arith.divf %50, %51 : vector<16x128xf32>
    %53 = vector.extract_strided_slice %46 {offsets = [16, 0], sizes = [16, 128], strides = [1, 1]} : vector<32x128xf32> to vector<16x128xf32>
    %54 = arith.negf %53 : vector<16x128xf32>
    %55 = math.exp %54 : vector<16x128xf32>
    %cst_20 = arith.constant 1.000000e+00 : f32
    %56 = vector.broadcast %cst_20 : f32 to vector<16x128xf32>
    %57 = arith.addf %56, %55 : vector<16x128xf32>
    %58 = arith.divf %56, %57 : vector<16x128xf32>
    %59 = vector.extract_strided_slice %42 {offsets = [32, 0], sizes = [16, 128], strides = [1, 1]} : vector<48x128xf32> to vector<16x128xf32>
    %60 = vector.extract_strided_slice %43 {offsets = [32, 0], sizes = [16, 128], strides = [1, 1]} : vector<48x128xf32> to vector<16x128xf32>
    %61 = arith.mulf %52, %60 : vector<16x128xf32>
    %62 = arith.addf %59, %61 : vector<16x128xf32>
    %63 = math.tanh %62 : vector<16x128xf32>
    %64 = tpu.concatenate %58, %63 in 0 : vector<16x128xf32>, vector<16x128xf32> -> vector<32x128xf32>
    %cst_21 = arith.constant dense<0.000000e+00> : vector<32x128xf32>
    %65 = tpu.matmul %4, %64, %cst_21 {dimension_numbers = #tpu.dot_dimension_numbers<[1], [0], [0], [1], [0, 0, 1, 1], [], []>} : vector<32x32xf32>, vector<32x128xf32>, vector<32x128xf32> -> vector<32x128xf32>
    %66 = vector.extract_strided_slice %65 {offsets = [0, 0], sizes = [16, 128], strides = [1, 1]} : vector<32x128xf32> to vector<16x128xf32>
    %67 = vector.extract_strided_slice %65 {offsets = [16, 0], sizes = [16, 128], strides = [1, 1]} : vector<32x128xf32> to vector<16x128xf32>
    %cst_22 = arith.constant 1.000000e+00 : f32
    %68 = vector.broadcast %cst_22 : f32 to vector<16x128xf32>
    %69 = arith.subf %68, %66 : vector<16x128xf32>
    %70 = arith.mulf %69, %67 : vector<16x128xf32>
    %71 = arith.mulf %66, %37 : vector<16x128xf32>
    %72 = arith.addf %70, %71 : vector<16x128xf32>
    %c1_23 = arith.constant 1 : index
    %c0_24 = arith.constant 0 : index
    %c0_25 = arith.constant 0 : index
    %73 = vector.load %arg5[%c1_23, %c0_24, %c0_25] : memref<8x16x128xf32, #tpu.memory_space<vmem>>, vector<1x16x128xf32>
    %74 = vector.shape_cast %73 : vector<1x16x128xf32> to vector<16x128xf32>
    %75 = vector.shape_cast %72 : vector<16x128xf32> to vector<1x16x128xf32>
    tpu.vector_store %arg5[%c1_23, %c0_24, %c0_25], %75 {strides = array<i32>} : memref<8x16x128xf32, #tpu.memory_space<vmem>>, vector<1x16x128xf32>,
    %c2 = arith.constant 2 : index
    %c0_26 = arith.constant 0 : index
    %c0_27 = arith.constant 0 : index
    %76 = vector.load %arg2[%c2, %c0_26, %c0_27] : memref<8x48x128xf32, #tpu.memory_space<vmem>>, vector<1x48x128xf32>
    %77 = vector.shape_cast %76 : vector<1x48x128xf32> to vector<48x128xf32>
    %cst_28 = arith.constant dense<0.000000e+00> : vector<48x128xf32>
    %78 = tpu.matmul %3, %72, %cst_28 {dimension_numbers = #tpu.dot_dimension_numbers<[1], [0], [0], [1], [0, 0, 1, 1], [], []>} : vector<48x16xf32>, vector<16x128xf32>, vector<48x128xf32> -> vector<48x128xf32>
    %79 = vector.extract_strided_slice %77 {offsets = [0, 0], sizes = [32, 128], strides = [1, 1]} : vector<48x128xf32> to vector<32x128xf32>
    %80 = vector.extract_strided_slice %78 {offsets = [0, 0], sizes = [32, 128], strides = [1, 1]} : vector<48x128xf32> to vector<32x128xf32>
    %81 = arith.addf %79, %80 : vector<32x128xf32>
    %82 = vector.extract_strided_slice %81 {offsets = [0, 0], sizes = [16, 128], strides = [1, 1]} : vector<32x128xf32> to vector<16x128xf32>
    %83 = arith.negf %82 : vector<16x128xf32>
    %84 = math.exp %83 : vector<16x128xf32>
    %cst_29 = arith.constant 1.000000e+00 : f32
    %85 = vector.broadcast %cst_29 : f32 to vector<16x128xf32>
    %86 = arith.addf %85, %84 : vector<16x128xf32>
    %87 = arith.divf %85, %86 : vector<16x128xf32>
    %88 = vector.extract_strided_slice %81 {offsets = [16, 0], sizes = [16, 128], strides = [1, 1]} : vector<32x128xf32> to vector<16x128xf32>
    %89 = arith.negf %88 : vector<16x128xf32>
    %90 = math.exp %89 : vector<16x128xf32>
    %cst_30 = arith.constant 1.000000e+00 : f32
    %91 = vector.broadcast %cst_30 : f32 to vector<16x128xf32>
    %92 = arith.addf %91, %90 : vector<16x128xf32>
    %93 = arith.divf %91, %92 : vector<16x128xf32>
    %94 = vector.extract_strided_slice %77 {offsets = [32, 0], sizes = [16, 128], strides = [1, 1]} : vector<48x128xf32> to vector<16x128xf32>
    %95 = vector.extract_strided_slice %78 {offsets = [32, 0], sizes = [16, 128], strides = [1, 1]} : vector<48x128xf32> to vector<16x128xf32>
    %96 = arith.mulf %87, %95 : vector<16x128xf32>
    %97 = arith.addf %94, %96 : vector<16x128xf32>
    %98 = math.tanh %97 : vector<16x128xf32>
    %99 = tpu.concatenate %93, %98 in 0 : vector<16x128xf32>, vector<16x128xf32> -> vector<32x128xf32>
    %cst_31 = arith.constant dense<0.000000e+00> : vector<32x128xf32>
    %100 = tpu.matmul %4, %99, %cst_31 {dimension_numbers = #tpu.dot_dimension_numbers<[1], [0], [0], [1], [0, 0, 1, 1], [], []>} : vector<32x32xf32>, vector<32x128xf32>, vector<32x128xf32> -> vector<32x128xf32>
    %101 = vector.extract_strided_slice %100 {offsets = [0, 0], sizes = [16, 128], strides = [1, 1]} : vector<32x128xf32> to vector<16x128xf32>
    %102 = vector.extract_strided_slice %100 {offsets = [16, 0], sizes = [16, 128], strides = [1, 1]} : vector<32x128xf32> to vector<16x128xf32>
    %cst_32 = arith.constant 1.000000e+00 : f32
    %103 = vector.broadcast %cst_32 : f32 to vector<16x128xf32>
    %104 = arith.subf %103, %101 : vector<16x128xf32>
    %105 = arith.mulf %104, %102 : vector<16x128xf32>
    %106 = arith.mulf %101, %72 : vector<16x128xf32>
    %107 = arith.addf %105, %106 : vector<16x128xf32>
    %c2_33 = arith.constant 2 : index
    %c0_34 = arith.constant 0 : index
    %c0_35 = arith.constant 0 : index
    %108 = vector.load %arg5[%c2_33, %c0_34, %c0_35] : memref<8x16x128xf32, #tpu.memory_space<vmem>>, vector<1x16x128xf32>
    %109 = vector.shape_cast %108 : vector<1x16x128xf32> to vector<16x128xf32>
    %110 = vector.shape_cast %107 : vector<16x128xf32> to vector<1x16x128xf32>
    tpu.vector_store %arg5[%c2_33, %c0_34, %c0_35], %110 {strides = array<i32>} : memref<8x16x128xf32, #tpu.memory_space<vmem>>, vector<1x16x128xf32>,
    %c3 = arith.constant 3 : index
    %c0_36 = arith.constant 0 : index
    %c0_37 = arith.constant 0 : index
    %111 = vector.load %arg2[%c3, %c0_36, %c0_37] : memref<8x48x128xf32, #tpu.memory_space<vmem>>, vector<1x48x128xf32>
    %112 = vector.shape_cast %111 : vector<1x48x128xf32> to vector<48x128xf32>
    %cst_38 = arith.constant dense<0.000000e+00> : vector<48x128xf32>
    %113 = tpu.matmul %3, %107, %cst_38 {dimension_numbers = #tpu.dot_dimension_numbers<[1], [0], [0], [1], [0, 0, 1, 1], [], []>} : vector<48x16xf32>, vector<16x128xf32>, vector<48x128xf32> -> vector<48x128xf32>
    %114 = vector.extract_strided_slice %112 {offsets = [0, 0], sizes = [32, 128], strides = [1, 1]} : vector<48x128xf32> to vector<32x128xf32>
    %115 = vector.extract_strided_slice %113 {offsets = [0, 0], sizes = [32, 128], strides = [1, 1]} : vector<48x128xf32> to vector<32x128xf32>
    %116 = arith.addf %114, %115 : vector<32x128xf32>
    %117 = vector.extract_strided_slice %116 {offsets = [0, 0], sizes = [16, 128], strides = [1, 1]} : vector<32x128xf32> to vector<16x128xf32>
    %118 = arith.negf %117 : vector<16x128xf32>
    %119 = math.exp %118 : vector<16x128xf32>
    %cst_39 = arith.constant 1.000000e+00 : f32
    %120 = vector.broadcast %cst_39 : f32 to vector<16x128xf32>
    %121 = arith.addf %120, %119 : vector<16x128xf32>
    %122 = arith.divf %120, %121 : vector<16x128xf32>
    %123 = vector.extract_strided_slice %116 {offsets = [16, 0], sizes = [16, 128], strides = [1, 1]} : vector<32x128xf32> to vector<16x128xf32>
    %124 = arith.negf %123 : vector<16x128xf32>
    %125 = math.exp %124 : vector<16x128xf32>
    %cst_40 = arith.constant 1.000000e+00 : f32
    %126 = vector.broadcast %cst_40 : f32 to vector<16x128xf32>
    %127 = arith.addf %126, %125 : vector<16x128xf32>
    %128 = arith.divf %126, %127 : vector<16x128xf32>
    %129 = vector.extract_strided_slice %112 {offsets = [32, 0], sizes = [16, 128], strides = [1, 1]} : vector<48x128xf32> to vector<16x128xf32>
    %130 = vector.extract_strided_slice %113 {offsets = [32, 0], sizes = [16, 128], strides = [1, 1]} : vector<48x128xf32> to vector<16x128xf32>
    %131 = arith.mulf %122, %130 : vector<16x128xf32>
    %132 = arith.addf %129, %131 : vector<16x128xf32>
    %133 = math.tanh %132 : vector<16x128xf32>
    %134 = tpu.concatenate %128, %133 in 0 : vector<16x128xf32>, vector<16x128xf32> -> vector<32x128xf32>
    %cst_41 = arith.constant dense<0.000000e+00> : vector<32x128xf32>
    %135 = tpu.matmul %4, %134, %cst_41 {dimension_numbers = #tpu.dot_dimension_numbers<[1], [0], [0], [1], [0, 0, 1, 1], [], []>} : vector<32x32xf32>, vector<32x128xf32>, vector<32x128xf32> -> vector<32x128xf32>
    %136 = vector.extract_strided_slice %135 {offsets = [0, 0], sizes = [16, 128], strides = [1, 1]} : vector<32x128xf32> to vector<16x128xf32>
    %137 = vector.extract_strided_slice %135 {offsets = [16, 0], sizes = [16, 128], strides = [1, 1]} : vector<32x128xf32> to vector<16x128xf32>
    %cst_42 = arith.constant 1.000000e+00 : f32
    %138 = vector.broadcast %cst_42 : f32 to vector<16x128xf32>
    %139 = arith.subf %138, %136 : vector<16x128xf32>
    %140 = arith.mulf %139, %137 : vector<16x128xf32>
    %141 = arith.mulf %136, %107 : vector<16x128xf32>
    %142 = arith.addf %140, %141 : vector<16x128xf32>
    %c3_43 = arith.constant 3 : index
    %c0_44 = arith.constant 0 : index
    %c0_45 = arith.constant 0 : index
    %143 = vector.load %arg5[%c3_43, %c0_44, %c0_45] : memref<8x16x128xf32, #tpu.memory_space<vmem>>, vector<1x16x128xf32>
    %144 = vector.shape_cast %143 : vector<1x16x128xf32> to vector<16x128xf32>
    %145 = vector.shape_cast %142 : vector<16x128xf32> to vector<1x16x128xf32>
    tpu.vector_store %arg5[%c3_43, %c0_44, %c0_45], %145 {strides = array<i32>} : memref<8x16x128xf32, #tpu.memory_space<vmem>>, vector<1x16x128xf32>,
    %c4 = arith.constant 4 : index
    %c0_46 = arith.constant 0 : index
    %c0_47 = arith.constant 0 : index
    %146 = vector.load %arg2[%c4, %c0_46, %c0_47] : memref<8x48x128xf32, #tpu.memory_space<vmem>>, vector<1x48x128xf32>
    %147 = vector.shape_cast %146 : vector<1x48x128xf32> to vector<48x128xf32>
    %cst_48 = arith.constant dense<0.000000e+00> : vector<48x128xf32>
    %148 = tpu.matmul %3, %142, %cst_48 {dimension_numbers = #tpu.dot_dimension_numbers<[1], [0], [0], [1], [0, 0, 1, 1], [], []>} : vector<48x16xf32>, vector<16x128xf32>, vector<48x128xf32> -> vector<48x128xf32>
    %149 = vector.extract_strided_slice %147 {offsets = [0, 0], sizes = [32, 128], strides = [1, 1]} : vector<48x128xf32> to vector<32x128xf32>
    %150 = vector.extract_strided_slice %148 {offsets = [0, 0], sizes = [32, 128], strides = [1, 1]} : vector<48x128xf32> to vector<32x128xf32>
    %151 = arith.addf %149, %150 : vector<32x128xf32>
    %152 = vector.extract_strided_slice %151 {offsets = [0, 0], sizes = [16, 128], strides = [1, 1]} : vector<32x128xf32> to vector<16x128xf32>
    %153 = arith.negf %152 : vector<16x128xf32>
    %154 = math.exp %153 : vector<16x128xf32>
    %cst_49 = arith.constant 1.000000e+00 : f32
    %155 = vector.broadcast %cst_49 : f32 to vector<16x128xf32>
    %156 = arith.addf %155, %154 : vector<16x128xf32>
    %157 = arith.divf %155, %156 : vector<16x128xf32>
    %158 = vector.extract_strided_slice %151 {offsets = [16, 0], sizes = [16, 128], strides = [1, 1]} : vector<32x128xf32> to vector<16x128xf32>
    %159 = arith.negf %158 : vector<16x128xf32>
    %160 = math.exp %159 : vector<16x128xf32>
    %cst_50 = arith.constant 1.000000e+00 : f32
    %161 = vector.broadcast %cst_50 : f32 to vector<16x128xf32>
    %162 = arith.addf %161, %160 : vector<16x128xf32>
    %163 = arith.divf %161, %162 : vector<16x128xf32>
    %164 = vector.extract_strided_slice %147 {offsets = [32, 0], sizes = [16, 128], strides = [1, 1]} : vector<48x128xf32> to vector<16x128xf32>
    %165 = vector.extract_strided_slice %148 {offsets = [32, 0], sizes = [16, 128], strides = [1, 1]} : vector<48x128xf32> to vector<16x128xf32>
    %166 = arith.mulf %157, %165 : vector<16x128xf32>
    %167 = arith.addf %164, %166 : vector<16x128xf32>
    %168 = math.tanh %167 : vector<16x128xf32>
    %169 = tpu.concatenate %163, %168 in 0 : vector<16x128xf32>, vector<16x128xf32> -> vector<32x128xf32>
    %cst_51 = arith.constant dense<0.000000e+00> : vector<32x128xf32>
    %170 = tpu.matmul %4, %169, %cst_51 {dimension_numbers = #tpu.dot_dimension_numbers<[1], [0], [0], [1], [0, 0, 1, 1], [], []>} : vector<32x32xf32>, vector<32x128xf32>, vector<32x128xf32> -> vector<32x128xf32>
    %171 = vector.extract_strided_slice %170 {offsets = [0, 0], sizes = [16, 128], strides = [1, 1]} : vector<32x128xf32> to vector<16x128xf32>
    %172 = vector.extract_strided_slice %170 {offsets = [16, 0], sizes = [16, 128], strides = [1, 1]} : vector<32x128xf32> to vector<16x128xf32>
    %cst_52 = arith.constant 1.000000e+00 : f32
    %173 = vector.broadcast %cst_52 : f32 to vector<16x128xf32>
    %174 = arith.subf %173, %171 : vector<16x128xf32>
    %175 = arith.mulf %174, %172 : vector<16x128xf32>
    %176 = arith.mulf %171, %142 : vector<16x128xf32>
    %177 = arith.addf %175, %176 : vector<16x128xf32>
    %c4_53 = arith.constant 4 : index
    %c0_54 = arith.constant 0 : index
    %c0_55 = arith.constant 0 : index
    %178 = vector.load %arg5[%c4_53, %c0_54, %c0_55] : memref<8x16x128xf32, #tpu.memory_space<vmem>>, vector<1x16x128xf32>
    %179 = vector.shape_cast %178 : vector<1x16x128xf32> to vector<16x128xf32>
    %180 = vector.shape_cast %177 : vector<16x128xf32> to vector<1x16x128xf32>
    tpu.vector_store %arg5[%c4_53, %c0_54, %c0_55], %180 {strides = array<i32>} : memref<8x16x128xf32, #tpu.memory_space<vmem>>, vector<1x16x128xf32>,
    %c5 = arith.constant 5 : index
    %c0_56 = arith.constant 0 : index
    %c0_57 = arith.constant 0 : index
    %181 = vector.load %arg2[%c5, %c0_56, %c0_57] : memref<8x48x128xf32, #tpu.memory_space<vmem>>, vector<1x48x128xf32>
    %182 = vector.shape_cast %181 : vector<1x48x128xf32> to vector<48x128xf32>
    %cst_58 = arith.constant dense<0.000000e+00> : vector<48x128xf32>
    %183 = tpu.matmul %3, %177, %cst_58 {dimension_numbers = #tpu.dot_dimension_numbers<[1], [0], [0], [1], [0, 0, 1, 1], [], []>} : vector<48x16xf32>, vector<16x128xf32>, vector<48x128xf32> -> vector<48x128xf32>
    %184 = vector.extract_strided_slice %182 {offsets = [0, 0], sizes = [32, 128], strides = [1, 1]} : vector<48x128xf32> to vector<32x128xf32>
    %185 = vector.extract_strided_slice %183 {offsets = [0, 0], sizes = [32, 128], strides = [1, 1]} : vector<48x128xf32> to vector<32x128xf32>
    %186 = arith.addf %184, %185 : vector<32x128xf32>
    %187 = vector.extract_strided_slice %186 {offsets = [0, 0], sizes = [16, 128], strides = [1, 1]} : vector<32x128xf32> to vector<16x128xf32>
    %188 = arith.negf %187 : vector<16x128xf32>
    %189 = math.exp %188 : vector<16x128xf32>
    %cst_59 = arith.constant 1.000000e+00 : f32
    %190 = vector.broadcast %cst_59 : f32 to vector<16x128xf32>
    %191 = arith.addf %190, %189 : vector<16x128xf32>
    %192 = arith.divf %190, %191 : vector<16x128xf32>
    %193 = vector.extract_strided_slice %186 {offsets = [16, 0], sizes = [16, 128], strides = [1, 1]} : vector<32x128xf32> to vector<16x128xf32>
    %194 = arith.negf %193 : vector<16x128xf32>
    %195 = math.exp %194 : vector<16x128xf32>
    %cst_60 = arith.constant 1.000000e+00 : f32
    %196 = vector.broadcast %cst_60 : f32 to vector<16x128xf32>
    %197 = arith.addf %196, %195 : vector<16x128xf32>
    %198 = arith.divf %196, %197 : vector<16x128xf32>
    %199 = vector.extract_strided_slice %182 {offsets = [32, 0], sizes = [16, 128], strides = [1, 1]} : vector<48x128xf32> to vector<16x128xf32>
    %200 = vector.extract_strided_slice %183 {offsets = [32, 0], sizes = [16, 128], strides = [1, 1]} : vector<48x128xf32> to vector<16x128xf32>
    %201 = arith.mulf %192, %200 : vector<16x128xf32>
    %202 = arith.addf %199, %201 : vector<16x128xf32>
    %203 = math.tanh %202 : vector<16x128xf32>
    %204 = tpu.concatenate %198, %203 in 0 : vector<16x128xf32>, vector<16x128xf32> -> vector<32x128xf32>
    %cst_61 = arith.constant dense<0.000000e+00> : vector<32x128xf32>
    %205 = tpu.matmul %4, %204, %cst_61 {dimension_numbers = #tpu.dot_dimension_numbers<[1], [0], [0], [1], [0, 0, 1, 1], [], []>} : vector<32x32xf32>, vector<32x128xf32>, vector<32x128xf32> -> vector<32x128xf32>
    %206 = vector.extract_strided_slice %205 {offsets = [0, 0], sizes = [16, 128], strides = [1, 1]} : vector<32x128xf32> to vector<16x128xf32>
    %207 = vector.extract_strided_slice %205 {offsets = [16, 0], sizes = [16, 128], strides = [1, 1]} : vector<32x128xf32> to vector<16x128xf32>
    %cst_62 = arith.constant 1.000000e+00 : f32
    %208 = vector.broadcast %cst_62 : f32 to vector<16x128xf32>
    %209 = arith.subf %208, %206 : vector<16x128xf32>
    %210 = arith.mulf %209, %207 : vector<16x128xf32>
    %211 = arith.mulf %206, %177 : vector<16x128xf32>
    %212 = arith.addf %210, %211 : vector<16x128xf32>
    %c5_63 = arith.constant 5 : index
    %c0_64 = arith.constant 0 : index
    %c0_65 = arith.constant 0 : index
    %213 = vector.load %arg5[%c5_63, %c0_64, %c0_65] : memref<8x16x128xf32, #tpu.memory_space<vmem>>, vector<1x16x128xf32>
    %214 = vector.shape_cast %213 : vector<1x16x128xf32> to vector<16x128xf32>
    %215 = vector.shape_cast %212 : vector<16x128xf32> to vector<1x16x128xf32>
    tpu.vector_store %arg5[%c5_63, %c0_64, %c0_65], %215 {strides = array<i32>} : memref<8x16x128xf32, #tpu.memory_space<vmem>>, vector<1x16x128xf32>,
    %c6 = arith.constant 6 : index
    %c0_66 = arith.constant 0 : index
    %c0_67 = arith.constant 0 : index
    %216 = vector.load %arg2[%c6, %c0_66, %c0_67] : memref<8x48x128xf32, #tpu.memory_space<vmem>>, vector<1x48x128xf32>
    %217 = vector.shape_cast %216 : vector<1x48x128xf32> to vector<48x128xf32>
    %cst_68 = arith.constant dense<0.000000e+00> : vector<48x128xf32>
    %218 = tpu.matmul %3, %212, %cst_68 {dimension_numbers = #tpu.dot_dimension_numbers<[1], [0], [0], [1], [0, 0, 1, 1], [], []>} : vector<48x16xf32>, vector<16x128xf32>, vector<48x128xf32> -> vector<48x128xf32>
    %219 = vector.extract_strided_slice %217 {offsets = [0, 0], sizes = [32, 128], strides = [1, 1]} : vector<48x128xf32> to vector<32x128xf32>
    %220 = vector.extract_strided_slice %218 {offsets = [0, 0], sizes = [32, 128], strides = [1, 1]} : vector<48x128xf32> to vector<32x128xf32>
    %221 = arith.addf %219, %220 : vector<32x128xf32>
    %222 = vector.extract_strided_slice %221 {offsets = [0, 0], sizes = [16, 128], strides = [1, 1]} : vector<32x128xf32> to vector<16x128xf32>
    %223 = arith.negf %222 : vector<16x128xf32>
    %224 = math.exp %223 : vector<16x128xf32>
    %cst_69 = arith.constant 1.000000e+00 : f32
    %225 = vector.broadcast %cst_69 : f32 to vector<16x128xf32>
    %226 = arith.addf %225, %224 : vector<16x128xf32>
    %227 = arith.divf %225, %226 : vector<16x128xf32>
    %228 = vector.extract_strided_slice %221 {offsets = [16, 0], sizes = [16, 128], strides = [1, 1]} : vector<32x128xf32> to vector<16x128xf32>
    %229 = arith.negf %228 : vector<16x128xf32>
    %230 = math.exp %229 : vector<16x128xf32>
    %cst_70 = arith.constant 1.000000e+00 : f32
    %231 = vector.broadcast %cst_70 : f32 to vector<16x128xf32>
    %232 = arith.addf %231, %230 : vector<16x128xf32>
    %233 = arith.divf %231, %232 : vector<16x128xf32>
    %234 = vector.extract_strided_slice %217 {offsets = [32, 0], sizes = [16, 128], strides = [1, 1]} : vector<48x128xf32> to vector<16x128xf32>
    %235 = vector.extract_strided_slice %218 {offsets = [32, 0], sizes = [16, 128], strides = [1, 1]} : vector<48x128xf32> to vector<16x128xf32>
    %236 = arith.mulf %227, %235 : vector<16x128xf32>
    %237 = arith.addf %234, %236 : vector<16x128xf32>
    %238 = math.tanh %237 : vector<16x128xf32>
    %239 = tpu.concatenate %233, %238 in 0 : vector<16x128xf32>, vector<16x128xf32> -> vector<32x128xf32>
    %cst_71 = arith.constant dense<0.000000e+00> : vector<32x128xf32>
    %240 = tpu.matmul %4, %239, %cst_71 {dimension_numbers = #tpu.dot_dimension_numbers<[1], [0], [0], [1], [0, 0, 1, 1], [], []>} : vector<32x32xf32>, vector<32x128xf32>, vector<32x128xf32> -> vector<32x128xf32>
    %241 = vector.extract_strided_slice %240 {offsets = [0, 0], sizes = [16, 128], strides = [1, 1]} : vector<32x128xf32> to vector<16x128xf32>
    %242 = vector.extract_strided_slice %240 {offsets = [16, 0], sizes = [16, 128], strides = [1, 1]} : vector<32x128xf32> to vector<16x128xf32>
    %cst_72 = arith.constant 1.000000e+00 : f32
    %243 = vector.broadcast %cst_72 : f32 to vector<16x128xf32>
    %244 = arith.subf %243, %241 : vector<16x128xf32>
    %245 = arith.mulf %244, %242 : vector<16x128xf32>
    %246 = arith.mulf %241, %212 : vector<16x128xf32>
    %247 = arith.addf %245, %246 : vector<16x128xf32>
    %c6_73 = arith.constant 6 : index
    %c0_74 = arith.constant 0 : index
    %c0_75 = arith.constant 0 : index
    %248 = vector.load %arg5[%c6_73, %c0_74, %c0_75] : memref<8x16x128xf32, #tpu.memory_space<vmem>>, vector<1x16x128xf32>
    %249 = vector.shape_cast %248 : vector<1x16x128xf32> to vector<16x128xf32>
    %250 = vector.shape_cast %247 : vector<16x128xf32> to vector<1x16x128xf32>
    tpu.vector_store %arg5[%c6_73, %c0_74, %c0_75], %250 {strides = array<i32>} : memref<8x16x128xf32, #tpu.memory_space<vmem>>, vector<1x16x128xf32>,
    %c7 = arith.constant 7 : index
    %c0_76 = arith.constant 0 : index
    %c0_77 = arith.constant 0 : index
    %251 = vector.load %arg2[%c7, %c0_76, %c0_77] : memref<8x48x128xf32, #tpu.memory_space<vmem>>, vector<1x48x128xf32>
    %252 = vector.shape_cast %251 : vector<1x48x128xf32> to vector<48x128xf32>
    %cst_78 = arith.constant dense<0.000000e+00> : vector<48x128xf32>
    %253 = tpu.matmul %3, %247, %cst_78 {dimension_numbers = #tpu.dot_dimension_numbers<[1], [0], [0], [1], [0, 0, 1, 1], [], []>} : vector<48x16xf32>, vector<16x128xf32>, vector<48x128xf32> -> vector<48x128xf32>
    %254 = vector.extract_strided_slice %252 {offsets = [0, 0], sizes = [32, 128], strides = [1, 1]} : vector<48x128xf32> to vector<32x128xf32>
    %255 = vector.extract_strided_slice %253 {offsets = [0, 0], sizes = [32, 128], strides = [1, 1]} : vector<48x128xf32> to vector<32x128xf32>
    %256 = arith.addf %254, %255 : vector<32x128xf32>
    %257 = vector.extract_strided_slice %256 {offsets = [0, 0], sizes = [16, 128], strides = [1, 1]} : vector<32x128xf32> to vector<16x128xf32>
    %258 = arith.negf %257 : vector<16x128xf32>
    %259 = math.exp %258 : vector<16x128xf32>
    %cst_79 = arith.constant 1.000000e+00 : f32
    %260 = vector.broadcast %cst_79 : f32 to vector<16x128xf32>
    %261 = arith.addf %260, %259 : vector<16x128xf32>
    %262 = arith.divf %260, %261 : vector<16x128xf32>
    %263 = vector.extract_strided_slice %256 {offsets = [16, 0], sizes = [16, 128], strides = [1, 1]} : vector<32x128xf32> to vector<16x128xf32>
    %264 = arith.negf %263 : vector<16x128xf32>
    %265 = math.exp %264 : vector<16x128xf32>
    %cst_80 = arith.constant 1.000000e+00 : f32
    %266 = vector.broadcast %cst_80 : f32 to vector<16x128xf32>
    %267 = arith.addf %266, %265 : vector<16x128xf32>
    %268 = arith.divf %266, %267 : vector<16x128xf32>
    %269 = vector.extract_strided_slice %252 {offsets = [32, 0], sizes = [16, 128], strides = [1, 1]} : vector<48x128xf32> to vector<16x128xf32>
    %270 = vector.extract_strided_slice %253 {offsets = [32, 0], sizes = [16, 128], strides = [1, 1]} : vector<48x128xf32> to vector<16x128xf32>
    %271 = arith.mulf %262, %270 : vector<16x128xf32>
    %272 = arith.addf %269, %271 : vector<16x128xf32>
    %273 = math.tanh %272 : vector<16x128xf32>
    %274 = tpu.concatenate %268, %273 in 0 : vector<16x128xf32>, vector<16x128xf32> -> vector<32x128xf32>
    %cst_81 = arith.constant dense<0.000000e+00> : vector<32x128xf32>
    %275 = tpu.matmul %4, %274, %cst_81 {dimension_numbers = #tpu.dot_dimension_numbers<[1], [0], [0], [1], [0, 0, 1, 1], [], []>} : vector<32x32xf32>, vector<32x128xf32>, vector<32x128xf32> -> vector<32x128xf32>
    %276 = vector.extract_strided_slice %275 {offsets = [0, 0], sizes = [16, 128], strides = [1, 1]} : vector<32x128xf32> to vector<16x128xf32>
    %277 = vector.extract_strided_slice %275 {offsets = [16, 0], sizes = [16, 128], strides = [1, 1]} : vector<32x128xf32> to vector<16x128xf32>
    %cst_82 = arith.constant 1.000000e+00 : f32
    %278 = vector.broadcast %cst_82 : f32 to vector<16x128xf32>
    %279 = arith.subf %278, %276 : vector<16x128xf32>
    %280 = arith.mulf %279, %277 : vector<16x128xf32>
    %281 = arith.mulf %276, %247 : vector<16x128xf32>
    %282 = arith.addf %280, %281 : vector<16x128xf32>
    %c7_83 = arith.constant 7 : index
    %c0_84 = arith.constant 0 : index
    %c0_85 = arith.constant 0 : index
    %283 = vector.load %arg5[%c7_83, %c0_84, %c0_85] : memref<8x16x128xf32, #tpu.memory_space<vmem>>, vector<1x16x128xf32>
    %284 = vector.shape_cast %283 : vector<1x16x128xf32> to vector<16x128xf32>
    %285 = vector.shape_cast %282 : vector<16x128xf32> to vector<1x16x128xf32>
    tpu.vector_store %arg5[%c7_83, %c0_84, %c0_85], %285 {strides = array<i32>} : memref<8x16x128xf32, #tpu.memory_space<vmem>>, vector<1x16x128xf32>,
    %c0_86 = arith.constant 0 : index
    %c0_87 = arith.constant 0 : index
    %286 = vector.load %arg6[%c0_86, %c0_87] : memref<16x128xf32, #tpu.memory_space<vmem>>, vector<16x128xf32>
    tpu.vector_store %arg6[%c0_86, %c0_87], %282 {strides = array<i32>} : memref<16x128xf32, #tpu.memory_space<vmem>>, vector<16x128xf32>,
    return
  }
  func.func @transform_0(%arg0: i32, %arg1: i32) -> (i32, i32, i32) {
    %c0_i32 = arith.constant 0 : i32
    %c0_i32_0 = arith.constant 0 : i32
    return %arg1, %c0_i32, %arg0 : i32, i32, i32
  }
  func.func @transform_1(%arg0: i32, %arg1: i32) -> (i32, i32) {
    %c0_i32 = arith.constant 0 : i32
    %c0_i32_0 = arith.constant 0 : i32
    %c0_i32_1 = arith.constant 0 : i32
    return %c0_i32, %c0_i32_0 : i32, i32
  }
  func.func @transform_2(%arg0: i32, %arg1: i32) -> (i32, i32) {
    %c0_i32 = arith.constant 0 : i32
    %c0_i32_0 = arith.constant 0 : i32
    %c0_i32_1 = arith.constant 0 : i32
    return %c0_i32, %c0_i32_0 : i32, i32
  }
  func.func @transform_3(%arg0: i32, %arg1: i32) -> (i32, i32, i32) {
    %c0_i32 = arith.constant 0 : i32
    %c0_i32_0 = arith.constant 0 : i32
    return %arg1, %c0_i32, %arg0 : i32, i32, i32
  }
}

module attributes {stable_mosaic.version = 11 : i64} {
  func.func @gru_layer_kernel(%arg0: i32, %arg1: i32, %arg2: memref<8x48x128xf32, #tpu.memory_space<vmem>>, %arg3: memref<48x16xf32, #tpu.memory_space<vmem>>, %arg4: memref<32x32xf32, #tpu.memory_space<vmem>>, %arg5: memref<8x16x128xf32, #tpu.memory_space<vmem>>, %arg6: memref<16x128xf32, #tpu.memory_space<vmem>>) attributes {dimension_semantics = [#tpu.dimension_semantics<parallel>, #tpu.dimension_semantics<arbitrary>], iteration_bounds = array<i64: 1, 2>, scalar_prefetch = 0 : i64, scratch_operands = 1 : i64, tpu.core_type = #tpu.core_type<tc>, window_params = [{transform_indices = @transform_0, window_bounds = array<i64: 8, 48, 128>}, {pipeline_mode = #tpu.pipeline_mode<synchronous>, transform_indices = @transform_1, window_bounds = array<i64: 48, 16>}, {pipeline_mode = #tpu.pipeline_mode<synchronous>, transform_indices = @transform_2, window_bounds = array<i64: 32, 32>}, {transform_indices = @transform_3, window_bounds = array<i64: 8, 16, 128>}]} {
    %c0_i32 = arith.constant 0 : i32
    %0 = arith.cmpi eq, %arg1, %c0_i32 : i32
    %1 = arith.extui %0 : i1 to i32
    %c0_i32_0 = arith.constant 0 : i32
    %2 = arith.cmpi ne, %1, %c0_i32_0 : i32
    scf.if %2 {
      %cst_88 = arith.constant 0.000000e+00 : f32
      %287 = vector.broadcast %cst_88 : f32 to vector<16x128xf32>
      %c0_89 = arith.constant 0 : index
      %c0_90 = arith.constant 0 : index
      %288 = vector.load %arg6[%c0_89, %c0_90] : memref<16x128xf32, #tpu.memory_space<vmem>>, vector<16x128xf32>
      tpu.vector_store %arg6[%c0_89, %c0_90], %287 {strides = array<i32>} : memref<16x128xf32, #tpu.memory_space<vmem>>, vector<16x128xf32>,
    } else {
    }
    %c0 = arith.constant 0 : index
    %c0_1 = arith.constant 0 : index
    %3 = vector.load %arg3[%c0, %c0_1] : memref<48x16xf32, #tpu.memory_space<vmem>>, vector<48x16xf32>
    %c0_2 = arith.constant 0 : index
    %c0_3 = arith.constant 0 : index
    %4 = vector.load %arg4[%c0_2, %c0_3] : memref<32x32xf32, #tpu.memory_space<vmem>>, vector<32x32xf32>
    %c0_4 = arith.constant 0 : index
    %c0_5 = arith.constant 0 : index
    %5 = vector.load %arg6[%c0_4, %c0_5] : memref<16x128xf32, #tpu.memory_space<vmem>>, vector<16x128xf32>
    %c0_6 = arith.constant 0 : index
    %c0_7 = arith.constant 0 : index
    %c0_8 = arith.constant 0 : index
    %6 = vector.load %arg2[%c0_6, %c0_7, %c0_8] : memref<8x48x128xf32, #tpu.memory_space<vmem>>, vector<1x48x128xf32>
    %7 = vector.shape_cast %6 : vector<1x48x128xf32> to vector<48x128xf32>
    %cst = arith.constant dense<0.000000e+00> : vector<48x128xf32>
    %8 = tpu.matmul %3, %5, %cst {dimension_numbers = #tpu.dot_dimension_numbers<[1], [0], [0], [1], [0, 0, 1, 1], [], []>} : vector<48x16xf32>, vector<16x128xf32>, vector<48x128xf32> -> vector<48x128xf32>
    %9 = vector.extract_strided_slice %7 {offsets = [0, 0], sizes = [32, 128], strides = [1, 1]} : vector<48x128xf32> to vector<32x128xf32>
    %10 = vector.extract_strided_slice %8 {offsets = [0, 0], sizes = [32, 128], strides = [1, 1]} : vector<48x128xf32> to vector<32x128xf32>
    %11 = arith.addf %9, %10 : vector<32x128xf32>
    %12 = vector.extract_strided_slice %11 {offsets = [0, 0], sizes = [16, 128], strides = [1, 1]} : vector<32x128xf32> to vector<16x128xf32>
    %13 = arith.negf %12 : vector<16x128xf32>
    %14 = math.exp %13 : vector<16x128xf32>
    %cst_9 = arith.constant 1.000000e+00 : f32
    %15 = vector.broadcast %cst_9 : f32 to vector<16x128xf32>
    %16 = arith.addf %15, %14 : vector<16x128xf32>
    %17 = arith.divf %15, %16 : vector<16x128xf32>
    %18 = vector.extract_strided_slice %11 {offsets = [16, 0], sizes = [16, 128], strides = [1, 1]} : vector<32x128xf32> to vector<16x128xf32>
    %19 = arith.negf %18 : vector<16x128xf32>
    %20 = math.exp %19 : vector<16x128xf32>
    %cst_10 = arith.constant 1.000000e+00 : f32
    %21 = vector.broadcast %cst_10 : f32 to vector<16x128xf32>
    %22 = arith.addf %21, %20 : vector<16x128xf32>
    %23 = arith.divf %21, %22 : vector<16x128xf32>
    %24 = vector.extract_strided_slice %7 {offsets = [32, 0], sizes = [16, 128], strides = [1, 1]} : vector<48x128xf32> to vector<16x128xf32>
    %25 = vector.extract_strided_slice %8 {offsets = [32, 0], sizes = [16, 128], strides = [1, 1]} : vector<48x128xf32> to vector<16x128xf32>
    %26 = arith.mulf %17, %25 : vector<16x128xf32>
    %27 = arith.addf %24, %26 : vector<16x128xf32>
    %28 = math.tanh %27 : vector<16x128xf32>
    %29 = tpu.concatenate %23, %28 in 0 : vector<16x128xf32>, vector<16x128xf32> -> vector<32x128xf32>
    %cst_11 = arith.constant dense<0.000000e+00> : vector<32x128xf32>
    %30 = tpu.matmul %4, %29, %cst_11 {dimension_numbers = #tpu.dot_dimension_numbers<[1], [0], [0], [1], [0, 0, 1, 1], [], []>} : vector<32x32xf32>, vector<32x128xf32>, vector<32x128xf32> -> vector<32x128xf32>
    %31 = vector.extract_strided_slice %30 {offsets = [0, 0], sizes = [16, 128], strides = [1, 1]} : vector<32x128xf32> to vector<16x128xf32>
    %32 = vector.extract_strided_slice %30 {offsets = [16, 0], sizes = [16, 128], strides = [1, 1]} : vector<32x128xf32> to vector<16x128xf32>
    %cst_12 = arith.constant 1.000000e+00 : f32
    %33 = vector.broadcast %cst_12 : f32 to vector<16x128xf32>
    %34 = arith.subf %33, %31 : vector<16x128xf32>
    %35 = arith.mulf %34, %32 : vector<16x128xf32>
    %36 = arith.mulf %31, %5 : vector<16x128xf32>
    %37 = arith.addf %35, %36 : vector<16x128xf32>
    %c0_13 = arith.constant 0 : index
    %c0_14 = arith.constant 0 : index
    %c0_15 = arith.constant 0 : index
    %38 = vector.load %arg5[%c0_13, %c0_14, %c0_15] : memref<8x16x128xf32, #tpu.memory_space<vmem>>, vector<1x16x128xf32>
    %39 = vector.shape_cast %38 : vector<1x16x128xf32> to vector<16x128xf32>
    %40 = vector.shape_cast %37 : vector<16x128xf32> to vector<1x16x128xf32>
    tpu.vector_store %arg5[%c0_13, %c0_14, %c0_15], %40 {strides = array<i32>} : memref<8x16x128xf32, #tpu.memory_space<vmem>>, vector<1x16x128xf32>,
    %c1 = arith.constant 1 : index
    %c0_16 = arith.constant 0 : index
    %c0_17 = arith.constant 0 : index
    %41 = vector.load %arg2[%c1, %c0_16, %c0_17] : memref<8x48x128xf32, #tpu.memory_space<vmem>>, vector<1x48x128xf32>
    %42 = vector.shape_cast %41 : vector<1x48x128xf32> to vector<48x128xf32>
    %cst_18 = arith.constant dense<0.000000e+00> : vector<48x128xf32>
    %43 = tpu.matmul %3, %37, %cst_18 {dimension_numbers = #tpu.dot_dimension_numbers<[1], [0], [0], [1], [0, 0, 1, 1], [], []>} : vector<48x16xf32>, vector<16x128xf32>, vector<48x128xf32> -> vector<48x128xf32>
    %44 = vector.extract_strided_slice %42 {offsets = [0, 0], sizes = [32, 128], strides = [1, 1]} : vector<48x128xf32> to vector<32x128xf32>
    %45 = vector.extract_strided_slice %43 {offsets = [0, 0], sizes = [32, 128], strides = [1, 1]} : vector<48x128xf32> to vector<32x128xf32>
    %46 = arith.addf %44, %45 : vector<32x128xf32>
    %47 = vector.extract_strided_slice %46 {offsets = [0, 0], sizes = [16, 128], strides = [1, 1]} : vector<32x128xf32> to vector<16x128xf32>
    %48 = arith.negf %47 : vector<16x128xf32>
    %49 = math.exp %48 : vector<16x128xf32>
    %cst_19 = arith.constant 1.000000e+00 : f32
    %50 = vector.broadcast %cst_19 : f32 to vector<16x128xf32>
    %51 = arith.addf %50, %49 : vector<16x128xf32>
    %52 = arith.divf %50, %51 : vector<16x128xf32>
    %53 = vector.extract_strided_slice %46 {offsets = [16, 0], sizes = [16, 128], strides = [1, 1]} : vector<32x128xf32> to vector<16x128xf32>
    %54 = arith.negf %53 : vector<16x128xf32>
    %55 = math.exp %54 : vector<16x128xf32>
    %cst_20 = arith.constant 1.000000e+00 : f32
    %56 = vector.broadcast %cst_20 : f32 to vector<16x128xf32>
    %57 = arith.addf %56, %55 : vector<16x128xf32>
    %58 = arith.divf %56, %57 : vector<16x128xf32>
    %59 = vector.extract_strided_slice %42 {offsets = [32, 0], sizes = [16, 128], strides = [1, 1]} : vector<48x128xf32> to vector<16x128xf32>
    %60 = vector.extract_strided_slice %43 {offsets = [32, 0], sizes = [16, 128], strides = [1, 1]} : vector<48x128xf32> to vector<16x128xf32>
    %61 = arith.mulf %52, %60 : vector<16x128xf32>
    %62 = arith.addf %59, %61 : vector<16x128xf32>
    %63 = math.tanh %62 : vector<16x128xf32>
    %64 = tpu.concatenate %58, %63 in 0 : vector<16x128xf32>, vector<16x128xf32> -> vector<32x128xf32>
    %cst_21 = arith.constant dense<0.000000e+00> : vector<32x128xf32>
    %65 = tpu.matmul %4, %64, %cst_21 {dimension_numbers = #tpu.dot_dimension_numbers<[1], [0], [0], [1], [0, 0, 1, 1], [], []>} : vector<32x32xf32>, vector<32x128xf32>, vector<32x128xf32> -> vector<32x128xf32>
    %66 = vector.extract_strided_slice %65 {offsets = [0, 0], sizes = [16, 128], strides = [1, 1]} : vector<32x128xf32> to vector<16x128xf32>
    %67 = vector.extract_strided_slice %65 {offsets = [16, 0], sizes = [16, 128], strides = [1, 1]} : vector<32x128xf32> to vector<16x128xf32>
    %cst_22 = arith.constant 1.000000e+00 : f32
    %68 = vector.broadcast %cst_22 : f32 to vector<16x128xf32>
    %69 = arith.subf %68, %66 : vector<16x128xf32>
    %70 = arith.mulf %69, %67 : vector<16x128xf32>
    %71 = arith.mulf %66, %37 : vector<16x128xf32>
    %72 = arith.addf %70, %71 : vector<16x128xf32>
    %c1_23 = arith.constant 1 : index
    %c0_24 = arith.constant 0 : index
    %c0_25 = arith.constant 0 : index
    %73 = vector.load %arg5[%c1_23, %c0_24, %c0_25] : memref<8x16x128xf32, #tpu.memory_space<vmem>>, vector<1x16x128xf32>
    %74 = vector.shape_cast %73 : vector<1x16x128xf32> to vector<16x128xf32>
    %75 = vector.shape_cast %72 : vector<16x128xf32> to vector<1x16x128xf32>
    tpu.vector_store %arg5[%c1_23, %c0_24, %c0_25], %75 {strides = array<i32>} : memref<8x16x128xf32, #tpu.memory_space<vmem>>, vector<1x16x128xf32>,
    %c2 = arith.constant 2 : index
    %c0_26 = arith.constant 0 : index
    %c0_27 = arith.constant 0 : index
    %76 = vector.load %arg2[%c2, %c0_26, %c0_27] : memref<8x48x128xf32, #tpu.memory_space<vmem>>, vector<1x48x128xf32>
    %77 = vector.shape_cast %76 : vector<1x48x128xf32> to vector<48x128xf32>
    %cst_28 = arith.constant dense<0.000000e+00> : vector<48x128xf32>
    %78 = tpu.matmul %3, %72, %cst_28 {dimension_numbers = #tpu.dot_dimension_numbers<[1], [0], [0], [1], [0, 0, 1, 1], [], []>} : vector<48x16xf32>, vector<16x128xf32>, vector<48x128xf32> -> vector<48x128xf32>
    %79 = vector.extract_strided_slice %77 {offsets = [0, 0], sizes = [32, 128], strides = [1, 1]} : vector<48x128xf32> to vector<32x128xf32>
    %80 = vector.extract_strided_slice %78 {offsets = [0, 0], sizes = [32, 128], strides = [1, 1]} : vector<48x128xf32> to vector<32x128xf32>
    %81 = arith.addf %79, %80 : vector<32x128xf32>
    %82 = vector.extract_strided_slice %81 {offsets = [0, 0], sizes = [16, 128], strides = [1, 1]} : vector<32x128xf32> to vector<16x128xf32>
    %83 = arith.negf %82 : vector<16x128xf32>
    %84 = math.exp %83 : vector<16x128xf32>
    %cst_29 = arith.constant 1.000000e+00 : f32
    %85 = vector.broadcast %cst_29 : f32 to vector<16x128xf32>
    %86 = arith.addf %85, %84 : vector<16x128xf32>
    %87 = arith.divf %85, %86 : vector<16x128xf32>
    %88 = vector.extract_strided_slice %81 {offsets = [16, 0], sizes = [16, 128], strides = [1, 1]} : vector<32x128xf32> to vector<16x128xf32>
    %89 = arith.negf %88 : vector<16x128xf32>
    %90 = math.exp %89 : vector<16x128xf32>
    %cst_30 = arith.constant 1.000000e+00 : f32
    %91 = vector.broadcast %cst_30 : f32 to vector<16x128xf32>
    %92 = arith.addf %91, %90 : vector<16x128xf32>
    %93 = arith.divf %91, %92 : vector<16x128xf32>
    %94 = vector.extract_strided_slice %77 {offsets = [32, 0], sizes = [16, 128], strides = [1, 1]} : vector<48x128xf32> to vector<16x128xf32>
    %95 = vector.extract_strided_slice %78 {offsets = [32, 0], sizes = [16, 128], strides = [1, 1]} : vector<48x128xf32> to vector<16x128xf32>
    %96 = arith.mulf %87, %95 : vector<16x128xf32>
    %97 = arith.addf %94, %96 : vector<16x128xf32>
    %98 = math.tanh %97 : vector<16x128xf32>
    %99 = tpu.concatenate %93, %98 in 0 : vector<16x128xf32>, vector<16x128xf32> -> vector<32x128xf32>
    %cst_31 = arith.constant dense<0.000000e+00> : vector<32x128xf32>
    %100 = tpu.matmul %4, %99, %cst_31 {dimension_numbers = #tpu.dot_dimension_numbers<[1], [0], [0], [1], [0, 0, 1, 1], [], []>} : vector<32x32xf32>, vector<32x128xf32>, vector<32x128xf32> -> vector<32x128xf32>
    %101 = vector.extract_strided_slice %100 {offsets = [0, 0], sizes = [16, 128], strides = [1, 1]} : vector<32x128xf32> to vector<16x128xf32>
    %102 = vector.extract_strided_slice %100 {offsets = [16, 0], sizes = [16, 128], strides = [1, 1]} : vector<32x128xf32> to vector<16x128xf32>
    %cst_32 = arith.constant 1.000000e+00 : f32
    %103 = vector.broadcast %cst_32 : f32 to vector<16x128xf32>
    %104 = arith.subf %103, %101 : vector<16x128xf32>
    %105 = arith.mulf %104, %102 : vector<16x128xf32>
    %106 = arith.mulf %101, %72 : vector<16x128xf32>
    %107 = arith.addf %105, %106 : vector<16x128xf32>
    %c2_33 = arith.constant 2 : index
    %c0_34 = arith.constant 0 : index
    %c0_35 = arith.constant 0 : index
    %108 = vector.load %arg5[%c2_33, %c0_34, %c0_35] : memref<8x16x128xf32, #tpu.memory_space<vmem>>, vector<1x16x128xf32>
    %109 = vector.shape_cast %108 : vector<1x16x128xf32> to vector<16x128xf32>
    %110 = vector.shape_cast %107 : vector<16x128xf32> to vector<1x16x128xf32>
    tpu.vector_store %arg5[%c2_33, %c0_34, %c0_35], %110 {strides = array<i32>} : memref<8x16x128xf32, #tpu.memory_space<vmem>>, vector<1x16x128xf32>,
    %c3 = arith.constant 3 : index
    %c0_36 = arith.constant 0 : index
    %c0_37 = arith.constant 0 : index
    %111 = vector.load %arg2[%c3, %c0_36, %c0_37] : memref<8x48x128xf32, #tpu.memory_space<vmem>>, vector<1x48x128xf32>
    %112 = vector.shape_cast %111 : vector<1x48x128xf32> to vector<48x128xf32>
    %cst_38 = arith.constant dense<0.000000e+00> : vector<48x128xf32>
    %113 = tpu.matmul %3, %107, %cst_38 {dimension_numbers = #tpu.dot_dimension_numbers<[1], [0], [0], [1], [0, 0, 1, 1], [], []>} : vector<48x16xf32>, vector<16x128xf32>, vector<48x128xf32> -> vector<48x128xf32>
    %114 = vector.extract_strided_slice %112 {offsets = [0, 0], sizes = [32, 128], strides = [1, 1]} : vector<48x128xf32> to vector<32x128xf32>
    %115 = vector.extract_strided_slice %113 {offsets = [0, 0], sizes = [32, 128], strides = [1, 1]} : vector<48x128xf32> to vector<32x128xf32>
    %116 = arith.addf %114, %115 : vector<32x128xf32>
    %117 = vector.extract_strided_slice %116 {offsets = [0, 0], sizes = [16, 128], strides = [1, 1]} : vector<32x128xf32> to vector<16x128xf32>
    %118 = arith.negf %117 : vector<16x128xf32>
    %119 = math.exp %118 : vector<16x128xf32>
    %cst_39 = arith.constant 1.000000e+00 : f32
    %120 = vector.broadcast %cst_39 : f32 to vector<16x128xf32>
    %121 = arith.addf %120, %119 : vector<16x128xf32>
    %122 = arith.divf %120, %121 : vector<16x128xf32>
    %123 = vector.extract_strided_slice %116 {offsets = [16, 0], sizes = [16, 128], strides = [1, 1]} : vector<32x128xf32> to vector<16x128xf32>
    %124 = arith.negf %123 : vector<16x128xf32>
    %125 = math.exp %124 : vector<16x128xf32>
    %cst_40 = arith.constant 1.000000e+00 : f32
    %126 = vector.broadcast %cst_40 : f32 to vector<16x128xf32>
    %127 = arith.addf %126, %125 : vector<16x128xf32>
    %128 = arith.divf %126, %127 : vector<16x128xf32>
    %129 = vector.extract_strided_slice %112 {offsets = [32, 0], sizes = [16, 128], strides = [1, 1]} : vector<48x128xf32> to vector<16x128xf32>
    %130 = vector.extract_strided_slice %113 {offsets = [32, 0], sizes = [16, 128], strides = [1, 1]} : vector<48x128xf32> to vector<16x128xf32>
    %131 = arith.mulf %122, %130 : vector<16x128xf32>
    %132 = arith.addf %129, %131 : vector<16x128xf32>
    %133 = math.tanh %132 : vector<16x128xf32>
    %134 = tpu.concatenate %128, %133 in 0 : vector<16x128xf32>, vector<16x128xf32> -> vector<32x128xf32>
    %cst_41 = arith.constant dense<0.000000e+00> : vector<32x128xf32>
    %135 = tpu.matmul %4, %134, %cst_41 {dimension_numbers = #tpu.dot_dimension_numbers<[1], [0], [0], [1], [0, 0, 1, 1], [], []>} : vector<32x32xf32>, vector<32x128xf32>, vector<32x128xf32> -> vector<32x128xf32>
    %136 = vector.extract_strided_slice %135 {offsets = [0, 0], sizes = [16, 128], strides = [1, 1]} : vector<32x128xf32> to vector<16x128xf32>
    %137 = vector.extract_strided_slice %135 {offsets = [16, 0], sizes = [16, 128], strides = [1, 1]} : vector<32x128xf32> to vector<16x128xf32>
    %cst_42 = arith.constant 1.000000e+00 : f32
    %138 = vector.broadcast %cst_42 : f32 to vector<16x128xf32>
    %139 = arith.subf %138, %136 : vector<16x128xf32>
    %140 = arith.mulf %139, %137 : vector<16x128xf32>
    %141 = arith.mulf %136, %107 : vector<16x128xf32>
    %142 = arith.addf %140, %141 : vector<16x128xf32>
    %c3_43 = arith.constant 3 : index
    %c0_44 = arith.constant 0 : index
    %c0_45 = arith.constant 0 : index
    %143 = vector.load %arg5[%c3_43, %c0_44, %c0_45] : memref<8x16x128xf32, #tpu.memory_space<vmem>>, vector<1x16x128xf32>
    %144 = vector.shape_cast %143 : vector<1x16x128xf32> to vector<16x128xf32>
    %145 = vector.shape_cast %142 : vector<16x128xf32> to vector<1x16x128xf32>
    tpu.vector_store %arg5[%c3_43, %c0_44, %c0_45], %145 {strides = array<i32>} : memref<8x16x128xf32, #tpu.memory_space<vmem>>, vector<1x16x128xf32>,
    %c4 = arith.constant 4 : index
    %c0_46 = arith.constant 0 : index
    %c0_47 = arith.constant 0 : index
    %146 = vector.load %arg2[%c4, %c0_46, %c0_47] : memref<8x48x128xf32, #tpu.memory_space<vmem>>, vector<1x48x128xf32>
    %147 = vector.shape_cast %146 : vector<1x48x128xf32> to vector<48x128xf32>
    %cst_48 = arith.constant dense<0.000000e+00> : vector<48x128xf32>
    %148 = tpu.matmul %3, %142, %cst_48 {dimension_numbers = #tpu.dot_dimension_numbers<[1], [0], [0], [1], [0, 0, 1, 1], [], []>} : vector<48x16xf32>, vector<16x128xf32>, vector<48x128xf32> -> vector<48x128xf32>
    %149 = vector.extract_strided_slice %147 {offsets = [0, 0], sizes = [32, 128], strides = [1, 1]} : vector<48x128xf32> to vector<32x128xf32>
    %150 = vector.extract_strided_slice %148 {offsets = [0, 0], sizes = [32, 128], strides = [1, 1]} : vector<48x128xf32> to vector<32x128xf32>
    %151 = arith.addf %149, %150 : vector<32x128xf32>
    %152 = vector.extract_strided_slice %151 {offsets = [0, 0], sizes = [16, 128], strides = [1, 1]} : vector<32x128xf32> to vector<16x128xf32>
    %153 = arith.negf %152 : vector<16x128xf32>
    %154 = math.exp %153 : vector<16x128xf32>
    %cst_49 = arith.constant 1.000000e+00 : f32
    %155 = vector.broadcast %cst_49 : f32 to vector<16x128xf32>
    %156 = arith.addf %155, %154 : vector<16x128xf32>
    %157 = arith.divf %155, %156 : vector<16x128xf32>
    %158 = vector.extract_strided_slice %151 {offsets = [16, 0], sizes = [16, 128], strides = [1, 1]} : vector<32x128xf32> to vector<16x128xf32>
    %159 = arith.negf %158 : vector<16x128xf32>
    %160 = math.exp %159 : vector<16x128xf32>
    %cst_50 = arith.constant 1.000000e+00 : f32
    %161 = vector.broadcast %cst_50 : f32 to vector<16x128xf32>
    %162 = arith.addf %161, %160 : vector<16x128xf32>
    %163 = arith.divf %161, %162 : vector<16x128xf32>
    %164 = vector.extract_strided_slice %147 {offsets = [32, 0], sizes = [16, 128], strides = [1, 1]} : vector<48x128xf32> to vector<16x128xf32>
    %165 = vector.extract_strided_slice %148 {offsets = [32, 0], sizes = [16, 128], strides = [1, 1]} : vector<48x128xf32> to vector<16x128xf32>
    %166 = arith.mulf %157, %165 : vector<16x128xf32>
    %167 = arith.addf %164, %166 : vector<16x128xf32>
    %168 = math.tanh %167 : vector<16x128xf32>
    %169 = tpu.concatenate %163, %168 in 0 : vector<16x128xf32>, vector<16x128xf32> -> vector<32x128xf32>
    %cst_51 = arith.constant dense<0.000000e+00> : vector<32x128xf32>
    %170 = tpu.matmul %4, %169, %cst_51 {dimension_numbers = #tpu.dot_dimension_numbers<[1], [0], [0], [1], [0, 0, 1, 1], [], []>} : vector<32x32xf32>, vector<32x128xf32>, vector<32x128xf32> -> vector<32x128xf32>
    %171 = vector.extract_strided_slice %170 {offsets = [0, 0], sizes = [16, 128], strides = [1, 1]} : vector<32x128xf32> to vector<16x128xf32>
    %172 = vector.extract_strided_slice %170 {offsets = [16, 0], sizes = [16, 128], strides = [1, 1]} : vector<32x128xf32> to vector<16x128xf32>
    %cst_52 = arith.constant 1.000000e+00 : f32
    %173 = vector.broadcast %cst_52 : f32 to vector<16x128xf32>
    %174 = arith.subf %173, %171 : vector<16x128xf32>
    %175 = arith.mulf %174, %172 : vector<16x128xf32>
    %176 = arith.mulf %171, %142 : vector<16x128xf32>
    %177 = arith.addf %175, %176 : vector<16x128xf32>
    %c4_53 = arith.constant 4 : index
    %c0_54 = arith.constant 0 : index
    %c0_55 = arith.constant 0 : index
    %178 = vector.load %arg5[%c4_53, %c0_54, %c0_55] : memref<8x16x128xf32, #tpu.memory_space<vmem>>, vector<1x16x128xf32>
    %179 = vector.shape_cast %178 : vector<1x16x128xf32> to vector<16x128xf32>
    %180 = vector.shape_cast %177 : vector<16x128xf32> to vector<1x16x128xf32>
    tpu.vector_store %arg5[%c4_53, %c0_54, %c0_55], %180 {strides = array<i32>} : memref<8x16x128xf32, #tpu.memory_space<vmem>>, vector<1x16x128xf32>,
    %c5 = arith.constant 5 : index
    %c0_56 = arith.constant 0 : index
    %c0_57 = arith.constant 0 : index
    %181 = vector.load %arg2[%c5, %c0_56, %c0_57] : memref<8x48x128xf32, #tpu.memory_space<vmem>>, vector<1x48x128xf32>
    %182 = vector.shape_cast %181 : vector<1x48x128xf32> to vector<48x128xf32>
    %cst_58 = arith.constant dense<0.000000e+00> : vector<48x128xf32>
    %183 = tpu.matmul %3, %177, %cst_58 {dimension_numbers = #tpu.dot_dimension_numbers<[1], [0], [0], [1], [0, 0, 1, 1], [], []>} : vector<48x16xf32>, vector<16x128xf32>, vector<48x128xf32> -> vector<48x128xf32>
    %184 = vector.extract_strided_slice %182 {offsets = [0, 0], sizes = [32, 128], strides = [1, 1]} : vector<48x128xf32> to vector<32x128xf32>
    %185 = vector.extract_strided_slice %183 {offsets = [0, 0], sizes = [32, 128], strides = [1, 1]} : vector<48x128xf32> to vector<32x128xf32>
    %186 = arith.addf %184, %185 : vector<32x128xf32>
    %187 = vector.extract_strided_slice %186 {offsets = [0, 0], sizes = [16, 128], strides = [1, 1]} : vector<32x128xf32> to vector<16x128xf32>
    %188 = arith.negf %187 : vector<16x128xf32>
    %189 = math.exp %188 : vector<16x128xf32>
    %cst_59 = arith.constant 1.000000e+00 : f32
    %190 = vector.broadcast %cst_59 : f32 to vector<16x128xf32>
    %191 = arith.addf %190, %189 : vector<16x128xf32>
    %192 = arith.divf %190, %191 : vector<16x128xf32>
    %193 = vector.extract_strided_slice %186 {offsets = [16, 0], sizes = [16, 128], strides = [1, 1]} : vector<32x128xf32> to vector<16x128xf32>
    %194 = arith.negf %193 : vector<16x128xf32>
    %195 = math.exp %194 : vector<16x128xf32>
    %cst_60 = arith.constant 1.000000e+00 : f32
    %196 = vector.broadcast %cst_60 : f32 to vector<16x128xf32>
    %197 = arith.addf %196, %195 : vector<16x128xf32>
    %198 = arith.divf %196, %197 : vector<16x128xf32>
    %199 = vector.extract_strided_slice %182 {offsets = [32, 0], sizes = [16, 128], strides = [1, 1]} : vector<48x128xf32> to vector<16x128xf32>
    %200 = vector.extract_strided_slice %183 {offsets = [32, 0], sizes = [16, 128], strides = [1, 1]} : vector<48x128xf32> to vector<16x128xf32>
    %201 = arith.mulf %192, %200 : vector<16x128xf32>
    %202 = arith.addf %199, %201 : vector<16x128xf32>
    %203 = math.tanh %202 : vector<16x128xf32>
    %204 = tpu.concatenate %198, %203 in 0 : vector<16x128xf32>, vector<16x128xf32> -> vector<32x128xf32>
    %cst_61 = arith.constant dense<0.000000e+00> : vector<32x128xf32>
    %205 = tpu.matmul %4, %204, %cst_61 {dimension_numbers = #tpu.dot_dimension_numbers<[1], [0], [0], [1], [0, 0, 1, 1], [], []>} : vector<32x32xf32>, vector<32x128xf32>, vector<32x128xf32> -> vector<32x128xf32>
    %206 = vector.extract_strided_slice %205 {offsets = [0, 0], sizes = [16, 128], strides = [1, 1]} : vector<32x128xf32> to vector<16x128xf32>
    %207 = vector.extract_strided_slice %205 {offsets = [16, 0], sizes = [16, 128], strides = [1, 1]} : vector<32x128xf32> to vector<16x128xf32>
    %cst_62 = arith.constant 1.000000e+00 : f32
    %208 = vector.broadcast %cst_62 : f32 to vector<16x128xf32>
    %209 = arith.subf %208, %206 : vector<16x128xf32>
    %210 = arith.mulf %209, %207 : vector<16x128xf32>
    %211 = arith.mulf %206, %177 : vector<16x128xf32>
    %212 = arith.addf %210, %211 : vector<16x128xf32>
    %c5_63 = arith.constant 5 : index
    %c0_64 = arith.constant 0 : index
    %c0_65 = arith.constant 0 : index
    %213 = vector.load %arg5[%c5_63, %c0_64, %c0_65] : memref<8x16x128xf32, #tpu.memory_space<vmem>>, vector<1x16x128xf32>
    %214 = vector.shape_cast %213 : vector<1x16x128xf32> to vector<16x128xf32>
    %215 = vector.shape_cast %212 : vector<16x128xf32> to vector<1x16x128xf32>
    tpu.vector_store %arg5[%c5_63, %c0_64, %c0_65], %215 {strides = array<i32>} : memref<8x16x128xf32, #tpu.memory_space<vmem>>, vector<1x16x128xf32>,
    %c6 = arith.constant 6 : index
    %c0_66 = arith.constant 0 : index
    %c0_67 = arith.constant 0 : index
    %216 = vector.load %arg2[%c6, %c0_66, %c0_67] : memref<8x48x128xf32, #tpu.memory_space<vmem>>, vector<1x48x128xf32>
    %217 = vector.shape_cast %216 : vector<1x48x128xf32> to vector<48x128xf32>
    %cst_68 = arith.constant dense<0.000000e+00> : vector<48x128xf32>
    %218 = tpu.matmul %3, %212, %cst_68 {dimension_numbers = #tpu.dot_dimension_numbers<[1], [0], [0], [1], [0, 0, 1, 1], [], []>} : vector<48x16xf32>, vector<16x128xf32>, vector<48x128xf32> -> vector<48x128xf32>
    %219 = vector.extract_strided_slice %217 {offsets = [0, 0], sizes = [32, 128], strides = [1, 1]} : vector<48x128xf32> to vector<32x128xf32>
    %220 = vector.extract_strided_slice %218 {offsets = [0, 0], sizes = [32, 128], strides = [1, 1]} : vector<48x128xf32> to vector<32x128xf32>
    %221 = arith.addf %219, %220 : vector<32x128xf32>
    %222 = vector.extract_strided_slice %221 {offsets = [0, 0], sizes = [16, 128], strides = [1, 1]} : vector<32x128xf32> to vector<16x128xf32>
    %223 = arith.negf %222 : vector<16x128xf32>
    %224 = math.exp %223 : vector<16x128xf32>
    %cst_69 = arith.constant 1.000000e+00 : f32
    %225 = vector.broadcast %cst_69 : f32 to vector<16x128xf32>
    %226 = arith.addf %225, %224 : vector<16x128xf32>
    %227 = arith.divf %225, %226 : vector<16x128xf32>
    %228 = vector.extract_strided_slice %221 {offsets = [16, 0], sizes = [16, 128], strides = [1, 1]} : vector<32x128xf32> to vector<16x128xf32>
    %229 = arith.negf %228 : vector<16x128xf32>
    %230 = math.exp %229 : vector<16x128xf32>
    %cst_70 = arith.constant 1.000000e+00 : f32
    %231 = vector.broadcast %cst_70 : f32 to vector<16x128xf32>
    %232 = arith.addf %231, %230 : vector<16x128xf32>
    %233 = arith.divf %231, %232 : vector<16x128xf32>
    %234 = vector.extract_strided_slice %217 {offsets = [32, 0], sizes = [16, 128], strides = [1, 1]} : vector<48x128xf32> to vector<16x128xf32>
    %235 = vector.extract_strided_slice %218 {offsets = [32, 0], sizes = [16, 128], strides = [1, 1]} : vector<48x128xf32> to vector<16x128xf32>
    %236 = arith.mulf %227, %235 : vector<16x128xf32>
    %237 = arith.addf %234, %236 : vector<16x128xf32>
    %238 = math.tanh %237 : vector<16x128xf32>
    %239 = tpu.concatenate %233, %238 in 0 : vector<16x128xf32>, vector<16x128xf32> -> vector<32x128xf32>
    %cst_71 = arith.constant dense<0.000000e+00> : vector<32x128xf32>
    %240 = tpu.matmul %4, %239, %cst_71 {dimension_numbers = #tpu.dot_dimension_numbers<[1], [0], [0], [1], [0, 0, 1, 1], [], []>} : vector<32x32xf32>, vector<32x128xf32>, vector<32x128xf32> -> vector<32x128xf32>
    %241 = vector.extract_strided_slice %240 {offsets = [0, 0], sizes = [16, 128], strides = [1, 1]} : vector<32x128xf32> to vector<16x128xf32>
    %242 = vector.extract_strided_slice %240 {offsets = [16, 0], sizes = [16, 128], strides = [1, 1]} : vector<32x128xf32> to vector<16x128xf32>
    %cst_72 = arith.constant 1.000000e+00 : f32
    %243 = vector.broadcast %cst_72 : f32 to vector<16x128xf32>
    %244 = arith.subf %243, %241 : vector<16x128xf32>
    %245 = arith.mulf %244, %242 : vector<16x128xf32>
    %246 = arith.mulf %241, %212 : vector<16x128xf32>
    %247 = arith.addf %245, %246 : vector<16x128xf32>
    %c6_73 = arith.constant 6 : index
    %c0_74 = arith.constant 0 : index
    %c0_75 = arith.constant 0 : index
    %248 = vector.load %arg5[%c6_73, %c0_74, %c0_75] : memref<8x16x128xf32, #tpu.memory_space<vmem>>, vector<1x16x128xf32>
    %249 = vector.shape_cast %248 : vector<1x16x128xf32> to vector<16x128xf32>
    %250 = vector.shape_cast %247 : vector<16x128xf32> to vector<1x16x128xf32>
    tpu.vector_store %arg5[%c6_73, %c0_74, %c0_75], %250 {strides = array<i32>} : memref<8x16x128xf32, #tpu.memory_space<vmem>>, vector<1x16x128xf32>,
    %c7 = arith.constant 7 : index
    %c0_76 = arith.constant 0 : index
    %c0_77 = arith.constant 0 : index
    %251 = vector.load %arg2[%c7, %c0_76, %c0_77] : memref<8x48x128xf32, #tpu.memory_space<vmem>>, vector<1x48x128xf32>
    %252 = vector.shape_cast %251 : vector<1x48x128xf32> to vector<48x128xf32>
    %cst_78 = arith.constant dense<0.000000e+00> : vector<48x128xf32>
    %253 = tpu.matmul %3, %247, %cst_78 {dimension_numbers = #tpu.dot_dimension_numbers<[1], [0], [0], [1], [0, 0, 1, 1], [], []>} : vector<48x16xf32>, vector<16x128xf32>, vector<48x128xf32> -> vector<48x128xf32>
    %254 = vector.extract_strided_slice %252 {offsets = [0, 0], sizes = [32, 128], strides = [1, 1]} : vector<48x128xf32> to vector<32x128xf32>
    %255 = vector.extract_strided_slice %253 {offsets = [0, 0], sizes = [32, 128], strides = [1, 1]} : vector<48x128xf32> to vector<32x128xf32>
    %256 = arith.addf %254, %255 : vector<32x128xf32>
    %257 = vector.extract_strided_slice %256 {offsets = [0, 0], sizes = [16, 128], strides = [1, 1]} : vector<32x128xf32> to vector<16x128xf32>
    %258 = arith.negf %257 : vector<16x128xf32>
    %259 = math.exp %258 : vector<16x128xf32>
    %cst_79 = arith.constant 1.000000e+00 : f32
    %260 = vector.broadcast %cst_79 : f32 to vector<16x128xf32>
    %261 = arith.addf %260, %259 : vector<16x128xf32>
    %262 = arith.divf %260, %261 : vector<16x128xf32>
    %263 = vector.extract_strided_slice %256 {offsets = [16, 0], sizes = [16, 128], strides = [1, 1]} : vector<32x128xf32> to vector<16x128xf32>
    %264 = arith.negf %263 : vector<16x128xf32>
    %265 = math.exp %264 : vector<16x128xf32>
    %cst_80 = arith.constant 1.000000e+00 : f32
    %266 = vector.broadcast %cst_80 : f32 to vector<16x128xf32>
    %267 = arith.addf %266, %265 : vector<16x128xf32>
    %268 = arith.divf %266, %267 : vector<16x128xf32>
    %269 = vector.extract_strided_slice %252 {offsets = [32, 0], sizes = [16, 128], strides = [1, 1]} : vector<48x128xf32> to vector<16x128xf32>
    %270 = vector.extract_strided_slice %253 {offsets = [32, 0], sizes = [16, 128], strides = [1, 1]} : vector<48x128xf32> to vector<16x128xf32>
    %271 = arith.mulf %262, %270 : vector<16x128xf32>
    %272 = arith.addf %269, %271 : vector<16x128xf32>
    %273 = math.tanh %272 : vector<16x128xf32>
    %274 = tpu.concatenate %268, %273 in 0 : vector<16x128xf32>, vector<16x128xf32> -> vector<32x128xf32>
    %cst_81 = arith.constant dense<0.000000e+00> : vector<32x128xf32>
    %275 = tpu.matmul %4, %274, %cst_81 {dimension_numbers = #tpu.dot_dimension_numbers<[1], [0], [0], [1], [0, 0, 1, 1], [], []>} : vector<32x32xf32>, vector<32x128xf32>, vector<32x128xf32> -> vector<32x128xf32>
    %276 = vector.extract_strided_slice %275 {offsets = [0, 0], sizes = [16, 128], strides = [1, 1]} : vector<32x128xf32> to vector<16x128xf32>
    %277 = vector.extract_strided_slice %275 {offsets = [16, 0], sizes = [16, 128], strides = [1, 1]} : vector<32x128xf32> to vector<16x128xf32>
    %cst_82 = arith.constant 1.000000e+00 : f32
    %278 = vector.broadcast %cst_82 : f32 to vector<16x128xf32>
    %279 = arith.subf %278, %276 : vector<16x128xf32>
    %280 = arith.mulf %279, %277 : vector<16x128xf32>
    %281 = arith.mulf %276, %247 : vector<16x128xf32>
    %282 = arith.addf %280, %281 : vector<16x128xf32>
    %c7_83 = arith.constant 7 : index
    %c0_84 = arith.constant 0 : index
    %c0_85 = arith.constant 0 : index
    %283 = vector.load %arg5[%c7_83, %c0_84, %c0_85] : memref<8x16x128xf32, #tpu.memory_space<vmem>>, vector<1x16x128xf32>
    %284 = vector.shape_cast %283 : vector<1x16x128xf32> to vector<16x128xf32>
    %285 = vector.shape_cast %282 : vector<16x128xf32> to vector<1x16x128xf32>
    tpu.vector_store %arg5[%c7_83, %c0_84, %c0_85], %285 {strides = array<i32>} : memref<8x16x128xf32, #tpu.memory_space<vmem>>, vector<1x16x128xf32>,
    %c0_86 = arith.constant 0 : index
    %c0_87 = arith.constant 0 : index
    %286 = vector.load %arg6[%c0_86, %c0_87] : memref<16x128xf32, #tpu.memory_space<vmem>>, vector<16x128xf32>
    tpu.vector_store %arg6[%c0_86, %c0_87], %282 {strides = array<i32>} : memref<16x128xf32, #tpu.memory_space<vmem>>, vector<16x128xf32>,
    return
  }
  func.func @transform_0(%arg0: i32, %arg1: i32) -> (i32, i32, i32) {
    %c0_i32 = arith.constant 0 : i32
    %c0_i32_0 = arith.constant 0 : i32
    return %arg1, %c0_i32, %arg0 : i32, i32, i32
  }
  func.func @transform_1(%arg0: i32, %arg1: i32) -> (i32, i32) {
    %c0_i32 = arith.constant 0 : i32
    %c0_i32_0 = arith.constant 0 : i32
    %c0_i32_1 = arith.constant 0 : i32
    return %c0_i32, %c0_i32_0 : i32, i32
  }
  func.func @transform_2(%arg0: i32, %arg1: i32) -> (i32, i32) {
    %c0_i32 = arith.constant 0 : i32
    %c0_i32_0 = arith.constant 0 : i32
    %c0_i32_1 = arith.constant 0 : i32
    return %c0_i32, %c0_i32_0 : i32, i32
  }
  func.func @transform_3(%arg0: i32, %arg1: i32) -> (i32, i32, i32) {
    %c0_i32 = arith.constant 0 : i32
    %c0_i32_0 = arith.constant 0 : i32
    return %arg1, %c0_i32, %arg0 : i32, i32, i32
  }
}

</mosaic_0001>

<llo_original>
// kernel: tpu_custom_call.1
$region0: #{tpu_custom_call.1}
  #allocation0 [shape = 'u32[]', space=smem, size = 0x4, offset = 0x4, fixed_abs, tag = 'smem constant byte address 0x4 - core index']
  #allocation1 [shape = 'u32[144,128]{1,0:T(1,128)}', space=vmem, size = 0x12000, scoped, tag = 'internal scratch']
  #allocation2 [shape = 'f32[16,128]{1,0:T(8,128)}', space=vmem, size = 0x2000, scoped, tag = 'scratch operand']
  %s0 = inlined_call_operand.hbm [shape: f32[16,48,128], index: 0, kind: input, shape index: {}]
  %s1 = inlined_call_operand.vmem [shape: f32[48,16], index: 1, kind: input, shape index: {}]
  %s2 = inlined_call_operand.vmem [shape: f32[32,32], index: 2, kind: input, shape index: {}]
  %s3 = inlined_call_operand.hbm [shape: f32[16,16,128], index: 3, kind: output, shape index: {}]
  %s4 = sld [smem:[#allocation0]]
  $region53: #{tpu_custom_call.1} parent=0
    _
  %s6 = ssub.s32 1, %s4
  %s7 = scalar_select 0, %s6, %s4
  $region1: #{tpu_custom_call.1} parent=0
    #allocation3 [shape = 'u8[393216]{0}', space=vmem, size = 0x60000, scoped, tag = 'input window, operand 0']
    #allocation4 [shape = 's32[2]{0}', space=sflag, size = 0x8, scoped, tag = 'scoped memory for tpu_custom_call.1']
    #allocation5 [shape = 's32[2]{0}', space=sflag, size = 0x8, scoped, tag = 'scoped memory for tpu_custom_call.1']
    #allocation6 [shape = 'u8[131072]{0}', space=vmem, size = 0x20000, scoped, tag = 'output window, operand 0']
    %8 = vsyncpa [#allocation4], 0
    %s9 = scalar_lea.sflag [#allocation4], 1
    %10 = vsyncpa %s9, 0
    %11 = vsyncpa [#allocation5], 0
    %s12 = scalar_lea.sflag [#allocation5], 1
    %13 = vsyncpa %s12, 0
    loop: start=0, step=1, limit=4
    $region2: #{tpu_custom_call.1} parent=1 // loop_pre_header
      _
    $region3: #{tpu_custom_call.1} parent=1 // loop_header
      %s15 = sphi 0, %s19
      %p16 = scmp.ge.s32.totalorder %s15, 4
      %s22 = sphi 0, %s34
      %s23 = sphi 0, %s30
      %s24 = sphi 0, %s22
      %s25 = sphi 0, %s23
      %s26 = sphi 0, %s24
      %s27 = sphi 0, %s25
      %s39 = sphi 0, %s41
      %s42 = sphi 0, %s39
      %s43 = sphi 0, %s42
      %s59 = sphi 0, %s43
      %s63 = sphi 0, %s63
      %s65 = sphi 0, %s63
      %s66 = sphi 0, %s65
      %s80 = sphi 0, %s66
      %s84 = sphi 0, %s84
      %s86 = sphi 0, %s84
      %s87 = sphi 0, %s86
      %s101 = sphi 0, %s87
      %s109 = sphi 0, %s111
      %s112 = sphi 0, %s109
      %s113 = sphi 0, %s112
      %s129 = sphi 0, %s113
    $region4: #{tpu_custom_call.1} parent=1 // loop_header_branch
      %18 = sbr.rel (%p16) target = $region8
    $region5: #{tpu_custom_call.1} parent=1 // loop_body
      %s20 = ssub.s32 %s15, 1
      %s21 = ssub.s32 %s15, 2
      %s28 = sadd.s32 1, %s23
      %p29 = scmp.ge.s32.totalorder %s28, 2
      %s30 = scalar_select %p29, 0, %s28
      %s31 = sadd.s32 1, %s22
      %s32 = scalar_select %p29, %s31, %s22
      %p33 = scmp.ge.s32.totalorder %s32, 1
      %s34 = scalar_select %p33, 0, %s32
      %s35 = ssub.s32 %s23, %s30
      %s36 = ssub.s32 %s22, %s34
      %s37 = sor.u32 %s35, %s36
      %p38 = scmp.eq.s32.totalorder %s37, 0
      %s40 = sadd.s32 %s39, 1
      %s41 = scalar_select %p38, %s39, %s40
      %p44 = pneg %p38
      %p45 = scmp.eq.s32.totalorder %s15, 1
      %p46 = por %p44, %p45
      %p47 = scmp.ne.s32.totalorder %s39, %s42
      %p48 = scmp.eq.s32.totalorder %s15, 0
      %p49 = por %p47, %p48
      %p50 = scmp.ne.s32.totalorder %s39, %s42
      %p51 = scmp.eq.s32.totalorder %s20, 1
      %p52 = por %p50, %p51
      %p53 = scmp.ne.s32.totalorder %s42, %s43
      %p54 = scmp.eq.s32.totalorder %s20, 0
      %p55 = por %p53, %p54
      %p56 = scmp.ne.s32.totalorder %s42, %s43
      %p57 = scmp.eq.s32.totalorder %s21, 1
      %p58 = por %p56, %p57
      %p60 = scmp.ne.s32.totalorder %s43, %s59
      %p61 = scmp.eq.s32.totalorder %s21, 0
      %p62 = por %p60, %p61
      %s64 = sadd.s32 %s63, 1
      %p67 = scmp.eq.s32.totalorder %s15, 1
      %p68 = scmp.ne.s32.totalorder %s63, %s65
      %p69 = scmp.eq.s32.totalorder %s15, 0
      %p70 = por %p68, %p69
      %p71 = scmp.ne.s32.totalorder %s63, %s65
      %p72 = scmp.eq.s32.totalorder %s20, 1
      %p73 = por %p71, %p72
      %p74 = scmp.ne.s32.totalorder %s65, %s66
      %p75 = scmp.eq.s32.totalorder %s20, 0
      %p76 = por %p74, %p75
      %p77 = scmp.ne.s32.totalorder %s65, %s66
      %p78 = scmp.eq.s32.totalorder %s21, 1
      %p79 = por %p77, %p78
      %p81 = scmp.ne.s32.totalorder %s66, %s80
      %p82 = scmp.eq.s32.totalorder %s21, 0
      %p83 = por %p81, %p82
      %s85 = sadd.s32 %s84, 1
      %p88 = scmp.eq.s32.totalorder %s15, 1
      %p89 = scmp.ne.s32.totalorder %s84, %s86
      %p90 = scmp.eq.s32.totalorder %s15, 0
      %p91 = por %p89, %p90
      %p92 = scmp.ne.s32.totalorder %s84, %s86
      %p93 = scmp.eq.s32.totalorder %s20, 1
      %p94 = por %p92, %p93
      %p95 = scmp.ne.s32.totalorder %s86, %s87
      %p96 = scmp.eq.s32.totalorder %s20, 0
      %p97 = por %p95, %p96
      %p98 = scmp.ne.s32.totalorder %s86, %s87
      %p99 = scmp.eq.s32.totalorder %s21, 1
      %p100 = por %p98, %p99
      %p102 = scmp.ne.s32.totalorder %s87, %s101
      %p103 = scmp.eq.s32.totalorder %s21, 0
      %p104 = por %p102, %p103
      %s105 = ssub.s32 %s23, %s30
      %s106 = ssub.s32 %s22, %s34
      %s107 = sor.u32 %s105, %s106
      %p108 = scmp.eq.s32.totalorder %s107, 0
      %s110 = sadd.s32 %s109, 1
      %s111 = scalar_select %p108, %s109, %s110
      %p114 = pneg %p108
      %p115 = scmp.eq.s32.totalorder %s15, 1
      %p116 = por %p114, %p115
      %p117 = scmp.ne.s32.totalorder %s109, %s112
      %p118 = scmp.eq.s32.totalorder %s15, 0
      %p119 = por %p117, %p118
      %p120 = scmp.ne.s32.totalorder %s109, %s112
      %p121 = scmp.eq.s32.totalorder %s20, 1
      %p122 = por %p120, %p121
      %p123 = scmp.ne.s32.totalorder %s112, %s113
      %p124 = scmp.eq.s32.totalorder %s20, 0
      %p125 = por %p123, %p124
      %p126 = scmp.ne.s32.totalorder %s112, %s113
      %p127 = scmp.eq.s32.totalorder %s21, 1
      %p128 = por %p126, %p127
      %p130 = scmp.ne.s32.totalorder %s113, %s129
      %p131 = scmp.eq.s32.totalorder %s21, 0
      %p132 = por %p130, %p131
      %p133 = scmp.le.s32.totalorder 1, %s15
      %p134 = scmp.lt.s32.totalorder %s15, 3
      %p135 = pnand %p133, %p134
      %p136 = pneg %p135
      // Predicated region
      $region9: #{tpu_custom_call.1} parent=5 // pred_check
        _
      $region10: #{tpu_custom_call.1} parent=5 // pred_check_branch
        %138 = sbr.rel (%p135) target = $region12
      $region11: #{tpu_custom_call.1} parent=5 // pred_region
        %s139 = ssub.s32 %s15, 1
        // Predicated region
        $region13: #{tpu_custom_call.1} parent=11 // pred_check
          %p140 = pneg %p76
        $region14: #{tpu_custom_call.1} parent=11 // pred_check_branch
          %142 = sbr.rel (%p140) target = $region16
        $region15: #{tpu_custom_call.1} parent=11 // pred_region
          _
        $region16: #{tpu_custom_call.1} parent=11 // pred_fallthru
          _
        // Predicated region
        $region17: #{tpu_custom_call.1} parent=11 // pred_check
          %p143 = pneg %p97
        $region18: #{tpu_custom_call.1} parent=11 // pred_check_branch
          %145 = sbr.rel (%p143) target = $region20
        $region19: #{tpu_custom_call.1} parent=11 // pred_region
          _
        $region20: #{tpu_custom_call.1} parent=11 // pred_fallthru
          _
      $region12: #{tpu_custom_call.1} parent=5 // pred_fallthru
        _
      %p146 = scmp.lt.s32.totalorder %s15, 2
      // Predicated region
      $region21: #{tpu_custom_call.1} parent=5 // pred_check
        %p147 = pneg %p146
      $region22: #{tpu_custom_call.1} parent=5 // pred_check_branch
        %149 = sbr.rel (%p147) target = $region24
      $region23: #{tpu_custom_call.1} parent=5 // pred_region
        // Predicated region
        $region25: #{tpu_custom_call.1} parent=23 // pred_check
          %p150 = pneg %p49
        $region26: #{tpu_custom_call.1} parent=23 // pred_check_branch
          %152 = sbr.rel (%p150) target = $region28
        $region27: #{tpu_custom_call.1} parent=23 // pred_region
          %s153 = sand.u32 %s39, 1
          %s154 = scalar_lea.sflag [#allocation4], %s153
          %s155 = sand.u32 %s39, 1
          %s156 = smul.addr %s155, 384
          %s157 = scalar_lea.vmem [#allocation3], %s156
          %s158 = smul.u32 8, %s23
          %s160 = ssub.s32 6144, 6144
          %161 = vsyncadd %s154, %s160
          %s162 = smul.addr %s158, 6
          %s163 = sadd.s32 %s22, %s162
          %s164 = smul.addr %s163, 128
          %s165 = scalar_lea.hbm %s0, %s164
          %s166 = sshll.u32 %s157, 4
          %s167 = int_to_ptr.vmem [resolvable:$true] %s166
          %172 = dma.hbm_to_vmem [thread:$0]  %s165, 6144, %s167, %s154, 128, 128, 8
        $region28: #{tpu_custom_call.1} parent=23 // pred_fallthru
          _
      $region24: #{tpu_custom_call.1} parent=5 // pred_fallthru
        _
      %p173 = scmp.le.s32.totalorder 1, %s15
      %p174 = scmp.lt.s32.totalorder %s15, 3
      %p175 = pnand %p173, %p174
      %p176 = pneg %p175
      // Predicated region
      $region29: #{tpu_custom_call.1} parent=5 // pred_check
        _
      $region30: #{tpu_custom_call.1} parent=5 // pred_check_branch
        %178 = sbr.rel (%p175) target = $region32
      $region31: #{tpu_custom_call.1} parent=5 // pred_region
        %s179 = ssub.s32 %s15, 1
        %s180 = sand.u32 %s42, 1
        %s181 = scalar_lea.sflag [#allocation4], %s180
        %s182 = sand.u32 %s42, 1
        %s183 = smul.addr %s182, 384
        %s184 = scalar_lea.vmem [#allocation3], %s183
        // Predicated region
        $region33: #{tpu_custom_call.1} parent=31 // pred_check
          %p185 = pneg %p55
        $region34: #{tpu_custom_call.1} parent=31 // pred_check_branch
          %187 = sbr.rel (%p185) target = $region36
        $region35: #{tpu_custom_call.1} parent=31 // pred_region
          %188 = dma.done %s181, 6144
        $region36: #{tpu_custom_call.1} parent=31 // pred_fallthru
          _
        %s189 = sand.u32 %s42, 1
        %s190 = scalar_lea.sflag [#allocation4], %s189
        %s191 = sand.u32 %s42, 1
        %s192 = smul.addr %s191, 384
        %s193 = scalar_lea.vmem [#allocation3], %s192
        %p194 = pneg %p55
        %p195 = pneg %p52
        %p196 = pneg %p76
        %p197 = pneg %p73
        %p198 = pneg %p97
        %p199 = pneg %p94
        %p200 = pneg %p125
        %p201 = pneg %p122
        %s202 = sand.u32 %s112, 1
        %s203 = scalar_lea.sflag [#allocation5], %s202
        %s204 = sand.u32 %s112, 1
        %s205 = smul.addr %s204, 128
        %s206 = scalar_lea.vmem [#allocation6], %s205
        %s207 = smul.u32 8, %s25
        %s208 = smul.u32 8, %s25
        %p209 = scmp.eq.s32.totalorder %s25, 0
        // Predicated region
        $region37: #{tpu_custom_call.1} parent=31 // pred_check
          %p210 = pneg %p209
        $region38: #{tpu_custom_call.1} parent=31 // pred_check_branch
          %212 = sbr.rel (%p210) target = $region40
        $region39: #{tpu_custom_call.1} parent=31 // pred_region
          %213 = vst [vmem:[#allocation2] sm:$0xff] 0.0
          %214 = vst [vmem:[#allocation2 + $0x8] sm:$0xff] 0.0
        $region40: #{tpu_custom_call.1} parent=31 // pred_fallthru
          _
        %v215 = vld [vmem:[%s1] sm:$0xff]
        %v216 = vld [vmem:[%s1 + $0x8] sm:$0xff]
        %v217 = vld [vmem:[%s1 + $0x10] sm:$0xff]
        %v218 = vld [vmem:[%s1 + $0x18] sm:$0xff]
        %v219 = vld [vmem:[%s1 + $0x20] sm:$0xff]
        %v220 = vld [vmem:[%s1 + $0x28] sm:$0xff]
        %v221 = vld [vmem:[%s2] sm:$0xff]
        %v222 = vld [vmem:[%s2 + $0x8] sm:$0xff]
        %v223 = vld [vmem:[%s2 + $0x10] sm:$0xff]
        %v224 = vld [vmem:[%s2 + $0x18] sm:$0xff]
        %v225 = vld [vmem:[#allocation2] sm:$0xff]
        %v226 = vld [vmem:[#allocation2 + $0x8] sm:$0xff]
        %v227 = vld [vmem:[%s184] sm:$0xff]
        %v228 = vld [vmem:[%s184 + $0x8] sm:$0xff]
        %v229 = vld [vmem:[%s184 + $0x10] sm:$0xff]
        %v230 = vld [vmem:[%s184 + $0x18] sm:$0xff]
        %v231 = vld [vmem:[%s184 + $0x20] sm:$0xff]
        %v232 = vld [vmem:[%s184 + $0x28] sm:$0xff]
        %vm233 = vcmask 130048
        %v235 = vsel %vm233, %v215, 0
        %v238 = vsel %vm233, %v216, 0
        %v241 = vsel %vm233, %v217, 0
        %v244 = vsel %vm233, %v218, 0
        %v247 = vsel %vm233, %v219, 0
        %v250 = vsel %vm233, %v220, 0
        %252 = vmatprep.subr.mxu0 0.0
        %253 = vmatpush1.msra.mxu0 %v225
        %254 = vmatprep.subr.mxu0 0.0
        %255 = vmatpush1.msra.mxu0 %v226
        %256 = vmatprep.subr.mxu0 0.0
        %257 = vmatpush1.msra.mxu0 0.0
        %258 = vmatprep.subr.mxu0 0.0
        %259 = vmatpush1.msra.mxu0 0.0
        %260 = vmatprep.subr.mxu0 0.0
        %261 = vmatpush1.msra.mxu0 0.0
        %262 = vmatprep.subr.mxu0 0.0
        %263 = vmatpush1.msra.mxu0 0.0
        %264 = vmatprep.subr.mxu0 0.0
        %265 = vmatpush1.msra.mxu0 0.0
        %266 = vmatprep.subr.mxu0 0.0
        %267 = vmatpush1.msra.mxu0 0.0
        %268 = vmatprep.subr.mxu0 0.0
        %269 = vmatpush1.msra.mxu0 0.0
        %270 = vmatprep.subr.mxu0 0.0
        %271 = vmatpush1.msra.mxu0 0.0
        %272 = vmatprep.subr.mxu0 0.0
        %273 = vmatpush1.msra.mxu0 0.0
        %274 = vmatprep.subr.mxu0 0.0
        %275 = vmatpush1.msra.mxu0 0.0
        %276 = vmatprep.subr.mxu0 0.0
        %277 = vmatpush1.msra.mxu0 0.0
        %278 = vmatprep.subr.mxu0 0.0
        %279 = vmatpush1.msra.mxu0 0.0
        %280 = vmatprep.subr.mxu0 0.0
        %281 = vmatpush1.msra.mxu0 0.0
        %282 = vmatprep.subr.mxu0 0.0
        %283 = vmatpush1.msra.mxu0 0.0
        %284 = vmatprep.subr.mxu0 0.0
        %285 = vmatpush1.msra.mxu0 0.0
        %286 = vmatprep.subr.mxu0 0.0
        %287 = vmatpush1.msra.mxu0 0.0
        %288 = vmatprep.subr.mxu0 0.0
        %289 = vmatpush1.msra.mxu0 0.0
        %290 = vmatprep.subr.mxu0 0.0
        %291 = vmatpush1.msra.mxu0 0.0
        %292 = vmatprep.subr.mxu0 0.0
        %293 = vmatpush1.msra.mxu0 0.0
        %294 = vmatprep.subr.mxu0 0.0
        %295 = vmatpush1.msra.mxu0 0.0
        %296 = vmatprep.subr.mxu0 0.0
        %297 = vmatpush1.msra.mxu0 0.0
        %298 = vmatprep.subr.mxu0 0.0
        %299 = vmatpush1.msra.mxu0 0.0
        %300 = vmatprep.subr.mxu0 0.0
        %301 = vmatpush1.msra.mxu0 0.0
        %302 = vmatprep.subr.mxu0 0.0
        %303 = vmatpush1.msra.mxu0 0.0
        %304 = vmatprep.subr.mxu0 0.0
        %305 = vmatpush1.msra.mxu0 0.0
        %306 = vmatprep.subr.mxu0 0.0
        %307 = vmatpush1.msra.mxu0 0.0
        %308 = vmatprep.subr.mxu0 0.0
        %309 = vmatpush1.msra.mxu0 0.0
        %310 = vmatprep.subr.mxu0 0.0
        %311 = vmatpush1.msra.mxu0 0.0
        %312 = vmatprep.subr.mxu0 0.0
        %313 = vmatpush1.msra.mxu0 0.0
        %314 = vmatprep.subr.mxu0 0.0
        %315 = vmatpush1.msra.mxu0 0.0
        %316 = vmatprep.mubr.f32.mxu0 0.0
        %317 = vmatmul.mubr.f32.gmra.mrb[0].mxu0 %v235
        %v318 = vpop.f32.mrb[0].mxu0
        %v319 = vadd.f32 0.0, %v318
        %v320 = vpop.f32.mrb[0].mxu0
        %321 = vmatprep.mubr.f32.mxu0 0.0
        %322 = vmatmul.mubr.f32.gmra.mrb[0].mxu0 %v238
        %v323 = vpop.f32.mrb[0].mxu0
        %v324 = vadd.f32 0.0, %v323
        %v325 = vpop.f32.mrb[0].mxu0
        %326 = vmatprep.mubr.f32.mxu0 0.0
        %327 = vmatmul.mubr.f32.gmra.mrb[0].mxu0 %v241
        %v328 = vpop.f32.mrb[0].mxu0
        %v329 = vadd.f32 0.0, %v328
        %v330 = vpop.f32.mrb[0].mxu0
        %331 = vmatprep.mubr.f32.mxu0 0.0
        %332 = vmatmul.mubr.f32.gmra.mrb[0].mxu0 %v244
        %v333 = vpop.f32.mrb[0].mxu0
        %v334 = vadd.f32 0.0, %v333
        %v335 = vpop.f32.mrb[0].mxu0
        %336 = vmatprep.mubr.f32.mxu0 0.0
        %337 = vmatmul.mubr.f32.gmra.mrb[0].mxu0 %v247
        %v338 = vpop.f32.mrb[0].mxu0
        %v339 = vadd.f32 0.0, %v338
        %v340 = vpop.f32.mrb[0].mxu0
        %341 = vmatprep.mubr.f32.mxu0 0.0
        %342 = vmatmul.mubr.f32.gmra.mrb[0].mxu0 %v250
        %v343 = vpop.f32.mrb[0].mxu0
        %v344 = vadd.f32 0.0, %v343
        %v345 = vpop.f32.mrb[0].mxu0
        %346 = vdwg.mxu0
        %v347 = vadd.f32 %v227, %v319
        %v348 = vadd.f32 %v228, %v324
        %v349 = vadd.f32 %v229, %v329
        %v350 = vadd.f32 %v230, %v334
        %v351 = vxor.u32 %v347, 2147483648
        %v352 = vxor.u32 %v348, 2147483648
        %v353 = vmul.f32 %v351, 1.442695
        %v354 = vpow.pop %v353
        %v355 = vmul.f32 %v352, 1.442695
        %v356 = vpow.pop %v355
        %v357 = vadd.f32 %v354, 1.0
        %v358 = vadd.f32 %v356, 1.0
        %v359 = vrcp.pop %v357
        %v360 = vmul.f32 1.0, %v359
        %v361 = vrcp.pop %v358
        %v362 = vmul.f32 1.0, %v361
        %v363 = vxor.u32 %v349, 2147483648
        %v364 = vxor.u32 %v350, 2147483648
        %v365 = vmul.f32 %v363, 1.442695
        %v366 = vpow.pop %v365
        %v367 = vmul.f32 %v364, 1.442695
        %v368 = vpow.pop %v367
        %v369 = vadd.f32 %v366, 1.0
        %v370 = vadd.f32 %v368, 1.0
        %v371 = vrcp.pop %v369
        %v372 = vmul.f32 1.0, %v371
        %v373 = vrcp.pop %v370
        %v374 = vmul.f32 1.0, %v373
        %v375 = vmul.f32 %v360, %v339
        %v376 = vmul.f32 %v362, %v344
        %v377 = vadd.f32 %v231, %v375
        %v378 = vadd.f32 %v232, %v376
        %v379 = vtanh.pop %v377
        %v380 = vtanh.pop %v378
        %vm381 = vcmask 261120
        %v383 = vsel %vm381, %v221, 0
        %v386 = vsel %vm381, %v222, 0
        %v389 = vsel %vm381, %v223, 0
        %v392 = vsel %vm381, %v224, 0
        %394 = vmatprep.subr.mxu0 0.0
        %395 = vmatpush1.msra.mxu0 %v372
        %396 = vmatprep.subr.mxu0 0.0
        %397 = vmatpush1.msra.mxu0 %v374
        %398 = vmatprep.subr.mxu0 0.0
        %399 = vmatpush1.msra.mxu0 %v379
        %400 = vmatprep.subr.mxu0 0.0
        %401 = vmatpush1.msra.mxu0 %v380
        %402 = vmatprep.subr.mxu0 0.0
        %403 = vmatpush1.msra.mxu0 0.0
        %404 = vmatprep.subr.mxu0 0.0
        %405 = vmatpush1.msra.mxu0 0.0
        %406 = vmatprep.subr.mxu0 0.0
        %407 = vmatpush1.msra.mxu0 0.0
        %408 = vmatprep.subr.mxu0 0.0
        %409 = vmatpush1.msra.mxu0 0.0
        %410 = vmatprep.subr.mxu0 0.0
        %411 = vmatpush1.msra.mxu0 0.0
        %412 = vmatprep.subr.mxu0 0.0
        %413 = vmatpush1.msra.mxu0 0.0
        %414 = vmatprep.subr.mxu0 0.0
        %415 = vmatpush1.msra.mxu0 0.0
        %416 = vmatprep.subr.mxu0 0.0
        %417 = vmatpush1.msra.mxu0 0.0
        %418 = vmatprep.subr.mxu0 0.0
        %419 = vmatpush1.msra.mxu0 0.0
        %420 = vmatprep.subr.mxu0 0.0
        %421 = vmatpush1.msra.mxu0 0.0
        %422 = vmatprep.subr.mxu0 0.0
        %423 = vmatpush1.msra.mxu0 0.0
        %424 = vmatprep.subr.mxu0 0.0
        %425 = vmatpush1.msra.mxu0 0.0
        %426 = vmatprep.subr.mxu0 0.0
        %427 = vmatpush1.msra.mxu0 0.0
        %428 = vmatprep.subr.mxu0 0.0
        %429 = vmatpush1.msra.mxu0 0.0
        %430 = vmatprep.subr.mxu0 0.0
        %431 = vmatpush1.msra.mxu0 0.0
        %432 = vmatprep.subr.mxu0 0.0
        %433 = vmatpush1.msra.mxu0 0.0
        %434 = vmatprep.subr.mxu0 0.0
        %435 = vmatpush1.msra.mxu0 0.0
        %436 = vmatprep.subr.mxu0 0.0
        %437 = vmatpush1.msra.mxu0 0.0
        %438 = vmatprep.subr.mxu0 0.0
        %439 = vmatpush1.msra.mxu0 0.0
        %440 = vmatprep.subr.mxu0 0.0
        %441 = vmatpush1.msra.mxu0 0.0
        %442 = vmatprep.subr.mxu0 0.0
        %443 = vmatpush1.msra.mxu0 0.0
        %444 = vmatprep.subr.mxu0 0.0
        %445 = vmatpush1.msra.mxu0 0.0
        %446 = vmatprep.subr.mxu0 0.0
        %447 = vmatpush1.msra.mxu0 0.0
        %448 = vmatprep.subr.mxu0 0.0
        %449 = vmatpush1.msra.mxu0 0.0
        %450 = vmatprep.subr.mxu0 0.0
        %451 = vmatpush1.msra.mxu0 0.0
        %452 = vmatprep.subr.mxu0 0.0
        %453 = vmatpush1.msra.mxu0 0.0
        %454 = vmatprep.subr.mxu0 0.0
        %455 = vmatpush1.msra.mxu0 0.0
        %456 = vmatprep.subr.mxu0 0.0
        %457 = vmatpush1.msra.mxu0 0.0
        %458 = vmatprep.mubr.f32.mxu0 0.0
        %459 = vmatmul.mubr.f32.gmra.mrb[0].mxu0 %v383
        %v460 = vpop.f32.mrb[0].mxu0
        %v461 = vadd.f32 0.0, %v460
        %v462 = vpop.f32.mrb[0].mxu0
        %463 = vmatprep.mubr.f32.mxu0 0.0
        %464 = vmatmul.mubr.f32.gmra.mrb[0].mxu0 %v386
        %v465 = vpop.f32.mrb[0].mxu0
        %v466 = vadd.f32 0.0, %v465
        %v467 = vpop.f32.mrb[0].mxu0
        %468 = vmatprep.mubr.f32.mxu0 0.0
        %469 = vmatmul.mubr.f32.gmra.mrb[0].mxu0 %v389
        %v470 = vpop.f32.mrb[0].mxu0
        %v471 = vadd.f32 0.0, %v470
        %v472 = vpop.f32.mrb[0].mxu0
        %473 = vmatprep.mubr.f32.mxu0 0.0
        %474 = vmatmul.mubr.f32.gmra.mrb[0].mxu0 %v392
        %v475 = vpop.f32.mrb[0].mxu0
        %v476 = vadd.f32 0.0, %v475
        %v477 = vpop.f32.mrb[0].mxu0
        %478 = vdwg.mxu0
        %v479 = vsub.f32 1.0, %v461
        %v480 = vsub.f32 1.0, %v466
        %v481 = vmul.f32 %v479, %v471
        %v482 = vmul.f32 %v480, %v476
        %v483 = vmul.f32 %v461, %v225
        %v484 = vmul.f32 %v466, %v226
        %v485 = vadd.f32 %v481, %v483
        %v486 = vadd.f32 %v482, %v484
        %487 = vst [vmem:[%s206] sm:$0xff] %v485
        %488 = vst [vmem:[%s206 + $0x8] sm:$0xff] %v486
        %s489 = scalar_lea.vmem %s184, 48 [#allocation3]
        %v490 = vld [vmem:[%s489] sm:$0xff]
        %v491 = vld [vmem:[%s489 + $0x8] sm:$0xff]
        %v492 = vld [vmem:[%s489 + $0x10] sm:$0xff]
        %v493 = vld [vmem:[%s489 + $0x18] sm:$0xff]
        %v494 = vld [vmem:[%s489 + $0x20] sm:$0xff]
        %v495 = vld [vmem:[%s489 + $0x28] sm:$0xff]
        %496 = vmatprep.subr.mxu0 0.0
        %497 = vmatpush1.msra.mxu0 %v485
        %498 = vmatprep.subr.mxu0 0.0
        %499 = vmatpush1.msra.mxu0 %v486
        %500 = vmatprep.subr.mxu0 0.0
        %501 = vmatpush1.msra.mxu0 0.0
        %502 = vmatprep.subr.mxu0 0.0
        %503 = vmatpush1.msra.mxu0 0.0
        %504 = vmatprep.subr.mxu0 0.0
        %505 = vmatpush1.msra.mxu0 0.0
        %506 = vmatprep.subr.mxu0 0.0
        %507 = vmatpush1.msra.mxu0 0.0
        %508 = vmatprep.subr.mxu0 0.0
        %509 = vmatpush1.msra.mxu0 0.0
        %510 = vmatprep.subr.mxu0 0.0
        %511 = vmatpush1.msra.mxu0 0.0
        %512 = vmatprep.subr.mxu0 0.0
        %513 = vmatpush1.msra.mxu0 0.0
        %514 = vmatprep.subr.mxu0 0.0
        %515 = vmatpush1.msra.mxu0 0.0
        %516 = vmatprep.subr.mxu0 0.0
        %517 = vmatpush1.msra.mxu0 0.0
        %518 = vmatprep.subr.mxu0 0.0
        %519 = vmatpush1.msra.mxu0 0.0
        %520 = vmatprep.subr.mxu0 0.0
        %521 = vmatpush1.msra.mxu0 0.0
        %522 = vmatprep.subr.mxu0 0.0
        %523 = vmatpush1.msra.mxu0 0.0
        %524 = vmatprep.subr.mxu0 0.0
        %525 = vmatpush1.msra.mxu0 0.0
        %526 = vmatprep.subr.mxu0 0.0
        %527 = vmatpush1.msra.mxu0 0.0
        %528 = vmatprep.subr.mxu0 0.0
        %529 = vmatpush1.msra.mxu0 0.0
        %530 = vmatprep.subr.mxu0 0.0
        %531 = vmatpush1.msra.mxu0 0.0
        %532 = vmatprep.subr.mxu0 0.0
        %533 = vmatpush1.msra.mxu0 0.0
        %534 = vmatprep.subr.mxu0 0.0
        %535 = vmatpush1.msra.mxu0 0.0
        %536 = vmatprep.subr.mxu0 0.0
        %537 = vmatpush1.msra.mxu0 0.0
        %538 = vmatprep.subr.mxu0 0.0
        %539 = vmatpush1.msra.mxu0 0.0
        %540 = vmatprep.subr.mxu0 0.0
        %541 = vmatpush1.msra.mxu0 0.0
        %542 = vmatprep.subr.mxu0 0.0
        %543 = vmatpush1.msra.mxu0 0.0
        %544 = vmatprep.subr.mxu0 0.0
        %545 = vmatpush1.msra.mxu0 0.0
        %546 = vmatprep.subr.mxu0 0.0
        %547 = vmatpush1.msra.mxu0 0.0
        %548 = vmatprep.subr.mxu0 0.0
        %549 = vmatpush1.msra.mxu0 0.0
        %550 = vmatprep.subr.mxu0 0.0
        %551 = vmatpush1.msra.mxu0 0.0
        %552 = vmatprep.subr.mxu0 0.0
        %553 = vmatpush1.msra.mxu0 0.0
        %554 = vmatprep.subr.mxu0 0.0
        %555 = vmatpush1.msra.mxu0 0.0
        %556 = vmatprep.subr.mxu0 0.0
        %557 = vmatpush1.msra.mxu0 0.0
        %558 = vmatprep.subr.mxu0 0.0
        %559 = vmatpush1.msra.mxu0 0.0
        %560 = vmatprep.mubr.f32.mxu0 0.0
        %561 = vmatmul.mubr.f32.gmra.mrb[0].mxu0 %v235
        %v562 = vpop.f32.mrb[0].mxu0
        %v563 = vadd.f32 0.0, %v562
        %v564 = vpop.f32.mrb[0].mxu0
        %565 = vmatprep.mubr.f32.mxu0 0.0
        %566 = vmatmul.mubr.f32.gmra.mrb[0].mxu0 %v238
        %v567 = vpop.f32.mrb[0].mxu0
        %v568 = vadd.f32 0.0, %v567
        %v569 = vpop.f32.mrb[0].mxu0
        %570 = vmatprep.mubr.f32.mxu0 0.0
        %571 = vmatmul.mubr.f32.gmra.mrb[0].mxu0 %v241
        %v572 = vpop.f32.mrb[0].mxu0
        %v573 = vadd.f32 0.0, %v572
        %v574 = vpop.f32.mrb[0].mxu0
        %575 = vmatprep.mubr.f32.mxu0 0.0
        %576 = vmatmul.mubr.f32.gmra.mrb[0].mxu0 %v244
        %v577 = vpop.f32.mrb[0].mxu0
        %v578 = vadd.f32 0.0, %v577
        %v579 = vpop.f32.mrb[0].mxu0
        %580 = vmatprep.mubr.f32.mxu0 0.0
        %581 = vmatmul.mubr.f32.gmra.mrb[0].mxu0 %v247
        %v582 = vpop.f32.mrb[0].mxu0
        %v583 = vadd.f32 0.0, %v582
        %v584 = vpop.f32.mrb[0].mxu0
        %585 = vmatprep.mubr.f32.mxu0 0.0
        %586 = vmatmul.mubr.f32.gmra.mrb[0].mxu0 %v250
        %v587 = vpop.f32.mrb[0].mxu0
        %v588 = vadd.f32 0.0, %v587
        %v589 = vpop.f32.mrb[0].mxu0
        %590 = vdwg.mxu0
        %v591 = vadd.f32 %v490, %v563
        %v592 = vadd.f32 %v491, %v568
        %v593 = vadd.f32 %v492, %v573
        %v594 = vadd.f32 %v493, %v578
        %v595 = vxor.u32 %v591, 2147483648
        %v596 = vxor.u32 %v592, 2147483648
        %v597 = vmul.f32 %v595, 1.442695
        %v598 = vpow.pop %v597
        %v599 = vmul.f32 %v596, 1.442695
        %v600 = vpow.pop %v599
        %v601 = vadd.f32 %v598, 1.0
        %v602 = vadd.f32 %v600, 1.0
        %v603 = vrcp.pop %v601
        %v604 = vmul.f32 1.0, %v603
        %v605 = vrcp.pop %v602
        %v606 = vmul.f32 1.0, %v605
        %v607 = vxor.u32 %v593, 2147483648
        %v608 = vxor.u32 %v594, 2147483648
        %v609 = vmul.f32 %v607, 1.442695
        %v610 = vpow.pop %v609
        %v611 = vmul.f32 %v608, 1.442695
        %v612 = vpow.pop %v611
        %v613 = vadd.f32 %v610, 1.0
        %v614 = vadd.f32 %v612, 1.0
        %v615 = vrcp.pop %v613
        %v616 = vmul.f32 1.0, %v615
        %v617 = vrcp.pop %v614
        %v618 = vmul.f32 1.0, %v617
        %v619 = vmul.f32 %v604, %v583
        %v620 = vmul.f32 %v606, %v588
        %v621 = vadd.f32 %v494, %v619
        %v622 = vadd.f32 %v495, %v620
        %v623 = vtanh.pop %v621
        %v624 = vtanh.pop %v622
        %625 = vmatprep.subr.mxu0 0.0
        %626 = vmatpush1.msra.mxu0 %v616
        %627 = vmatprep.subr.mxu0 0.0
        %628 = vmatpush1.msra.mxu0 %v618
        %629 = vmatprep.subr.mxu0 0.0
        %630 = vmatpush1.msra.mxu0 %v623
        %631 = vmatprep.subr.mxu0 0.0
        %632 = vmatpush1.msra.mxu0 %v624
        %633 = vmatprep.subr.mxu0 0.0
        %634 = vmatpush1.msra.mxu0 0.0
        %635 = vmatprep.subr.mxu0 0.0
        %636 = vmatpush1.msra.mxu0 0.0
        %637 = vmatprep.subr.mxu0 0.0
        %638 = vmatpush1.msra.mxu0 0.0
        %639 = vmatprep.subr.mxu0 0.0
        %640 = vmatpush1.msra.mxu0 0.0
        %641 = vmatprep.subr.mxu0 0.0
        %642 = vmatpush1.msra.mxu0 0.0
        %643 = vmatprep.subr.mxu0 0.0
        %644 = vmatpush1.msra.mxu0 0.0
        %645 = vmatprep.subr.mxu0 0.0
        %646 = vmatpush1.msra.mxu0 0.0
        %647 = vmatprep.subr.mxu0 0.0
        %648 = vmatpush1.msra.mxu0 0.0
        %649 = vmatprep.subr.mxu0 0.0
        %650 = vmatpush1.msra.mxu0 0.0
        %651 = vmatprep.subr.mxu0 0.0
        %652 = vmatpush1.msra.mxu0 0.0
        %653 = vmatprep.subr.mxu0 0.0
        %654 = vmatpush1.msra.mxu0 0.0
        %655 = vmatprep.subr.mxu0 0.0
        %656 = vmatpush1.msra.mxu0 0.0
        %657 = vmatprep.subr.mxu0 0.0
        %658 = vmatpush1.msra.mxu0 0.0
        %659 = vmatprep.subr.mxu0 0.0
        %660 = vmatpush1.msra.mxu0 0.0
        %661 = vmatprep.subr.mxu0 0.0
        %662 = vmatpush1.msra.mxu0 0.0
        %663 = vmatprep.subr.mxu0 0.0
        %664 = vmatpush1.msra.mxu0 0.0
        %665 = vmatprep.subr.mxu0 0.0
        %666 = vmatpush1.msra.mxu0 0.0
        %667 = vmatprep.subr.mxu0 0.0
        %668 = vmatpush1.msra.mxu0 0.0
        %669 = vmatprep.subr.mxu0 0.0
        %670 = vmatpush1.msra.mxu0 0.0
        %671 = vmatprep.subr.mxu0 0.0
        %672 = vmatpush1.msra.mxu0 0.0
        %673 = vmatprep.subr.mxu0 0.0
        %674 = vmatpush1.msra.mxu0 0.0
        %675 = vmatprep.subr.mxu0 0.0
        %676 = vmatpush1.msra.mxu0 0.0
        %677 = vmatprep.subr.mxu0 0.0
        %678 = vmatpush1.msra.mxu0 0.0
        %679 = vmatprep.subr.mxu0 0.0
        %680 = vmatpush1.msra.mxu0 0.0
        %681 = vmatprep.subr.mxu0 0.0
        %682 = vmatpush1.msra.mxu0 0.0
        %683 = vmatprep.subr.mxu0 0.0
        %684 = vmatpush1.msra.mxu0 0.0
        %685 = vmatprep.subr.mxu0 0.0
        %686 = vmatpush1.msra.mxu0 0.0
        %687 = vmatprep.subr.mxu0 0.0
        %688 = vmatpush1.msra.mxu0 0.0
        %689 = vmatprep.mubr.f32.mxu0 0.0
        %690 = vmatmul.mubr.f32.gmra.mrb[0].mxu0 %v383
        %v691 = vpop.f32.mrb[0].mxu0
        %v692 = vadd.f32 0.0, %v691
        %v693 = vpop.f32.mrb[0].mxu0
        %694 = vmatprep.mubr.f32.mxu0 0.0
        %695 = vmatmul.mubr.f32.gmra.mrb[0].mxu0 %v386
        %v696 = vpop.f32.mrb[0].mxu0
        %v697 = vadd.f32 0.0, %v696
        %v698 = vpop.f32.mrb[0].mxu0
        %699 = vmatprep.mubr.f32.mxu0 0.0
        %700 = vmatmul.mubr.f32.gmra.mrb[0].mxu0 %v389
        %v701 = vpop.f32.mrb[0].mxu0
        %v702 = vadd.f32 0.0, %v701
        %v703 = vpop.f32.mrb[0].mxu0
        %704 = vmatprep.mubr.f32.mxu0 0.0
        %705 = vmatmul.mubr.f32.gmra.mrb[0].mxu0 %v392
        %v706 = vpop.f32.mrb[0].mxu0
        %v707 = vadd.f32 0.0, %v706
        %v708 = vpop.f32.mrb[0].mxu0
        %709 = vdwg.mxu0
        %v710 = vsub.f32 1.0, %v692
        %v711 = vsub.f32 1.0, %v697
        %v712 = vmul.f32 %v710, %v702
        %v713 = vmul.f32 %v711, %v707
        %v714 = vmul.f32 %v692, %v485
        %v715 = vmul.f32 %v697, %v486
        %v716 = vadd.f32 %v712, %v714
        %v717 = vadd.f32 %v713, %v715
        %s718 = scalar_lea.vmem %s206, 16 [#allocation6]
        %719 = vst [vmem:[%s718] sm:$0xff] %v716
        %720 = vst [vmem:[%s718 + $0x8] sm:$0xff] %v717
        %s721 = scalar_lea.vmem %s184, 96 [#allocation3]
        %v722 = vld [vmem:[%s721] sm:$0xff]
        %v723 = vld [vmem:[%s721 + $0x8] sm:$0xff]
        %v724 = vld [vmem:[%s721 + $0x10] sm:$0xff]
        %v725 = vld [vmem:[%s721 + $0x18] sm:$0xff]
        %v726 = vld [vmem:[%s721 + $0x20] sm:$0xff]
        %v727 = vld [vmem:[%s721 + $0x28] sm:$0xff]
        %728 = vmatprep.subr.mxu0 0.0
        %729 = vmatpush1.msra.mxu0 %v716
        %730 = vmatprep.subr.mxu0 0.0
        %731 = vmatpush1.msra.mxu0 %v717
        %732 = vmatprep.subr.mxu0 0.0
        %733 = vmatpush1.msra.mxu0 0.0
        %734 = vmatprep.subr.mxu0 0.0
        %735 = vmatpush1.msra.mxu0 0.0
        %736 = vmatprep.subr.mxu0 0.0
        %737 = vmatpush1.msra.mxu0 0.0
        %738 = vmatprep.subr.mxu0 0.0
        %739 = vmatpush1.msra.mxu0 0.0
        %740 = vmatprep.subr.mxu0 0.0
        %741 = vmatpush1.msra.mxu0 0.0
        %742 = vmatprep.subr.mxu0 0.0
        %743 = vmatpush1.msra.mxu0 0.0
        %744 = vmatprep.subr.mxu0 0.0
        %745 = vmatpush1.msra.mxu0 0.0
        %746 = vmatprep.subr.mxu0 0.0
        %747 = vmatpush1.msra.mxu0 0.0
        %748 = vmatprep.subr.mxu0 0.0
        %749 = vmatpush1.msra.mxu0 0.0
        %750 = vmatprep.subr.mxu0 0.0
        %751 = vmatpush1.msra.mxu0 0.0
        %752 = vmatprep.subr.mxu0 0.0
        %753 = vmatpush1.msra.mxu0 0.0
        %754 = vmatprep.subr.mxu0 0.0
        %755 = vmatpush1.msra.mxu0 0.0
        %756 = vmatprep.subr.mxu0 0.0
        %757 = vmatpush1.msra.mxu0 0.0
        %758 = vmatprep.subr.mxu0 0.0
        %759 = vmatpush1.msra.mxu0 0.0
        %760 = vmatprep.subr.mxu0 0.0
        %761 = vmatpush1.msra.mxu0 0.0
        %762 = vmatprep.subr.mxu0 0.0
        %763 = vmatpush1.msra.mxu0 0.0
        %764 = vmatprep.subr.mxu0 0.0
        %765 = vmatpush1.msra.mxu0 0.0
        %766 = vmatprep.subr.mxu0 0.0
        %767 = vmatpush1.msra.mxu0 0.0
        %768 = vmatprep.subr.mxu0 0.0
        %769 = vmatpush1.msra.mxu0 0.0
        %770 = vmatprep.subr.mxu0 0.0
        %771 = vmatpush1.msra.mxu0 0.0
        %772 = vmatprep.subr.mxu0 0.0
        %773 = vmatpush1.msra.mxu0 0.0
        %774 = vmatprep.subr.mxu0 0.0
        %775 = vmatpush1.msra.mxu0 0.0
        %776 = vmatprep.subr.mxu0 0.0
        %777 = vmatpush1.msra.mxu0 0.0
        %778 = vmatprep.subr.mxu0 0.0
        %779 = vmatpush1.msra.mxu0 0.0
        %780 = vmatprep.subr.mxu0 0.0
        %781 = vmatpush1.msra.mxu0 0.0
        %782 = vmatprep.subr.mxu0 0.0
        %783 = vmatpush1.msra.mxu0 0.0
        %784 = vmatprep.subr.mxu0 0.0
        %785 = vmatpush1.msra.mxu0 0.0
        %786 = vmatprep.subr.mxu0 0.0
        %787 = vmatpush1.msra.mxu0 0.0
        %788 = vmatprep.subr.mxu0 0.0
        %789 = vmatpush1.msra.mxu0 0.0
        %790 = vmatprep.subr.mxu0 0.0
        %791 = vmatpush1.msra.mxu0 0.0
        %792 = vmatprep.mubr.f32.mxu0 0.0
        %793 = vmatmul.mubr.f32.gmra.mrb[0].mxu0 %v235
        %v794 = vpop.f32.mrb[0].mxu0
        %v795 = vadd.f32 0.0, %v794
        %v796 = vpop.f32.mrb[0].mxu0
        %797 = vmatprep.mubr.f32.mxu0 0.0
        %798 = vmatmul.mubr.f32.gmra.mrb[0].mxu0 %v238
        %v799 = vpop.f32.mrb[0].mxu0
        %v800 = vadd.f32 0.0, %v799
        %v801 = vpop.f32.mrb[0].mxu0
        %802 = vmatprep.mubr.f32.mxu0 0.0
        %803 = vmatmul.mubr.f32.gmra.mrb[0].mxu0 %v241
        %v804 = vpop.f32.mrb[0].mxu0
        %v805 = vadd.f32 0.0, %v804
        %v806 = vpop.f32.mrb[0].mxu0
        %807 = vmatprep.mubr.f32.mxu0 0.0
        %808 = vmatmul.mubr.f32.gmra.mrb[0].mxu0 %v244
        %v809 = vpop.f32.mrb[0].mxu0
        %v810 = vadd.f32 0.0, %v809
        %v811 = vpop.f32.mrb[0].mxu0
        %812 = vmatprep.mubr.f32.mxu0 0.0
        %813 = vmatmul.mubr.f32.gmra.mrb[0].mxu0 %v247
        %v814 = vpop.f32.mrb[0].mxu0
        %v815 = vadd.f32 0.0, %v814
        %v816 = vpop.f32.mrb[0].mxu0
        %817 = vmatprep.mubr.f32.mxu0 0.0
        %818 = vmatmul.mubr.f32.gmra.mrb[0].mxu0 %v250
        %v819 = vpop.f32.mrb[0].mxu0
        %v820 = vadd.f32 0.0, %v819
        %v821 = vpop.f32.mrb[0].mxu0
        %822 = vdwg.mxu0
        %v823 = vadd.f32 %v722, %v795
        %v824 = vadd.f32 %v723, %v800
        %v825 = vadd.f32 %v724, %v805
        %v826 = vadd.f32 %v725, %v810
        %v827 = vxor.u32 %v823, 2147483648
        %v828 = vxor.u32 %v824, 2147483648
        %v829 = vmul.f32 %v827, 1.442695
        %v830 = vpow.pop %v829
        %v831 = vmul.f32 %v828, 1.442695
        %v832 = vpow.pop %v831
        %v833 = vadd.f32 %v830, 1.0
        %v834 = vadd.f32 %v832, 1.0
        %v835 = vrcp.pop %v833
        %v836 = vmul.f32 1.0, %v835
        %v837 = vrcp.pop %v834
        %v838 = vmul.f32 1.0, %v837
        %v839 = vxor.u32 %v825, 2147483648
        %v840 = vxor.u32 %v826, 2147483648
        %v841 = vmul.f32 %v839, 1.442695
        %v842 = vpow.pop %v841
        %v843 = vmul.f32 %v840, 1.442695
        %v844 = vpow.pop %v843
        %v845 = vadd.f32 %v842, 1.0
        %v846 = vadd.f32 %v844, 1.0
        %v847 = vrcp.pop %v845
        %v848 = vmul.f32 1.0, %v847
        %v849 = vrcp.pop %v846
        %v850 = vmul.f32 1.0, %v849
        %v851 = vmul.f32 %v836, %v815
        %v852 = vmul.f32 %v838, %v820
        %v853 = vadd.f32 %v726, %v851
        %v854 = vadd.f32 %v727, %v852
        %v855 = vtanh.pop %v853
        %v856 = vtanh.pop %v854
        %857 = vmatprep.subr.mxu0 0.0
        %858 = vmatpush1.msra.mxu0 %v848
        %859 = vmatprep.subr.mxu0 0.0
        %860 = vmatpush1.msra.mxu0 %v850
        %861 = vmatprep.subr.mxu0 0.0
        %862 = vmatpush1.msra.mxu0 %v855
        %863 = vmatprep.subr.mxu0 0.0
        %864 = vmatpush1.msra.mxu0 %v856
        %865 = vmatprep.subr.mxu0 0.0
        %866 = vmatpush1.msra.mxu0 0.0
        %867 = vmatprep.subr.mxu0 0.0
        %868 = vmatpush1.msra.mxu0 0.0
        %869 = vmatprep.subr.mxu0 0.0
        %870 = vmatpush1.msra.mxu0 0.0
        %871 = vmatprep.subr.mxu0 0.0
        %872 = vmatpush1.msra.mxu0 0.0
        %873 = vmatprep.subr.mxu0 0.0
        %874 = vmatpush1.msra.mxu0 0.0
        %875 = vmatprep.subr.mxu0 0.0
        %876 = vmatpush1.msra.mxu0 0.0
        %877 = vmatprep.subr.mxu0 0.0
        %878 = vmatpush1.msra.mxu0 0.0
        %879 = vmatprep.subr.mxu0 0.0
        %880 = vmatpush1.msra.mxu0 0.0
        %881 = vmatprep.subr.mxu0 0.0
        %882 = vmatpush1.msra.mxu0 0.0
        %883 = vmatprep.subr.mxu0 0.0
        %884 = vmatpush1.msra.mxu0 0.0
        %885 = vmatprep.subr.mxu0 0.0
        %886 = vmatpush1.msra.mxu0 0.0
        %887 = vmatprep.subr.mxu0 0.0
        %888 = vmatpush1.msra.mxu0 0.0
        %889 = vmatprep.subr.mxu0 0.0
        %890 = vmatpush1.msra.mxu0 0.0
        %891 = vmatprep.subr.mxu0 0.0
        %892 = vmatpush1.msra.mxu0 0.0
        %893 = vmatprep.subr.mxu0 0.0
        %894 = vmatpush1.msra.mxu0 0.0
        %895 = vmatprep.subr.mxu0 0.0
        %896 = vmatpush1.msra.mxu0 0.0
        %897 = vmatprep.subr.mxu0 0.0
        %898 = vmatpush1.msra.mxu0 0.0
        %899 = vmatprep.subr.mxu0 0.0
        %900 = vmatpush1.msra.mxu0 0.0
        %901 = vmatprep.subr.mxu0 0.0
        %902 = vmatpush1.msra.mxu0 0.0
        %903 = vmatprep.subr.mxu0 0.0
        %904 = vmatpush1.msra.mxu0 0.0
        %905 = vmatprep.subr.mxu0 0.0
        %906 = vmatpush1.msra.mxu0 0.0
        %907 = vmatprep.subr.mxu0 0.0
        %908 = vmatpush1.msra.mxu0 0.0
        %909 = vmatprep.subr.mxu0 0.0
        %910 = vmatpush1.msra.mxu0 0.0
        %911 = vmatprep.subr.mxu0 0.0
        %912 = vmatpush1.msra.mxu0 0.0
        %913 = vmatprep.subr.mxu0 0.0
        %914 = vmatpush1.msra.mxu0 0.0
        %915 = vmatprep.subr.mxu0 0.0
        %916 = vmatpush1.msra.mxu0 0.0
        %917 = vmatprep.subr.mxu0 0.0
        %918 = vmatpush1.msra.mxu0 0.0
        %919 = vmatprep.subr.mxu0 0.0
        %920 = vmatpush1.msra.mxu0 0.0
        %921 = vmatprep.mubr.f32.mxu0 0.0
        %922 = vmatmul.mubr.f32.gmra.mrb[0].mxu0 %v383
        %v923 = vpop.f32.mrb[0].mxu0
        %v924 = vadd.f32 0.0, %v923
        %v925 = vpop.f32.mrb[0].mxu0
        %926 = vmatprep.mubr.f32.mxu0 0.0
        %927 = vmatmul.mubr.f32.gmra.mrb[0].mxu0 %v386
        %v928 = vpop.f32.mrb[0].mxu0
        %v929 = vadd.f32 0.0, %v928
        %v930 = vpop.f32.mrb[0].mxu0
        %931 = vmatprep.mubr.f32.mxu0 0.0
        %932 = vmatmul.mubr.f32.gmra.mrb[0].mxu0 %v389
        %v933 = vpop.f32.mrb[0].mxu0
        %v934 = vadd.f32 0.0, %v933
        %v935 = vpop.f32.mrb[0].mxu0
        %936 = vmatprep.mubr.f32.mxu0 0.0
        %937 = vmatmul.mubr.f32.gmra.mrb[0].mxu0 %v392
        %v938 = vpop.f32.mrb[0].mxu0
        %v939 = vadd.f32 0.0, %v938
        %v940 = vpop.f32.mrb[0].mxu0
        %941 = vdwg.mxu0
        %v942 = vsub.f32 1.0, %v924
        %v943 = vsub.f32 1.0, %v929
        %v944 = vmul.f32 %v942, %v934
        %v945 = vmul.f32 %v943, %v939
        %v946 = vmul.f32 %v924, %v716
        %v947 = vmul.f32 %v929, %v717
        %v948 = vadd.f32 %v944, %v946
        %v949 = vadd.f32 %v945, %v947
        %s950 = scalar_lea.vmem %s206, 32 [#allocation6]
        %951 = vst [vmem:[%s950] sm:$0xff] %v948
        %952 = vst [vmem:[%s950 + $0x8] sm:$0xff] %v949
        %s953 = scalar_lea.vmem %s184, 144 [#allocation3]
        %v954 = vld [vmem:[%s953] sm:$0xff]
        %v955 = vld [vmem:[%s953 + $0x8] sm:$0xff]
        %v956 = vld [vmem:[%s953 + $0x10] sm:$0xff]
        %v957 = vld [vmem:[%s953 + $0x18] sm:$0xff]
        %v958 = vld [vmem:[%s953 + $0x20] sm:$0xff]
        %v959 = vld [vmem:[%s953 + $0x28] sm:$0xff]
        %960 = vmatprep.subr.mxu0 0.0
        %961 = vmatpush1.msra.mxu0 %v948
        %962 = vmatprep.subr.mxu0 0.0
        %963 = vmatpush1.msra.mxu0 %v949
        %964 = vmatprep.subr.mxu0 0.0
        %965 = vmatpush1.msra.mxu0 0.0
        %966 = vmatprep.subr.mxu0 0.0
        %967 = vmatpush1.msra.mxu0 0.0
        %968 = vmatprep.subr.mxu0 0.0
        %969 = vmatpush1.msra.mxu0 0.0
        %970 = vmatprep.subr.mxu0 0.0
        %971 = vmatpush1.msra.mxu0 0.0
        %972 = vmatprep.subr.mxu0 0.0
        %973 = vmatpush1.msra.mxu0 0.0
        %974 = vmatprep.subr.mxu0 0.0
        %975 = vmatpush1.msra.mxu0 0.0
        %976 = vmatprep.subr.mxu0 0.0
        %977 = vmatpush1.msra.mxu0 0.0
        %978 = vmatprep.subr.mxu0 0.0
        %979 = vmatpush1.msra.mxu0 0.0
        %980 = vmatprep.subr.mxu0 0.0
        %981 = vmatpush1.msra.mxu0 0.0
        %982 = vmatprep.subr.mxu0 0.0
        %983 = vmatpush1.msra.mxu0 0.0
        %984 = vmatprep.subr.mxu0 0.0
        %985 = vmatpush1.msra.mxu0 0.0
        %986 = vmatprep.subr.mxu0 0.0
        %987 = vmatpush1.msra.mxu0 0.0
        %988 = vmatprep.subr.mxu0 0.0
        %989 = vmatpush1.msra.mxu0 0.0
        %990 = vmatprep.subr.mxu0 0.0
        %991 = vmatpush1.msra.mxu0 0.0
        %992 = vmatprep.subr.mxu0 0.0
        %993 = vmatpush1.msra.mxu0 0.0
        %994 = vmatprep.subr.mxu0 0.0
        %995 = vmatpush1.msra.mxu0 0.0
        %996 = vmatprep.subr.mxu0 0.0
        %997 = vmatpush1.msra.mxu0 0.0
        %998 = vmatprep.subr.mxu0 0.0
        %999 = vmatpush1.msra.mxu0 0.0
        %1000 = vmatprep.subr.mxu0 0.0
        %1001 = vmatpush1.msra.mxu0 0.0
        %1002 = vmatprep.subr.mxu0 0.0
        %1003 = vmatpush1.msra.mxu0 0.0
        %1004 = vmatprep.subr.mxu0 0.0
        %1005 = vmatpush1.msra.mxu0 0.0
        %1006 = vmatprep.subr.mxu0 0.0
        %1007 = vmatpush1.msra.mxu0 0.0
        %1008 = vmatprep.subr.mxu0 0.0
        %1009 = vmatpush1.msra.mxu0 0.0
        %1010 = vmatprep.subr.mxu0 0.0
        %1011 = vmatpush1.msra.mxu0 0.0
        %1012 = vmatprep.subr.mxu0 0.0
        %1013 = vmatpush1.msra.mxu0 0.0
        %1014 = vmatprep.subr.mxu0 0.0
        %1015 = vmatpush1.msra.mxu0 0.0
        %1016 = vmatprep.subr.mxu0 0.0
        %1017 = vmatpush1.msra.mxu0 0.0
        %1018 = vmatprep.subr.mxu0 0.0
        %1019 = vmatpush1.msra.mxu0 0.0
        %1020 = vmatprep.subr.mxu0 0.0
        %1021 = vmatpush1.msra.mxu0 0.0
        %1022 = vmatprep.subr.mxu0 0.0
        %1023 = vmatpush1.msra.mxu0 0.0
        %1024 = vmatprep.mubr.f32.mxu0 0.0
        %1025 = vmatmul.mubr.f32.gmra.mrb[0].mxu0 %v235
        %v1026 = vpop.f32.mrb[0].mxu0
        %v1027 = vadd.f32 0.0, %v1026
        %v1028 = vpop.f32.mrb[0].mxu0
        %1029 = vmatprep.mubr.f32.mxu0 0.0
        %1030 = vmatmul.mubr.f32.gmra.mrb[0].mxu0 %v238
        %v1031 = vpop.f32.mrb[0].mxu0
        %v1032 = vadd.f32 0.0, %v1031
        %v1033 = vpop.f32.mrb[0].mxu0
        %1034 = vmatprep.mubr.f32.mxu0 0.0
        %1035 = vmatmul.mubr.f32.gmra.mrb[0].mxu0 %v241
        %v1036 = vpop.f32.mrb[0].mxu0
        %v1037 = vadd.f32 0.0, %v1036
        %v1038 = vpop.f32.mrb[0].mxu0
        %1039 = vmatprep.mubr.f32.mxu0 0.0
        %1040 = vmatmul.mubr.f32.gmra.mrb[0].mxu0 %v244
        %v1041 = vpop.f32.mrb[0].mxu0
        %v1042 = vadd.f32 0.0, %v1041
        %v1043 = vpop.f32.mrb[0].mxu0
        %1044 = vmatprep.mubr.f32.mxu0 0.0
        %1045 = vmatmul.mubr.f32.gmra.mrb[0].mxu0 %v247
        %v1046 = vpop.f32.mrb[0].mxu0
        %v1047 = vadd.f32 0.0, %v1046
        %v1048 = vpop.f32.mrb[0].mxu0
        %1049 = vmatprep.mubr.f32.mxu0 0.0
        %1050 = vmatmul.mubr.f32.gmra.mrb[0].mxu0 %v250
        %v1051 = vpop.f32.mrb[0].mxu0
        %v1052 = vadd.f32 0.0, %v1051
        %v1053 = vpop.f32.mrb[0].mxu0
        %1054 = vdwg.mxu0
        %v1055 = vadd.f32 %v954, %v1027
        %v1056 = vadd.f32 %v955, %v1032
        %v1057 = vadd.f32 %v956, %v1037
        %v1058 = vadd.f32 %v957, %v1042
        %v1059 = vxor.u32 %v1055, 2147483648
        %v1060 = vxor.u32 %v1056, 2147483648
        %v1061 = vmul.f32 %v1059, 1.442695
        %v1062 = vpow.pop %v1061
        %v1063 = vmul.f32 %v1060, 1.442695
        %v1064 = vpow.pop %v1063
        %v1065 = vadd.f32 %v1062, 1.0
        %v1066 = vadd.f32 %v1064, 1.0
        %v1067 = vrcp.pop %v1065
        %v1068 = vmul.f32 1.0, %v1067
        %v1069 = vrcp.pop %v1066
        %v1070 = vmul.f32 1.0, %v1069
        %v1071 = vxor.u32 %v1057, 2147483648
        %v1072 = vxor.u32 %v1058, 2147483648
        %v1073 = vmul.f32 %v1071, 1.442695
        %v1074 = vpow.pop %v1073
        %v1075 = vmul.f32 %v1072, 1.442695
        %v1076 = vpow.pop %v1075
        %v1077 = vadd.f32 %v1074, 1.0
        %v1078 = vadd.f32 %v1076, 1.0
        %v1079 = vrcp.pop %v1077
        %v1080 = vmul.f32 1.0, %v1079
        %v1081 = vrcp.pop %v1078
        %v1082 = vmul.f32 1.0, %v1081
        %v1083 = vmul.f32 %v1068, %v1047
        %v1084 = vmul.f32 %v1070, %v1052
        %v1085 = vadd.f32 %v958, %v1083
        %v1086 = vadd.f32 %v959, %v1084
        %v1087 = vtanh.pop %v1085
        %v1088 = vtanh.pop %v1086
        %1089 = vmatprep.subr.mxu0 0.0
        %1090 = vmatpush1.msra.mxu0 %v1080
        %1091 = vmatprep.subr.mxu0 0.0
        %1092 = vmatpush1.msra.mxu0 %v1082
        %1093 = vmatprep.subr.mxu0 0.0
        %1094 = vmatpush1.msra.mxu0 %v1087
        %1095 = vmatprep.subr.mxu0 0.0
        %1096 = vmatpush1.msra.mxu0 %v1088
        %1097 = vmatprep.subr.mxu0 0.0
        %1098 = vmatpush1.msra.mxu0 0.0
        %1099 = vmatprep.subr.mxu0 0.0
        %1100 = vmatpush1.msra.mxu0 0.0
        %1101 = vmatprep.subr.mxu0 0.0
        %1102 = vmatpush1.msra.mxu0 0.0
        %1103 = vmatprep.subr.mxu0 0.0
        %1104 = vmatpush1.msra.mxu0 0.0
        %1105 = vmatprep.subr.mxu0 0.0
        %1106 = vmatpush1.msra.mxu0 0.0
        %1107 = vmatprep.subr.mxu0 0.0
        %1108 = vmatpush1.msra.mxu0 0.0
        %1109 = vmatprep.subr.mxu0 0.0
        %1110 = vmatpush1.msra.mxu0 0.0
        %1111 = vmatprep.subr.mxu0 0.0
        %1112 = vmatpush1.msra.mxu0 0.0
        %1113 = vmatprep.subr.mxu0 0.0
        %1114 = vmatpush1.msra.mxu0 0.0
        %1115 = vmatprep.subr.mxu0 0.0
        %1116 = vmatpush1.msra.mxu0 0.0
        %1117 = vmatprep.subr.mxu0 0.0
        %1118 = vmatpush1.msra.mxu0 0.0
        %1119 = vmatprep.subr.mxu0 0.0
        %1120 = vmatpush1.msra.mxu0 0.0
        %1121 = vmatprep.subr.mxu0 0.0
        %1122 = vmatpush1.msra.mxu0 0.0
        %1123 = vmatprep.subr.mxu0 0.0
        %1124 = vmatpush1.msra.mxu0 0.0
        %1125 = vmatprep.subr.mxu0 0.0
        %1126 = vmatpush1.msra.mxu0 0.0
        %1127 = vmatprep.subr.mxu0 0.0
        %1128 = vmatpush1.msra.mxu0 0.0
        %1129 = vmatprep.subr.mxu0 0.0
        %1130 = vmatpush1.msra.mxu0 0.0
        %1131 = vmatprep.subr.mxu0 0.0
        %1132 = vmatpush1.msra.mxu0 0.0
        %1133 = vmatprep.subr.mxu0 0.0
        %1134 = vmatpush1.msra.mxu0 0.0
        %1135 = vmatprep.subr.mxu0 0.0
        %1136 = vmatpush1.msra.mxu0 0.0
        %1137 = vmatprep.subr.mxu0 0.0
        %1138 = vmatpush1.msra.mxu0 0.0
        %1139 = vmatprep.subr.mxu0 0.0
        %1140 = vmatpush1.msra.mxu0 0.0
        %1141 = vmatprep.subr.mxu0 0.0
        %1142 = vmatpush1.msra.mxu0 0.0
        %1143 = vmatprep.subr.mxu0 0.0
        %1144 = vmatpush1.msra.mxu0 0.0
        %1145 = vmatprep.subr.mxu0 0.0
        %1146 = vmatpush1.msra.mxu0 0.0
        %1147 = vmatprep.subr.mxu0 0.0
        %1148 = vmatpush1.msra.mxu0 0.0
        %1149 = vmatprep.subr.mxu0 0.0
        %1150 = vmatpush1.msra.mxu0 0.0
        %1151 = vmatprep.subr.mxu0 0.0
        %1152 = vmatpush1.msra.mxu0 0.0
        %1153 = vmatprep.mubr.f32.mxu0 0.0
        %1154 = vmatmul.mubr.f32.gmra.mrb[0].mxu0 %v383
        %v1155 = vpop.f32.mrb[0].mxu0
        %v1156 = vadd.f32 0.0, %v1155
        %v1157 = vpop.f32.mrb[0].mxu0
        %1158 = vmatprep.mubr.f32.mxu0 0.0
        %1159 = vmatmul.mubr.f32.gmra.mrb[0].mxu0 %v386
        %v1160 = vpop.f32.mrb[0].mxu0
        %v1161 = vadd.f32 0.0, %v1160
        %v1162 = vpop.f32.mrb[0].mxu0
        %1163 = vmatprep.mubr.f32.mxu0 0.0
        %1164 = vmatmul.mubr.f32.gmra.mrb[0].mxu0 %v389
        %v1165 = vpop.f32.mrb[0].mxu0
        %v1166 = vadd.f32 0.0, %v1165
        %v1167 = vpop.f32.mrb[0].mxu0
        %1168 = vmatprep.mubr.f32.mxu0 0.0
        %1169 = vmatmul.mubr.f32.gmra.mrb[0].mxu0 %v392
        %v1170 = vpop.f32.mrb[0].mxu0
        %v1171 = vadd.f32 0.0, %v1170
        %v1172 = vpop.f32.mrb[0].mxu0
        %1173 = vdwg.mxu0
        %v1174 = vsub.f32 1.0, %v1156
        %v1175 = vsub.f32 1.0, %v1161
        %v1176 = vmul.f32 %v1174, %v1166
        %v1177 = vmul.f32 %v1175, %v1171
        %v1178 = vmul.f32 %v1156, %v948
        %v1179 = vmul.f32 %v1161, %v949
        %v1180 = vadd.f32 %v1176, %v1178
        %v1181 = vadd.f32 %v1177, %v1179
        %s1182 = scalar_lea.vmem %s206, 48 [#allocation6]
        %1183 = vst [vmem:[%s1182] sm:$0xff] %v1180
        %1184 = vst [vmem:[%s1182 + $0x8] sm:$0xff] %v1181
        %s1185 = scalar_lea.vmem %s184, 192 [#allocation3]
        %v1186 = vld [vmem:[%s1185] sm:$0xff]
        %v1187 = vld [vmem:[%s1185 + $0x8] sm:$0xff]
        %v1188 = vld [vmem:[%s1185 + $0x10] sm:$0xff]
        %v1189 = vld [vmem:[%s1185 + $0x18] sm:$0xff]
        %v1190 = vld [vmem:[%s1185 + $0x20] sm:$0xff]
        %v1191 = vld [vmem:[%s1185 + $0x28] sm:$0xff]
        %1192 = vmatprep.subr.mxu0 0.0
        %1193 = vmatpush1.msra.mxu0 %v1180
        %1194 = vmatprep.subr.mxu0 0.0
        %1195 = vmatpush1.msra.mxu0 %v1181
        %1196 = vmatprep.subr.mxu0 0.0
        %1197 = vmatpush1.msra.mxu0 0.0
        %1198 = vmatprep.subr.mxu0 0.0
        %1199 = vmatpush1.msra.mxu0 0.0
        %1200 = vmatprep.subr.mxu0 0.0
        %1201 = vmatpush1.msra.mxu0 0.0
        %1202 = vmatprep.subr.mxu0 0.0
        %1203 = vmatpush1.msra.mxu0 0.0
        %1204 = vmatprep.subr.mxu0 0.0
        %1205 = vmatpush1.msra.mxu0 0.0
        %1206 = vmatprep.subr.mxu0 0.0
        %1207 = vmatpush1.msra.mxu0 0.0
        %1208 = vmatprep.subr.mxu0 0.0
        %1209 = vmatpush1.msra.mxu0 0.0
        %1210 = vmatprep.subr.mxu0 0.0
        %1211 = vmatpush1.msra.mxu0 0.0
        %1212 = vmatprep.subr.mxu0 0.0
        %1213 = vmatpush1.msra.mxu0 0.0
        %1214 = vmatprep.subr.mxu0 0.0
        %1215 = vmatpush1.msra.mxu0 0.0
        %1216 = vmatprep.subr.mxu0 0.0
        %1217 = vmatpush1.msra.mxu0 0.0
        %1218 = vmatprep.subr.mxu0 0.0
        %1219 = vmatpush1.msra.mxu0 0.0
        %1220 = vmatprep.subr.mxu0 0.0
        %1221 = vmatpush1.msra.mxu0 0.0
        %1222 = vmatprep.subr.mxu0 0.0
        %1223 = vmatpush1.msra.mxu0 0.0
        %1224 = vmatprep.subr.mxu0 0.0
        %1225 = vmatpush1.msra.mxu0 0.0
        %1226 = vmatprep.subr.mxu0 0.0
        %1227 = vmatpush1.msra.mxu0 0.0
        %1228 = vmatprep.subr.mxu0 0.0
        %1229 = vmatpush1.msra.mxu0 0.0
        %1230 = vmatprep.subr.mxu0 0.0
        %1231 = vmatpush1.msra.mxu0 0.0
        %1232 = vmatprep.subr.mxu0 0.0
        %1233 = vmatpush1.msra.mxu0 0.0
        %1234 = vmatprep.subr.mxu0 0.0
        %1235 = vmatpush1.msra.mxu0 0.0
        %1236 = vmatprep.subr.mxu0 0.0
        %1237 = vmatpush1.msra.mxu0 0.0
        %1238 = vmatprep.subr.mxu0 0.0
        %1239 = vmatpush1.msra.mxu0 0.0
        %1240 = vmatprep.subr.mxu0 0.0
        %1241 = vmatpush1.msra.mxu0 0.0
        %1242 = vmatprep.subr.mxu0 0.0
        %1243 = vmatpush1.msra.mxu0 0.0
        %1244 = vmatprep.subr.mxu0 0.0
        %1245 = vmatpush1.msra.mxu0 0.0
        %1246 = vmatprep.subr.mxu0 0.0
        %1247 = vmatpush1.msra.mxu0 0.0
        %1248 = vmatprep.subr.mxu0 0.0
        %1249 = vmatpush1.msra.mxu0 0.0
        %1250 = vmatprep.subr.mxu0 0.0
        %1251 = vmatpush1.msra.mxu0 0.0
        %1252 = vmatprep.subr.mxu0 0.0
        %1253 = vmatpush1.msra.mxu0 0.0
        %1254 = vmatprep.subr.mxu0 0.0
        %1255 = vmatpush1.msra.mxu0 0.0
        %1256 = vmatprep.mubr.f32.mxu0 0.0
        %1257 = vmatmul.mubr.f32.gmra.mrb[0].mxu0 %v235
        %v1258 = vpop.f32.mrb[0].mxu0
        %v1259 = vadd.f32 0.0, %v1258
        %v1260 = vpop.f32.mrb[0].mxu0
        %1261 = vmatprep.mubr.f32.mxu0 0.0
        %1262 = vmatmul.mubr.f32.gmra.mrb[0].mxu0 %v238
        %v1263 = vpop.f32.mrb[0].mxu0
        %v1264 = vadd.f32 0.0, %v1263
        %v1265 = vpop.f32.mrb[0].mxu0
        %1266 = vmatprep.mubr.f32.mxu0 0.0
        %1267 = vmatmul.mubr.f32.gmra.mrb[0].mxu0 %v241
        %v1268 = vpop.f32.mrb[0].mxu0
        %v1269 = vadd.f32 0.0, %v1268
        %v1270 = vpop.f32.mrb[0].mxu0
        %1271 = vmatprep.mubr.f32.mxu0 0.0
        %1272 = vmatmul.mubr.f32.gmra.mrb[0].mxu0 %v244
        %v1273 = vpop.f32.mrb[0].mxu0
        %v1274 = vadd.f32 0.0, %v1273
        %v1275 = vpop.f32.mrb[0].mxu0
        %1276 = vmatprep.mubr.f32.mxu0 0.0
        %1277 = vmatmul.mubr.f32.gmra.mrb[0].mxu0 %v247
        %v1278 = vpop.f32.mrb[0].mxu0
        %v1279 = vadd.f32 0.0, %v1278
        %v1280 = vpop.f32.mrb[0].mxu0
        %1281 = vmatprep.mubr.f32.mxu0 0.0
        %1282 = vmatmul.mubr.f32.gmra.mrb[0].mxu0 %v250
        %v1283 = vpop.f32.mrb[0].mxu0
        %v1284 = vadd.f32 0.0, %v1283
        %v1285 = vpop.f32.mrb[0].mxu0
        %1286 = vdwg.mxu0
        %v1287 = vadd.f32 %v1186, %v1259
        %v1288 = vadd.f32 %v1187, %v1264
        %v1289 = vadd.f32 %v1188, %v1269
        %v1290 = vadd.f32 %v1189, %v1274
        %v1291 = vxor.u32 %v1287, 2147483648
        %v1292 = vxor.u32 %v1288, 2147483648
        %v1293 = vmul.f32 %v1291, 1.442695
        %v1294 = vpow.pop %v1293
        %v1295 = vmul.f32 %v1292, 1.442695
        %v1296 = vpow.pop %v1295
        %v1297 = vadd.f32 %v1294, 1.0
        %v1298 = vadd.f32 %v1296, 1.0
        %v1299 = vrcp.pop %v1297
        %v1300 = vmul.f32 1.0, %v1299
        %v1301 = vrcp.pop %v1298
        %v1302 = vmul.f32 1.0, %v1301
        %v1303 = vxor.u32 %v1289, 2147483648
        %v1304 = vxor.u32 %v1290, 2147483648
        %v1305 = vmul.f32 %v1303, 1.442695
        %v1306 = vpow.pop %v1305
        %v1307 = vmul.f32 %v1304, 1.442695
        %v1308 = vpow.pop %v1307
        %v1309 = vadd.f32 %v1306, 1.0
        %v1310 = vadd.f32 %v1308, 1.0
        %v1311 = vrcp.pop %v1309
        %v1312 = vmul.f32 1.0, %v1311
        %v1313 = vrcp.pop %v1310
        %v1314 = vmul.f32 1.0, %v1313
        %v1315 = vmul.f32 %v1300, %v1279
        %v1316 = vmul.f32 %v1302, %v1284
        %v1317 = vadd.f32 %v1190, %v1315
        %v1318 = vadd.f32 %v1191, %v1316
        %v1319 = vtanh.pop %v1317
        %v1320 = vtanh.pop %v1318
        %1321 = vmatprep.subr.mxu0 0.0
        %1322 = vmatpush1.msra.mxu0 %v1312
        %1323 = vmatprep.subr.mxu0 0.0
        %1324 = vmatpush1.msra.mxu0 %v1314
        %1325 = vmatprep.subr.mxu0 0.0
        %1326 = vmatpush1.msra.mxu0 %v1319
        %1327 = vmatprep.subr.mxu0 0.0
        %1328 = vmatpush1.msra.mxu0 %v1320
        %1329 = vmatprep.subr.mxu0 0.0
        %1330 = vmatpush1.msra.mxu0 0.0
        %1331 = vmatprep.subr.mxu0 0.0
        %1332 = vmatpush1.msra.mxu0 0.0
        %1333 = vmatprep.subr.mxu0 0.0
        %1334 = vmatpush1.msra.mxu0 0.0
        %1335 = vmatprep.subr.mxu0 0.0
        %1336 = vmatpush1.msra.mxu0 0.0
        %1337 = vmatprep.subr.mxu0 0.0
        %1338 = vmatpush1.msra.mxu0 0.0
        %1339 = vmatprep.subr.mxu0 0.0
        %1340 = vmatpush1.msra.mxu0 0.0
        %1341 = vmatprep.subr.mxu0 0.0
        %1342 = vmatpush1.msra.mxu0 0.0
        %1343 = vmatprep.subr.mxu0 0.0
        %1344 = vmatpush1.msra.mxu0 0.0
        %1345 = vmatprep.subr.mxu0 0.0
        %1346 = vmatpush1.msra.mxu0 0.0
        %1347 = vmatprep.subr.mxu0 0.0
        %1348 = vmatpush1.msra.mxu0 0.0
        %1349 = vmatprep.subr.mxu0 0.0
        %1350 = vmatpush1.msra.mxu0 0.0
        %1351 = vmatprep.subr.mxu0 0.0
        %1352 = vmatpush1.msra.mxu0 0.0
        %1353 = vmatprep.subr.mxu0 0.0
        %1354 = vmatpush1.msra.mxu0 0.0
        %1355 = vmatprep.subr.mxu0 0.0
        %1356 = vmatpush1.msra.mxu0 0.0
        %1357 = vmatprep.subr.mxu0 0.0
        %1358 = vmatpush1.msra.mxu0 0.0
        %1359 = vmatprep.subr.mxu0 0.0
        %1360 = vmatpush1.msra.mxu0 0.0
        %1361 = vmatprep.subr.mxu0 0.0
        %1362 = vmatpush1.msra.mxu0 0.0
        %1363 = vmatprep.subr.mxu0 0.0
        %1364 = vmatpush1.msra.mxu0 0.0
        %1365 = vmatprep.subr.mxu0 0.0
        %1366 = vmatpush1.msra.mxu0 0.0
        %1367 = vmatprep.subr.mxu0 0.0
        %1368 = vmatpush1.msra.mxu0 0.0
        %1369 = vmatprep.subr.mxu0 0.0
        %1370 = vmatpush1.msra.mxu0 0.0
        %1371 = vmatprep.subr.mxu0 0.0
        %1372 = vmatpush1.msra.mxu0 0.0
        %1373 = vmatprep.subr.mxu0 0.0
        %1374 = vmatpush1.msra.mxu0 0.0
        %1375 = vmatprep.subr.mxu0 0.0
        %1376 = vmatpush1.msra.mxu0 0.0
        %1377 = vmatprep.subr.mxu0 0.0
        %1378 = vmatpush1.msra.mxu0 0.0
        %1379 = vmatprep.subr.mxu0 0.0
        %1380 = vmatpush1.msra.mxu0 0.0
        %1381 = vmatprep.subr.mxu0 0.0
        %1382 = vmatpush1.msra.mxu0 0.0
        %1383 = vmatprep.subr.mxu0 0.0
        %1384 = vmatpush1.msra.mxu0 0.0
        %1385 = vmatprep.mubr.f32.mxu0 0.0
        %1386 = vmatmul.mubr.f32.gmra.mrb[0].mxu0 %v383
        %v1387 = vpop.f32.mrb[0].mxu0
        %v1388 = vadd.f32 0.0, %v1387
        %v1389 = vpop.f32.mrb[0].mxu0
        %1390 = vmatprep.mubr.f32.mxu0 0.0
        %1391 = vmatmul.mubr.f32.gmra.mrb[0].mxu0 %v386
        %v1392 = vpop.f32.mrb[0].mxu0
        %v1393 = vadd.f32 0.0, %v1392
        %v1394 = vpop.f32.mrb[0].mxu0
        %1395 = vmatprep.mubr.f32.mxu0 0.0
        %1396 = vmatmul.mubr.f32.gmra.mrb[0].mxu0 %v389
        %v1397 = vpop.f32.mrb[0].mxu0
        %v1398 = vadd.f32 0.0, %v1397
        %v1399 = vpop.f32.mrb[0].mxu0
        %1400 = vmatprep.mubr.f32.mxu0 0.0
        %1401 = vmatmul.mubr.f32.gmra.mrb[0].mxu0 %v392
        %v1402 = vpop.f32.mrb[0].mxu0
        %v1403 = vadd.f32 0.0, %v1402
        %v1404 = vpop.f32.mrb[0].mxu0
        %1405 = vdwg.mxu0
        %v1406 = vsub.f32 1.0, %v1388
        %v1407 = vsub.f32 1.0, %v1393
        %v1408 = vmul.f32 %v1406, %v1398
        %v1409 = vmul.f32 %v1407, %v1403
        %v1410 = vmul.f32 %v1388, %v1180
        %v1411 = vmul.f32 %v1393, %v1181
        %v1412 = vadd.f32 %v1408, %v1410
        %v1413 = vadd.f32 %v1409, %v1411
        %s1414 = scalar_lea.vmem %s206, 64 [#allocation6]
        %1415 = vst [vmem:[%s1414] sm:$0xff] %v1412
        %1416 = vst [vmem:[%s1414 + $0x8] sm:$0xff] %v1413
        %s1417 = scalar_lea.vmem %s184, 240 [#allocation3]
        %v1418 = vld [vmem:[%s1417] sm:$0xff]
        %v1419 = vld [vmem:[%s1417 + $0x8] sm:$0xff]
        %v1420 = vld [vmem:[%s1417 + $0x10] sm:$0xff]
        %v1421 = vld [vmem:[%s1417 + $0x18] sm:$0xff]
        %v1422 = vld [vmem:[%s1417 + $0x20] sm:$0xff]
        %v1423 = vld [vmem:[%s1417 + $0x28] sm:$0xff]
        %1424 = vmatprep.subr.mxu0 0.0
        %1425 = vmatpush1.msra.mxu0 %v1412
        %1426 = vmatprep.subr.mxu0 0.0
        %1427 = vmatpush1.msra.mxu0 %v1413
        %1428 = vmatprep.subr.mxu0 0.0
        %1429 = vmatpush1.msra.mxu0 0.0
        %1430 = vmatprep.subr.mxu0 0.0
        %1431 = vmatpush1.msra.mxu0 0.0
        %1432 = vmatprep.subr.mxu0 0.0
        %1433 = vmatpush1.msra.mxu0 0.0
        %1434 = vmatprep.subr.mxu0 0.0
        %1435 = vmatpush1.msra.mxu0 0.0
        %1436 = vmatprep.subr.mxu0 0.0
        %1437 = vmatpush1.msra.mxu0 0.0
        %1438 = vmatprep.subr.mxu0 0.0
        %1439 = vmatpush1.msra.mxu0 0.0
        %1440 = vmatprep.subr.mxu0 0.0
        %1441 = vmatpush1.msra.mxu0 0.0
        %1442 = vmatprep.subr.mxu0 0.0
        %1443 = vmatpush1.msra.mxu0 0.0
        %1444 = vmatprep.subr.mxu0 0.0
        %1445 = vmatpush1.msra.mxu0 0.0
        %1446 = vmatprep.subr.mxu0 0.0
        %1447 = vmatpush1.msra.mxu0 0.0
        %1448 = vmatprep.subr.mxu0 0.0
        %1449 = vmatpush1.msra.mxu0 0.0
        %1450 = vmatprep.subr.mxu0 0.0
        %1451 = vmatpush1.msra.mxu0 0.0
        %1452 = vmatprep.subr.mxu0 0.0
        %1453 = vmatpush1.msra.mxu0 0.0
        %1454 = vmatprep.subr.mxu0 0.0
        %1455 = vmatpush1.msra.mxu0 0.0
        %1456 = vmatprep.subr.mxu0 0.0
        %1457 = vmatpush1.msra.mxu0 0.0
        %1458 = vmatprep.subr.mxu0 0.0
        %1459 = vmatpush1.msra.mxu0 0.0
        %1460 = vmatprep.subr.mxu0 0.0
        %1461 = vmatpush1.msra.mxu0 0.0
        %1462 = vmatprep.subr.mxu0 0.0
        %1463 = vmatpush1.msra.mxu0 0.0
        %1464 = vmatprep.subr.mxu0 0.0
        %1465 = vmatpush1.msra.mxu0 0.0
        %1466 = vmatprep.subr.mxu0 0.0
        %1467 = vmatpush1.msra.mxu0 0.0
        %1468 = vmatprep.subr.mxu0 0.0
        %1469 = vmatpush1.msra.mxu0 0.0
        %1470 = vmatprep.subr.mxu0 0.0
        %1471 = vmatpush1.msra.mxu0 0.0
        %1472 = vmatprep.subr.mxu0 0.0
        %1473 = vmatpush1.msra.mxu0 0.0
        %1474 = vmatprep.subr.mxu0 0.0
        %1475 = vmatpush1.msra.mxu0 0.0
        %1476 = vmatprep.subr.mxu0 0.0
        %1477 = vmatpush1.msra.mxu0 0.0
        %1478 = vmatprep.subr.mxu0 0.0
        %1479 = vmatpush1.msra.mxu0 0.0
        %1480 = vmatprep.subr.mxu0 0.0
        %1481 = vmatpush1.msra.mxu0 0.0
        %1482 = vmatprep.subr.mxu0 0.0
        %1483 = vmatpush1.msra.mxu0 0.0
        %1484 = vmatprep.subr.mxu0 0.0
        %1485 = vmatpush1.msra.mxu0 0.0
        %1486 = vmatprep.subr.mxu0 0.0
        %1487 = vmatpush1.msra.mxu0 0.0
        %1488 = vmatprep.mubr.f32.mxu0 0.0
        %1489 = vmatmul.mubr.f32.gmra.mrb[0].mxu0 %v235
        %v1490 = vpop.f32.mrb[0].mxu0
        %v1491 = vadd.f32 0.0, %v1490
        %v1492 = vpop.f32.mrb[0].mxu0
        %1493 = vmatprep.mubr.f32.mxu0 0.0
        %1494 = vmatmul.mubr.f32.gmra.mrb[0].mxu0 %v238
        %v1495 = vpop.f32.mrb[0].mxu0
        %v1496 = vadd.f32 0.0, %v1495
        %v1497 = vpop.f32.mrb[0].mxu0
        %1498 = vmatprep.mubr.f32.mxu0 0.0
        %1499 = vmatmul.mubr.f32.gmra.mrb[0].mxu0 %v241
        %v1500 = vpop.f32.mrb[0].mxu0
        %v1501 = vadd.f32 0.0, %v1500
        %v1502 = vpop.f32.mrb[0].mxu0
        %1503 = vmatprep.mubr.f32.mxu0 0.0
        %1504 = vmatmul.mubr.f32.gmra.mrb[0].mxu0 %v244
        %v1505 = vpop.f32.mrb[0].mxu0
        %v1506 = vadd.f32 0.0, %v1505
        %v1507 = vpop.f32.mrb[0].mxu0
        %1508 = vmatprep.mubr.f32.mxu0 0.0
        %1509 = vmatmul.mubr.f32.gmra.mrb[0].mxu0 %v247
        %v1510 = vpop.f32.mrb[0].mxu0
        %v1511 = vadd.f32 0.0, %v1510
        %v1512 = vpop.f32.mrb[0].mxu0
        %1513 = vmatprep.mubr.f32.mxu0 0.0
        %1514 = vmatmul.mubr.f32.gmra.mrb[0].mxu0 %v250
        %v1515 = vpop.f32.mrb[0].mxu0
        %v1516 = vadd.f32 0.0, %v1515
        %v1517 = vpop.f32.mrb[0].mxu0
        %1518 = vdwg.mxu0
        %v1519 = vadd.f32 %v1418, %v1491
        %v1520 = vadd.f32 %v1419, %v1496
        %v1521 = vadd.f32 %v1420, %v1501
        %v1522 = vadd.f32 %v1421, %v1506
        %v1523 = vxor.u32 %v1519, 2147483648
        %v1524 = vxor.u32 %v1520, 2147483648
        %v1525 = vmul.f32 %v1523, 1.442695
        %v1526 = vpow.pop %v1525
        %v1527 = vmul.f32 %v1524, 1.442695
        %v1528 = vpow.pop %v1527
        %v1529 = vadd.f32 %v1526, 1.0
        %v1530 = vadd.f32 %v1528, 1.0
        %v1531 = vrcp.pop %v1529
        %v1532 = vmul.f32 1.0, %v1531
        %v1533 = vrcp.pop %v1530
        %v1534 = vmul.f32 1.0, %v1533
        %v1535 = vxor.u32 %v1521, 2147483648
        %v1536 = vxor.u32 %v1522, 2147483648
        %v1537 = vmul.f32 %v1535, 1.442695
        %v1538 = vpow.pop %v1537
        %v1539 = vmul.f32 %v1536, 1.442695
        %v1540 = vpow.pop %v1539
        %v1541 = vadd.f32 %v1538, 1.0
        %v1542 = vadd.f32 %v1540, 1.0
        %v1543 = vrcp.pop %v1541
        %v1544 = vmul.f32 1.0, %v1543
        %v1545 = vrcp.pop %v1542
        %v1546 = vmul.f32 1.0, %v1545
        %v1547 = vmul.f32 %v1532, %v1511
        %v1548 = vmul.f32 %v1534, %v1516
        %v1549 = vadd.f32 %v1422, %v1547
        %v1550 = vadd.f32 %v1423, %v1548
        %v1551 = vtanh.pop %v1549
        %v1552 = vtanh.pop %v1550
        %1553 = vmatprep.subr.mxu0 0.0
        %1554 = vmatpush1.msra.mxu0 %v1544
        %1555 = vmatprep.subr.mxu0 0.0
        %1556 = vmatpush1.msra.mxu0 %v1546
        %1557 = vmatprep.subr.mxu0 0.0
        %1558 = vmatpush1.msra.mxu0 %v1551
        %1559 = vmatprep.subr.mxu0 0.0
        %1560 = vmatpush1.msra.mxu0 %v1552
        %1561 = vmatprep.subr.mxu0 0.0
        %1562 = vmatpush1.msra.mxu0 0.0
        %1563 = vmatprep.subr.mxu0 0.0
        %1564 = vmatpush1.msra.mxu0 0.0
        %1565 = vmatprep.subr.mxu0 0.0
        %1566 = vmatpush1.msra.mxu0 0.0
        %1567 = vmatprep.subr.mxu0 0.0
        %1568 = vmatpush1.msra.mxu0 0.0
        %1569 = vmatprep.subr.mxu0 0.0
        %1570 = vmatpush1.msra.mxu0 0.0
        %1571 = vmatprep.subr.mxu0 0.0
        %1572 = vmatpush1.msra.mxu0 0.0
        %1573 = vmatprep.subr.mxu0 0.0
        %1574 = vmatpush1.msra.mxu0 0.0
        %1575 = vmatprep.subr.mxu0 0.0
        %1576 = vmatpush1.msra.mxu0 0.0
        %1577 = vmatprep.subr.mxu0 0.0
        %1578 = vmatpush1.msra.mxu0 0.0
        %1579 = vmatprep.subr.mxu0 0.0
        %1580 = vmatpush1.msra.mxu0 0.0
        %1581 = vmatprep.subr.mxu0 0.0
        %1582 = vmatpush1.msra.mxu0 0.0
        %1583 = vmatprep.subr.mxu0 0.0
        %1584 = vmatpush1.msra.mxu0 0.0
        %1585 = vmatprep.subr.mxu0 0.0
        %1586 = vmatpush1.msra.mxu0 0.0
        %1587 = vmatprep.subr.mxu0 0.0
        %1588 = vmatpush1.msra.mxu0 0.0
        %1589 = vmatprep.subr.mxu0 0.0
        %1590 = vmatpush1.msra.mxu0 0.0
        %1591 = vmatprep.subr.mxu0 0.0
        %1592 = vmatpush1.msra.mxu0 0.0
        %1593 = vmatprep.subr.mxu0 0.0
        %1594 = vmatpush1.msra.mxu0 0.0
        %1595 = vmatprep.subr.mxu0 0.0
        %1596 = vmatpush1.msra.mxu0 0.0
        %1597 = vmatprep.subr.mxu0 0.0
        %1598 = vmatpush1.msra.mxu0 0.0
        %1599 = vmatprep.subr.mxu0 0.0
        %1600 = vmatpush1.msra.mxu0 0.0
        %1601 = vmatprep.subr.mxu0 0.0
        %1602 = vmatpush1.msra.mxu0 0.0
        %1603 = vmatprep.subr.mxu0 0.0
        %1604 = vmatpush1.msra.mxu0 0.0
        %1605 = vmatprep.subr.mxu0 0.0
        %1606 = vmatpush1.msra.mxu0 0.0
        %1607 = vmatprep.subr.mxu0 0.0
        %1608 = vmatpush1.msra.mxu0 0.0
        %1609 = vmatprep.subr.mxu0 0.0
        %1610 = vmatpush1.msra.mxu0 0.0
        %1611 = vmatprep.subr.mxu0 0.0
        %1612 = vmatpush1.msra.mxu0 0.0
        %1613 = vmatprep.subr.mxu0 0.0
        %1614 = vmatpush1.msra.mxu0 0.0
        %1615 = vmatprep.subr.mxu0 0.0
        %1616 = vmatpush1.msra.mxu0 0.0
        %1617 = vmatprep.mubr.f32.mxu0 0.0
        %1618 = vmatmul.mubr.f32.gmra.mrb[0].mxu0 %v383
        %v1619 = vpop.f32.mrb[0].mxu0
        %v1620 = vadd.f32 0.0, %v1619
        %v1621 = vpop.f32.mrb[0].mxu0
        %1622 = vmatprep.mubr.f32.mxu0 0.0
        %1623 = vmatmul.mubr.f32.gmra.mrb[0].mxu0 %v386
        %v1624 = vpop.f32.mrb[0].mxu0
        %v1625 = vadd.f32 0.0, %v1624
        %v1626 = vpop.f32.mrb[0].mxu0
        %1627 = vmatprep.mubr.f32.mxu0 0.0
        %1628 = vmatmul.mubr.f32.gmra.mrb[0].mxu0 %v389
        %v1629 = vpop.f32.mrb[0].mxu0
        %v1630 = vadd.f32 0.0, %v1629
        %v1631 = vpop.f32.mrb[0].mxu0
        %1632 = vmatprep.mubr.f32.mxu0 0.0
        %1633 = vmatmul.mubr.f32.gmra.mrb[0].mxu0 %v392
        %v1634 = vpop.f32.mrb[0].mxu0
        %v1635 = vadd.f32 0.0, %v1634
        %v1636 = vpop.f32.mrb[0].mxu0
        %1637 = vdwg.mxu0
        %v1638 = vsub.f32 1.0, %v1620
        %v1639 = vsub.f32 1.0, %v1625
        %v1640 = vmul.f32 %v1638, %v1630
        %v1641 = vmul.f32 %v1639, %v1635
        %v1642 = vmul.f32 %v1620, %v1412
        %v1643 = vmul.f32 %v1625, %v1413
        %v1644 = vadd.f32 %v1640, %v1642
        %v1645 = vadd.f32 %v1641, %v1643
        %s1646 = scalar_lea.vmem %s206, 80 [#allocation6]
        %1647 = vst [vmem:[%s1646] sm:$0xff] %v1644
        %1648 = vst [vmem:[%s1646 + $0x8] sm:$0xff] %v1645
        %s1649 = scalar_lea.vmem %s184, 288 [#allocation3]
        %v1650 = vld [vmem:[%s1649] sm:$0xff]
        %v1651 = vld [vmem:[%s1649 + $0x8] sm:$0xff]
        %v1652 = vld [vmem:[%s1649 + $0x10] sm:$0xff]
        %v1653 = vld [vmem:[%s1649 + $0x18] sm:$0xff]
        %v1654 = vld [vmem:[%s1649 + $0x20] sm:$0xff]
        %v1655 = vld [vmem:[%s1649 + $0x28] sm:$0xff]
        %1656 = vmatprep.subr.mxu0 0.0
        %1657 = vmatpush1.msra.mxu0 %v1644
        %1658 = vmatprep.subr.mxu0 0.0
        %1659 = vmatpush1.msra.mxu0 %v1645
        %1660 = vmatprep.subr.mxu0 0.0
        %1661 = vmatpush1.msra.mxu0 0.0
        %1662 = vmatprep.subr.mxu0 0.0
        %1663 = vmatpush1.msra.mxu0 0.0
        %1664 = vmatprep.subr.mxu0 0.0
        %1665 = vmatpush1.msra.mxu0 0.0
        %1666 = vmatprep.subr.mxu0 0.0
        %1667 = vmatpush1.msra.mxu0 0.0
        %1668 = vmatprep.subr.mxu0 0.0
        %1669 = vmatpush1.msra.mxu0 0.0
        %1670 = vmatprep.subr.mxu0 0.0
        %1671 = vmatpush1.msra.mxu0 0.0
        %1672 = vmatprep.subr.mxu0 0.0
        %1673 = vmatpush1.msra.mxu0 0.0
        %1674 = vmatprep.subr.mxu0 0.0
        %1675 = vmatpush1.msra.mxu0 0.0
        %1676 = vmatprep.subr.mxu0 0.0
        %1677 = vmatpush1.msra.mxu0 0.0
        %1678 = vmatprep.subr.mxu0 0.0
        %1679 = vmatpush1.msra.mxu0 0.0
        %1680 = vmatprep.subr.mxu0 0.0
        %1681 = vmatpush1.msra.mxu0 0.0
        %1682 = vmatprep.subr.mxu0 0.0
        %1683 = vmatpush1.msra.mxu0 0.0
        %1684 = vmatprep.subr.mxu0 0.0
        %1685 = vmatpush1.msra.mxu0 0.0
        %1686 = vmatprep.subr.mxu0 0.0
        %1687 = vmatpush1.msra.mxu0 0.0
        %1688 = vmatprep.subr.mxu0 0.0
        %1689 = vmatpush1.msra.mxu0 0.0
        %1690 = vmatprep.subr.mxu0 0.0
        %1691 = vmatpush1.msra.mxu0 0.0
        %1692 = vmatprep.subr.mxu0 0.0
        %1693 = vmatpush1.msra.mxu0 0.0
        %1694 = vmatprep.subr.mxu0 0.0
        %1695 = vmatpush1.msra.mxu0 0.0
        %1696 = vmatprep.subr.mxu0 0.0
        %1697 = vmatpush1.msra.mxu0 0.0
        %1698 = vmatprep.subr.mxu0 0.0
        %1699 = vmatpush1.msra.mxu0 0.0
        %1700 = vmatprep.subr.mxu0 0.0
        %1701 = vmatpush1.msra.mxu0 0.0
        %1702 = vmatprep.subr.mxu0 0.0
        %1703 = vmatpush1.msra.mxu0 0.0
        %1704 = vmatprep.subr.mxu0 0.0
        %1705 = vmatpush1.msra.mxu0 0.0
        %1706 = vmatprep.subr.mxu0 0.0
        %1707 = vmatpush1.msra.mxu0 0.0
        %1708 = vmatprep.subr.mxu0 0.0
        %1709 = vmatpush1.msra.mxu0 0.0
        %1710 = vmatprep.subr.mxu0 0.0
        %1711 = vmatpush1.msra.mxu0 0.0
        %1712 = vmatprep.subr.mxu0 0.0
        %1713 = vmatpush1.msra.mxu0 0.0
        %1714 = vmatprep.subr.mxu0 0.0
        %1715 = vmatpush1.msra.mxu0 0.0
        %1716 = vmatprep.subr.mxu0 0.0
        %1717 = vmatpush1.msra.mxu0 0.0
        %1718 = vmatprep.subr.mxu0 0.0
        %1719 = vmatpush1.msra.mxu0 0.0
        %1720 = vmatprep.mubr.f32.mxu0 0.0
        %1721 = vmatmul.mubr.f32.gmra.mrb[0].mxu0 %v235
        %v1722 = vpop.f32.mrb[0].mxu0
        %v1723 = vadd.f32 0.0, %v1722
        %v1724 = vpop.f32.mrb[0].mxu0
        %1725 = vmatprep.mubr.f32.mxu0 0.0
        %1726 = vmatmul.mubr.f32.gmra.mrb[0].mxu0 %v238
        %v1727 = vpop.f32.mrb[0].mxu0
        %v1728 = vadd.f32 0.0, %v1727
        %v1729 = vpop.f32.mrb[0].mxu0
        %1730 = vmatprep.mubr.f32.mxu0 0.0
        %1731 = vmatmul.mubr.f32.gmra.mrb[0].mxu0 %v241
        %v1732 = vpop.f32.mrb[0].mxu0
        %v1733 = vadd.f32 0.0, %v1732
        %v1734 = vpop.f32.mrb[0].mxu0
        %1735 = vmatprep.mubr.f32.mxu0 0.0
        %1736 = vmatmul.mubr.f32.gmra.mrb[0].mxu0 %v244
        %v1737 = vpop.f32.mrb[0].mxu0
        %v1738 = vadd.f32 0.0, %v1737
        %v1739 = vpop.f32.mrb[0].mxu0
        %1740 = vmatprep.mubr.f32.mxu0 0.0
        %1741 = vmatmul.mubr.f32.gmra.mrb[0].mxu0 %v247
        %v1742 = vpop.f32.mrb[0].mxu0
        %v1743 = vadd.f32 0.0, %v1742
        %v1744 = vpop.f32.mrb[0].mxu0
        %1745 = vmatprep.mubr.f32.mxu0 0.0
        %1746 = vmatmul.mubr.f32.gmra.mrb[0].mxu0 %v250
        %v1747 = vpop.f32.mrb[0].mxu0
        %v1748 = vadd.f32 0.0, %v1747
        %v1749 = vpop.f32.mrb[0].mxu0
        %1750 = vdwg.mxu0
        %v1751 = vadd.f32 %v1650, %v1723
        %v1752 = vadd.f32 %v1651, %v1728
        %v1753 = vadd.f32 %v1652, %v1733
        %v1754 = vadd.f32 %v1653, %v1738
        %v1755 = vxor.u32 %v1751, 2147483648
        %v1756 = vxor.u32 %v1752, 2147483648
        %v1757 = vmul.f32 %v1755, 1.442695
        %v1758 = vpow.pop %v1757
        %v1759 = vmul.f32 %v1756, 1.442695
        %v1760 = vpow.pop %v1759
        %v1761 = vadd.f32 %v1758, 1.0
        %v1762 = vadd.f32 %v1760, 1.0
        %v1763 = vrcp.pop %v1761
        %v1764 = vmul.f32 1.0, %v1763
        %v1765 = vrcp.pop %v1762
        %v1766 = vmul.f32 1.0, %v1765
        %v1767 = vxor.u32 %v1753, 2147483648
        %v1768 = vxor.u32 %v1754, 2147483648
        %v1769 = vmul.f32 %v1767, 1.442695
        %v1770 = vpow.pop %v1769
        %v1771 = vmul.f32 %v1768, 1.442695
        %v1772 = vpow.pop %v1771
        %v1773 = vadd.f32 %v1770, 1.0
        %v1774 = vadd.f32 %v1772, 1.0
        %v1775 = vrcp.pop %v1773
        %v1776 = vmul.f32 1.0, %v1775
        %v1777 = vrcp.pop %v1774
        %v1778 = vmul.f32 1.0, %v1777
        %v1779 = vmul.f32 %v1764, %v1743
        %v1780 = vmul.f32 %v1766, %v1748
        %v1781 = vadd.f32 %v1654, %v1779
        %v1782 = vadd.f32 %v1655, %v1780
        %v1783 = vtanh.pop %v1781
        %v1784 = vtanh.pop %v1782
        %1785 = vmatprep.subr.mxu0 0.0
        %1786 = vmatpush1.msra.mxu0 %v1776
        %1787 = vmatprep.subr.mxu0 0.0
        %1788 = vmatpush1.msra.mxu0 %v1778
        %1789 = vmatprep.subr.mxu0 0.0
        %1790 = vmatpush1.msra.mxu0 %v1783
        %1791 = vmatprep.subr.mxu0 0.0
        %1792 = vmatpush1.msra.mxu0 %v1784
        %1793 = vmatprep.subr.mxu0 0.0
        %1794 = vmatpush1.msra.mxu0 0.0
        %1795 = vmatprep.subr.mxu0 0.0
        %1796 = vmatpush1.msra.mxu0 0.0
        %1797 = vmatprep.subr.mxu0 0.0
        %1798 = vmatpush1.msra.mxu0 0.0
        %1799 = vmatprep.subr.mxu0 0.0
        %1800 = vmatpush1.msra.mxu0 0.0
        %1801 = vmatprep.subr.mxu0 0.0
        %1802 = vmatpush1.msra.mxu0 0.0
        %1803 = vmatprep.subr.mxu0 0.0
        %1804 = vmatpush1.msra.mxu0 0.0
        %1805 = vmatprep.subr.mxu0 0.0
        %1806 = vmatpush1.msra.mxu0 0.0
        %1807 = vmatprep.subr.mxu0 0.0
        %1808 = vmatpush1.msra.mxu0 0.0
        %1809 = vmatprep.subr.mxu0 0.0
        %1810 = vmatpush1.msra.mxu0 0.0
        %1811 = vmatprep.subr.mxu0 0.0
        %1812 = vmatpush1.msra.mxu0 0.0
        %1813 = vmatprep.subr.mxu0 0.0
        %1814 = vmatpush1.msra.mxu0 0.0
        %1815 = vmatprep.subr.mxu0 0.0
        %1816 = vmatpush1.msra.mxu0 0.0
        %1817 = vmatprep.subr.mxu0 0.0
        %1818 = vmatpush1.msra.mxu0 0.0
        %1819 = vmatprep.subr.mxu0 0.0
        %1820 = vmatpush1.msra.mxu0 0.0
        %1821 = vmatprep.subr.mxu0 0.0
        %1822 = vmatpush1.msra.mxu0 0.0
        %1823 = vmatprep.subr.mxu0 0.0
        %1824 = vmatpush1.msra.mxu0 0.0
        %1825 = vmatprep.subr.mxu0 0.0
        %1826 = vmatpush1.msra.mxu0 0.0
        %1827 = vmatprep.subr.mxu0 0.0
        %1828 = vmatpush1.msra.mxu0 0.0
        %1829 = vmatprep.subr.mxu0 0.0
        %1830 = vmatpush1.msra.mxu0 0.0
        %1831 = vmatprep.subr.mxu0 0.0
        %1832 = vmatpush1.msra.mxu0 0.0
        %1833 = vmatprep.subr.mxu0 0.0
        %1834 = vmatpush1.msra.mxu0 0.0
        %1835 = vmatprep.subr.mxu0 0.0
        %1836 = vmatpush1.msra.mxu0 0.0
        %1837 = vmatprep.subr.mxu0 0.0
        %1838 = vmatpush1.msra.mxu0 0.0
        %1839 = vmatprep.subr.mxu0 0.0
        %1840 = vmatpush1.msra.mxu0 0.0
        %1841 = vmatprep.subr.mxu0 0.0
        %1842 = vmatpush1.msra.mxu0 0.0
        %1843 = vmatprep.subr.mxu0 0.0
        %1844 = vmatpush1.msra.mxu0 0.0
        %1845 = vmatprep.subr.mxu0 0.0
        %1846 = vmatpush1.msra.mxu0 0.0
        %1847 = vmatprep.subr.mxu0 0.0
        %1848 = vmatpush1.msra.mxu0 0.0
        %1849 = vmatprep.mubr.f32.mxu0 0.0
        %1850 = vmatmul.mubr.f32.gmra.mrb[0].mxu0 %v383
        %v1851 = vpop.f32.mrb[0].mxu0
        %v1852 = vadd.f32 0.0, %v1851
        %v1853 = vpop.f32.mrb[0].mxu0
        %1854 = vmatprep.mubr.f32.mxu0 0.0
        %1855 = vmatmul.mubr.f32.gmra.mrb[0].mxu0 %v386
        %v1856 = vpop.f32.mrb[0].mxu0
        %v1857 = vadd.f32 0.0, %v1856
        %v1858 = vpop.f32.mrb[0].mxu0
        %1859 = vmatprep.mubr.f32.mxu0 0.0
        %1860 = vmatmul.mubr.f32.gmra.mrb[0].mxu0 %v389
        %v1861 = vpop.f32.mrb[0].mxu0
        %v1862 = vadd.f32 0.0, %v1861
        %v1863 = vpop.f32.mrb[0].mxu0
        %1864 = vmatprep.mubr.f32.mxu0 0.0
        %1865 = vmatmul.mubr.f32.gmra.mrb[0].mxu0 %v392
        %v1866 = vpop.f32.mrb[0].mxu0
        %v1867 = vadd.f32 0.0, %v1866
        %v1868 = vpop.f32.mrb[0].mxu0
        %1869 = vdwg.mxu0
        %v1870 = vsub.f32 1.0, %v1852
        %v1871 = vsub.f32 1.0, %v1857
        %v1872 = vmul.f32 %v1870, %v1862
        %v1873 = vmul.f32 %v1871, %v1867
        %v1874 = vmul.f32 %v1852, %v1644
        %v1875 = vmul.f32 %v1857, %v1645
        %v1876 = vadd.f32 %v1872, %v1874
        %v1877 = vadd.f32 %v1873, %v1875
        %s1878 = scalar_lea.vmem %s206, 96 [#allocation6]
        %1879 = vst [vmem:[%s1878] sm:$0xff] %v1876
        %1880 = vst [vmem:[%s1878 + $0x8] sm:$0xff] %v1877
        %s1881 = scalar_lea.vmem %s184, 336 [#allocation3]
        %v1882 = vld [vmem:[%s1881] sm:$0xff]
        %v1883 = vld [vmem:[%s1881 + $0x8] sm:$0xff]
        %v1884 = vld [vmem:[%s1881 + $0x10] sm:$0xff]
        %v1885 = vld [vmem:[%s1881 + $0x18] sm:$0xff]
        %v1886 = vld [vmem:[%s1881 + $0x20] sm:$0xff]
        %v1887 = vld [vmem:[%s1881 + $0x28] sm:$0xff]
        %1888 = vmatprep.subr.mxu0 0.0
        %1889 = vmatpush1.msra.mxu0 %v1876
        %1890 = vmatprep.subr.mxu0 0.0
        %1891 = vmatpush1.msra.mxu0 %v1877
        %1892 = vmatprep.subr.mxu0 0.0
        %1893 = vmatpush1.msra.mxu0 0.0
        %1894 = vmatprep.subr.mxu0 0.0
        %1895 = vmatpush1.msra.mxu0 0.0
        %1896 = vmatprep.subr.mxu0 0.0
        %1897 = vmatpush1.msra.mxu0 0.0
        %1898 = vmatprep.subr.mxu0 0.0
        %1899 = vmatpush1.msra.mxu0 0.0
        %1900 = vmatprep.subr.mxu0 0.0
        %1901 = vmatpush1.msra.mxu0 0.0
        %1902 = vmatprep.subr.mxu0 0.0
        %1903 = vmatpush1.msra.mxu0 0.0
        %1904 = vmatprep.subr.mxu0 0.0
        %1905 = vmatpush1.msra.mxu0 0.0
        %1906 = vmatprep.subr.mxu0 0.0
        %1907 = vmatpush1.msra.mxu0 0.0
        %1908 = vmatprep.subr.mxu0 0.0
        %1909 = vmatpush1.msra.mxu0 0.0
        %1910 = vmatprep.subr.mxu0 0.0
        %1911 = vmatpush1.msra.mxu0 0.0
        %1912 = vmatprep.subr.mxu0 0.0
        %1913 = vmatpush1.msra.mxu0 0.0
        %1914 = vmatprep.subr.mxu0 0.0
        %1915 = vmatpush1.msra.mxu0 0.0
        %1916 = vmatprep.subr.mxu0 0.0
        %1917 = vmatpush1.msra.mxu0 0.0
        %1918 = vmatprep.subr.mxu0 0.0
        %1919 = vmatpush1.msra.mxu0 0.0
        %1920 = vmatprep.subr.mxu0 0.0
        %1921 = vmatpush1.msra.mxu0 0.0
        %1922 = vmatprep.subr.mxu0 0.0
        %1923 = vmatpush1.msra.mxu0 0.0
        %1924 = vmatprep.subr.mxu0 0.0
        %1925 = vmatpush1.msra.mxu0 0.0
        %1926 = vmatprep.subr.mxu0 0.0
        %1927 = vmatpush1.msra.mxu0 0.0
        %1928 = vmatprep.subr.mxu0 0.0
        %1929 = vmatpush1.msra.mxu0 0.0
        %1930 = vmatprep.subr.mxu0 0.0
        %1931 = vmatpush1.msra.mxu0 0.0
        %1932 = vmatprep.subr.mxu0 0.0
        %1933 = vmatpush1.msra.mxu0 0.0
        %1934 = vmatprep.subr.mxu0 0.0
        %1935 = vmatpush1.msra.mxu0 0.0
        %1936 = vmatprep.subr.mxu0 0.0
        %1937 = vmatpush1.msra.mxu0 0.0
        %1938 = vmatprep.subr.mxu0 0.0
        %1939 = vmatpush1.msra.mxu0 0.0
        %1940 = vmatprep.subr.mxu0 0.0
        %1941 = vmatpush1.msra.mxu0 0.0
        %1942 = vmatprep.subr.mxu0 0.0
        %1943 = vmatpush1.msra.mxu0 0.0
        %1944 = vmatprep.subr.mxu0 0.0
        %1945 = vmatpush1.msra.mxu0 0.0
        %1946 = vmatprep.subr.mxu0 0.0
        %1947 = vmatpush1.msra.mxu0 0.0
        %1948 = vmatprep.subr.mxu0 0.0
        %1949 = vmatpush1.msra.mxu0 0.0
        %1950 = vmatprep.subr.mxu0 0.0
        %1951 = vmatpush1.msra.mxu0 0.0
        %1952 = vmatprep.mubr.f32.mxu0 0.0
        %1953 = vmatmul.mubr.f32.gmra.mrb[0].mxu0 %v235
        %v1954 = vpop.f32.mrb[0].mxu0
        %v1955 = vadd.f32 0.0, %v1954
        %v1956 = vpop.f32.mrb[0].mxu0
        %1957 = vmatprep.mubr.f32.mxu0 0.0
        %1958 = vmatmul.mubr.f32.gmra.mrb[0].mxu0 %v238
        %v1959 = vpop.f32.mrb[0].mxu0
        %v1960 = vadd.f32 0.0, %v1959
        %v1961 = vpop.f32.mrb[0].mxu0
        %1962 = vmatprep.mubr.f32.mxu0 0.0
        %1963 = vmatmul.mubr.f32.gmra.mrb[0].mxu0 %v241
        %v1964 = vpop.f32.mrb[0].mxu0
        %v1965 = vadd.f32 0.0, %v1964
        %v1966 = vpop.f32.mrb[0].mxu0
        %1967 = vmatprep.mubr.f32.mxu0 0.0
        %1968 = vmatmul.mubr.f32.gmra.mrb[0].mxu0 %v244
        %v1969 = vpop.f32.mrb[0].mxu0
        %v1970 = vadd.f32 0.0, %v1969
        %v1971 = vpop.f32.mrb[0].mxu0
        %1972 = vmatprep.mubr.f32.mxu0 0.0
        %1973 = vmatmul.mubr.f32.gmra.mrb[0].mxu0 %v247
        %v1974 = vpop.f32.mrb[0].mxu0
        %v1975 = vadd.f32 0.0, %v1974
        %v1976 = vpop.f32.mrb[0].mxu0
        %1977 = vmatprep.mubr.f32.mxu0 0.0
        %1978 = vmatmul.mubr.f32.gmra.mrb[0].mxu0 %v250
        %v1979 = vpop.f32.mrb[0].mxu0
        %v1980 = vadd.f32 0.0, %v1979
        %v1981 = vpop.f32.mrb[0].mxu0
        %1982 = vdwg.mxu0
        %v1983 = vadd.f32 %v1882, %v1955
        %v1984 = vadd.f32 %v1883, %v1960
        %v1985 = vadd.f32 %v1884, %v1965
        %v1986 = vadd.f32 %v1885, %v1970
        %v1987 = vxor.u32 %v1983, 2147483648
        %v1988 = vxor.u32 %v1984, 2147483648
        %v1989 = vmul.f32 %v1987, 1.442695
        %v1990 = vpow.pop %v1989
        %v1991 = vmul.f32 %v1988, 1.442695
        %v1992 = vpow.pop %v1991
        %v1993 = vadd.f32 %v1990, 1.0
        %v1994 = vadd.f32 %v1992, 1.0
        %v1995 = vrcp.pop %v1993
        %v1996 = vmul.f32 1.0, %v1995
        %v1997 = vrcp.pop %v1994
        %v1998 = vmul.f32 1.0, %v1997
        %v1999 = vxor.u32 %v1985, 2147483648
        %v2000 = vxor.u32 %v1986, 2147483648
        %v2001 = vmul.f32 %v1999, 1.442695
        %v2002 = vpow.pop %v2001
        %v2003 = vmul.f32 %v2000, 1.442695
        %v2004 = vpow.pop %v2003
        %v2005 = vadd.f32 %v2002, 1.0
        %v2006 = vadd.f32 %v2004, 1.0
        %v2007 = vrcp.pop %v2005
        %v2008 = vmul.f32 1.0, %v2007
        %v2009 = vrcp.pop %v2006
        %v2010 = vmul.f32 1.0, %v2009
        %v2011 = vmul.f32 %v1996, %v1975
        %v2012 = vmul.f32 %v1998, %v1980
        %v2013 = vadd.f32 %v1886, %v2011
        %v2014 = vadd.f32 %v1887, %v2012
        %v2015 = vtanh.pop %v2013
        %v2016 = vtanh.pop %v2014
        %2017 = vmatprep.subr.mxu0 0.0
        %2018 = vmatpush1.msra.mxu0 %v2008
        %2019 = vmatprep.subr.mxu0 0.0
        %2020 = vmatpush1.msra.mxu0 %v2010
        %2021 = vmatprep.subr.mxu0 0.0
        %2022 = vmatpush1.msra.mxu0 %v2015
        %2023 = vmatprep.subr.mxu0 0.0
        %2024 = vmatpush1.msra.mxu0 %v2016
        %2025 = vmatprep.subr.mxu0 0.0
        %2026 = vmatpush1.msra.mxu0 0.0
        %2027 = vmatprep.subr.mxu0 0.0
        %2028 = vmatpush1.msra.mxu0 0.0
        %2029 = vmatprep.subr.mxu0 0.0
        %2030 = vmatpush1.msra.mxu0 0.0
        %2031 = vmatprep.subr.mxu0 0.0
        %2032 = vmatpush1.msra.mxu0 0.0
        %2033 = vmatprep.subr.mxu0 0.0
        %2034 = vmatpush1.msra.mxu0 0.0
        %2035 = vmatprep.subr.mxu0 0.0
        %2036 = vmatpush1.msra.mxu0 0.0
        %2037 = vmatprep.subr.mxu0 0.0
        %2038 = vmatpush1.msra.mxu0 0.0
        %2039 = vmatprep.subr.mxu0 0.0
        %2040 = vmatpush1.msra.mxu0 0.0
        %2041 = vmatprep.subr.mxu0 0.0
        %2042 = vmatpush1.msra.mxu0 0.0
        %2043 = vmatprep.subr.mxu0 0.0
        %2044 = vmatpush1.msra.mxu0 0.0
        %2045 = vmatprep.subr.mxu0 0.0
        %2046 = vmatpush1.msra.mxu0 0.0
        %2047 = vmatprep.subr.mxu0 0.0
        %2048 = vmatpush1.msra.mxu0 0.0
        %2049 = vmatprep.subr.mxu0 0.0
        %2050 = vmatpush1.msra.mxu0 0.0
        %2051 = vmatprep.subr.mxu0 0.0
        %2052 = vmatpush1.msra.mxu0 0.0
        %2053 = vmatprep.subr.mxu0 0.0
        %2054 = vmatpush1.msra.mxu0 0.0
        %2055 = vmatprep.subr.mxu0 0.0
        %2056 = vmatpush1.msra.mxu0 0.0
        %2057 = vmatprep.subr.mxu0 0.0
        %2058 = vmatpush1.msra.mxu0 0.0
        %2059 = vmatprep.subr.mxu0 0.0
        %2060 = vmatpush1.msra.mxu0 0.0
        %2061 = vmatprep.subr.mxu0 0.0
        %2062 = vmatpush1.msra.mxu0 0.0
        %2063 = vmatprep.subr.mxu0 0.0
        %2064 = vmatpush1.msra.mxu0 0.0
        %2065 = vmatprep.subr.mxu0 0.0
        %2066 = vmatpush1.msra.mxu0 0.0
        %2067 = vmatprep.subr.mxu0 0.0
        %2068 = vmatpush1.msra.mxu0 0.0
        %2069 = vmatprep.subr.mxu0 0.0
        %2070 = vmatpush1.msra.mxu0 0.0
        %2071 = vmatprep.subr.mxu0 0.0
        %2072 = vmatpush1.msra.mxu0 0.0
        %2073 = vmatprep.subr.mxu0 0.0
        %2074 = vmatpush1.msra.mxu0 0.0
        %2075 = vmatprep.subr.mxu0 0.0
        %2076 = vmatpush1.msra.mxu0 0.0
        %2077 = vmatprep.subr.mxu0 0.0
        %2078 = vmatpush1.msra.mxu0 0.0
        %2079 = vmatprep.subr.mxu0 0.0
        %2080 = vmatpush1.msra.mxu0 0.0
        %2081 = vmatprep.mubr.f32.mxu0 0.0
        %2082 = vmatmul.mubr.f32.gmra.mrb[0].mxu0 %v383
        %v2083 = vpop.f32.mrb[0].mxu0
        %v2084 = vadd.f32 0.0, %v2083
        %v2085 = vpop.f32.mrb[0].mxu0
        %2086 = vmatprep.mubr.f32.mxu0 0.0
        %2087 = vmatmul.mubr.f32.gmra.mrb[0].mxu0 %v386
        %v2088 = vpop.f32.mrb[0].mxu0
        %v2089 = vadd.f32 0.0, %v2088
        %v2090 = vpop.f32.mrb[0].mxu0
        %2091 = vmatprep.mubr.f32.mxu0 0.0
        %2092 = vmatmul.mubr.f32.gmra.mrb[0].mxu0 %v389
        %v2093 = vpop.f32.mrb[0].mxu0
        %v2094 = vadd.f32 0.0, %v2093
        %v2095 = vpop.f32.mrb[0].mxu0
        %2096 = vmatprep.mubr.f32.mxu0 0.0
        %2097 = vmatmul.mubr.f32.gmra.mrb[0].mxu0 %v392
        %v2098 = vpop.f32.mrb[0].mxu0
        %v2099 = vadd.f32 0.0, %v2098
        %v2100 = vpop.f32.mrb[0].mxu0
        %2101 = vdwg.mxu0
        %v2102 = vsub.f32 1.0, %v2084
        %v2103 = vsub.f32 1.0, %v2089
        %v2104 = vmul.f32 %v2102, %v2094
        %v2105 = vmul.f32 %v2103, %v2099
        %v2106 = vmul.f32 %v2084, %v1876
        %v2107 = vmul.f32 %v2089, %v1877
        %v2108 = vadd.f32 %v2104, %v2106
        %v2109 = vadd.f32 %v2105, %v2107
        %s2110 = scalar_lea.vmem %s206, 112 [#allocation6]
        %2111 = vst [vmem:[%s2110] sm:$0xff] %v2108
        %2112 = vst [vmem:[%s2110 + $0x8] sm:$0xff] %v2109
        %2113 = vst [vmem:[#allocation2] sm:$0xff] %v2108
        %2114 = vst [vmem:[#allocation2 + $0x8] sm:$0xff] %v2109
        %s2115 = sand.u32 %s112, 1
        %s2116 = scalar_lea.sflag [#allocation5], %s2115
        %s2117 = sand.u32 %s112, 1
        %s2118 = smul.addr %s2117, 128
        %s2119 = scalar_lea.vmem [#allocation6], %s2118
        // Predicated region
        $region41: #{tpu_custom_call.1} parent=31 // pred_check
          %p2120 = pneg %p122
        $region42: #{tpu_custom_call.1} parent=31 // pred_check_branch
          %2122 = sbr.rel (%p2120) target = $region44
        $region43: #{tpu_custom_call.1} parent=31 // pred_region
          %s2123 = smul.u32 8, %s25
          %s2125 = ssub.s32 2048, 2048
          %2126 = vsyncadd %s2116, %s2125
          %s2127 = smul.addr %s2123, 2
          %s2128 = sadd.s32 %s24, %s2127
          %s2129 = smul.addr %s2128, 128
          %s2130 = scalar_lea.hbm %s3, %s2129
          %s2131 = sshll.u32 %s2119, 4
          %s2132 = int_to_ptr.vmem [resolvable:$true] %s2131
          %2137 = dma.vmem_to_hbm [thread:$0]  %s2132, 2048, %s2130, %s2116, 128, 128, 8
        $region44: #{tpu_custom_call.1} parent=31 // pred_fallthru
          _
      $region32: #{tpu_custom_call.1} parent=5 // pred_fallthru
        _
      %p2138 = scmp.le.s32.totalorder 2, %s15
      // Predicated region
      $region45: #{tpu_custom_call.1} parent=5 // pred_check
        %p2139 = pneg %p2138
      $region46: #{tpu_custom_call.1} parent=5 // pred_check_branch
        %2141 = sbr.rel (%p2139) target = $region48
      $region47: #{tpu_custom_call.1} parent=5 // pred_region
        %s2142 = ssub.s32 %s15, 2
        // Predicated region
        $region49: #{tpu_custom_call.1} parent=47 // pred_check
          %p2143 = pneg %p128
        $region50: #{tpu_custom_call.1} parent=47 // pred_check_branch
          %2145 = sbr.rel (%p2143) target = $region52
        $region51: #{tpu_custom_call.1} parent=47 // pred_region
          %s2146 = sand.u32 %s113, 1
          %s2147 = scalar_lea.sflag [#allocation5], %s2146
          %s2148 = sand.u32 %s113, 1
          %s2149 = smul.addr %s2148, 128
          %s2150 = scalar_lea.vmem [#allocation6], %s2149
          %2151 = dma.done %s2147, 2048
        $region52: #{tpu_custom_call.1} parent=47 // pred_fallthru
          _
      $region48: #{tpu_custom_call.1} parent=5 // pred_fallthru
        _
    $region6: #{tpu_custom_call.1} parent=1 // loop_footer
      %s19 = sadd.s32 1, %s15
    $region7: #{tpu_custom_call.1} parent=1 // loop_footer_branch
      %14 = sbr.rel target = $region3
    $region8: #{tpu_custom_call.1} parent=1 // loop_exit
      _
    %2152 = vsyncpa [#allocation4], 1
    %s2153 = scalar_lea.sflag [#allocation4], 1
    %2154 = vsyncpa %s2153, 1
    %2155 = vsyncpa [#allocation5], 1
    %s2156 = scalar_lea.sflag [#allocation5], 1
    %2157 = vsyncpa %s2156, 1

// kernel: tpu_custom_call.1
$region0: #{tpu_custom_call.1}
  #allocation0 [shape = 'u32[]', space=smem, size = 0x4, offset = 0x4, fixed_abs, tag = 'smem constant byte address 0x4 - core index']
  #allocation1 [shape = 'u32[144,128]{1,0:T(1,128)}', space=vmem, size = 0x12000, scoped, tag = 'internal scratch']
  #allocation2 [shape = 'f32[16,128]{1,0:T(8,128)}', space=vmem, size = 0x2000, scoped, tag = 'scratch operand']
  %s0 = inlined_call_operand.hbm [shape: f32[16,48,128], index: 0, kind: input, shape index: {}]
  %s1 = inlined_call_operand.vmem [shape: f32[48,16], index: 1, kind: input, shape index: {}]
  %s2 = inlined_call_operand.vmem [shape: f32[32,32], index: 2, kind: input, shape index: {}]
  %s3 = inlined_call_operand.hbm [shape: f32[16,16,128], index: 3, kind: output, shape index: {}]
  %s4 = sld [smem:[#allocation0]]
  $region53: #{tpu_custom_call.1} parent=0
    _
  %s6 = ssub.s32 1, %s4
  %s7 = scalar_select 0, %s6, %s4
  $region1: #{tpu_custom_call.1} parent=0
    #allocation3 [shape = 'u8[393216]{0}', space=vmem, size = 0x60000, scoped, tag = 'input window, operand 0']
    #allocation4 [shape = 's32[2]{0}', space=sflag, size = 0x8, scoped, tag = 'scoped memory for tpu_custom_call.1']
    #allocation5 [shape = 's32[2]{0}', space=sflag, size = 0x8, scoped, tag = 'scoped memory for tpu_custom_call.1']
    #allocation6 [shape = 'u8[131072]{0}', space=vmem, size = 0x20000, scoped, tag = 'output window, operand 0']
    %8 = vsyncpa [#allocation4], 0
    %s9 = scalar_lea.sflag [#allocation4], 1
    %10 = vsyncpa %s9, 0
    %11 = vsyncpa [#allocation5], 0
    %s12 = scalar_lea.sflag [#allocation5], 1
    %13 = vsyncpa %s12, 0
    loop: start=0, step=1, limit=4
    $region2: #{tpu_custom_call.1} parent=1 // loop_pre_header
      _
    $region3: #{tpu_custom_call.1} parent=1 // loop_header
      %s15 = sphi 0, %s19
      %p16 = scmp.ge.s32.totalorder %s15, 4
      %s22 = sphi 0, %s34
      %s23 = sphi 0, %s30
      %s24 = sphi 0, %s22
      %s25 = sphi 0, %s23
      %s26 = sphi 0, %s24
      %s27 = sphi 0, %s25
      %s39 = sphi 0, %s41
      %s42 = sphi 0, %s39
      %s43 = sphi 0, %s42
      %s59 = sphi 0, %s43
      %s63 = sphi 0, %s63
      %s65 = sphi 0, %s63
      %s66 = sphi 0, %s65
      %s80 = sphi 0, %s66
      %s84 = sphi 0, %s84
      %s86 = sphi 0, %s84
      %s87 = sphi 0, %s86
      %s101 = sphi 0, %s87
      %s109 = sphi 0, %s111
      %s112 = sphi 0, %s109
      %s113 = sphi 0, %s112
      %s129 = sphi 0, %s113
    $region4: #{tpu_custom_call.1} parent=1 // loop_header_branch
      %18 = sbr.rel (%p16) target = $region8
    $region5: #{tpu_custom_call.1} parent=1 // loop_body
      %s20 = ssub.s32 %s15, 1
      %s21 = ssub.s32 %s15, 2
      %s28 = sadd.s32 1, %s23
      %p29 = scmp.ge.s32.totalorder %s28, 2
      %s30 = scalar_select %p29, 0, %s28
      %s31 = sadd.s32 1, %s22
      %s32 = scalar_select %p29, %s31, %s22
      %p33 = scmp.ge.s32.totalorder %s32, 1
      %s34 = scalar_select %p33, 0, %s32
      %s35 = ssub.s32 %s23, %s30
      %s36 = ssub.s32 %s22, %s34
      %s37 = sor.u32 %s35, %s36
      %p38 = scmp.eq.s32.totalorder %s37, 0
      %s40 = sadd.s32 %s39, 1
      %s41 = scalar_select %p38, %s39, %s40
      %p44 = pneg %p38
      %p45 = scmp.eq.s32.totalorder %s15, 1
      %p46 = por %p44, %p45
      %p47 = scmp.ne.s32.totalorder %s39, %s42
      %p48 = scmp.eq.s32.totalorder %s15, 0
      %p49 = por %p47, %p48
      %p50 = scmp.ne.s32.totalorder %s39, %s42
      %p51 = scmp.eq.s32.totalorder %s20, 1
      %p52 = por %p50, %p51
      %p53 = scmp.ne.s32.totalorder %s42, %s43
      %p54 = scmp.eq.s32.totalorder %s20, 0
      %p55 = por %p53, %p54
      %p56 = scmp.ne.s32.totalorder %s42, %s43
      %p57 = scmp.eq.s32.totalorder %s21, 1
      %p58 = por %p56, %p57
      %p60 = scmp.ne.s32.totalorder %s43, %s59
      %p61 = scmp.eq.s32.totalorder %s21, 0
      %p62 = por %p60, %p61
      %s64 = sadd.s32 %s63, 1
      %p67 = scmp.eq.s32.totalorder %s15, 1
      %p68 = scmp.ne.s32.totalorder %s63, %s65
      %p69 = scmp.eq.s32.totalorder %s15, 0
      %p70 = por %p68, %p69
      %p71 = scmp.ne.s32.totalorder %s63, %s65
      %p72 = scmp.eq.s32.totalorder %s20, 1
      %p73 = por %p71, %p72
      %p74 = scmp.ne.s32.totalorder %s65, %s66
      %p75 = scmp.eq.s32.totalorder %s20, 0
      %p76 = por %p74, %p75
      %p77 = scmp.ne.s32.totalorder %s65, %s66
      %p78 = scmp.eq.s32.totalorder %s21, 1
      %p79 = por %p77, %p78
      %p81 = scmp.ne.s32.totalorder %s66, %s80
      %p82 = scmp.eq.s32.totalorder %s21, 0
      %p83 = por %p81, %p82
      %s85 = sadd.s32 %s84, 1
      %p88 = scmp.eq.s32.totalorder %s15, 1
      %p89 = scmp.ne.s32.totalorder %s84, %s86
      %p90 = scmp.eq.s32.totalorder %s15, 0
      %p91 = por %p89, %p90
      %p92 = scmp.ne.s32.totalorder %s84, %s86
      %p93 = scmp.eq.s32.totalorder %s20, 1
      %p94 = por %p92, %p93
      %p95 = scmp.ne.s32.totalorder %s86, %s87
      %p96 = scmp.eq.s32.totalorder %s20, 0
      %p97 = por %p95, %p96
      %p98 = scmp.ne.s32.totalorder %s86, %s87
      %p99 = scmp.eq.s32.totalorder %s21, 1
      %p100 = por %p98, %p99
      %p102 = scmp.ne.s32.totalorder %s87, %s101
      %p103 = scmp.eq.s32.totalorder %s21, 0
      %p104 = por %p102, %p103
      %s105 = ssub.s32 %s23, %s30
      %s106 = ssub.s32 %s22, %s34
      %s107 = sor.u32 %s105, %s106
      %p108 = scmp.eq.s32.totalorder %s107, 0
      %s110 = sadd.s32 %s109, 1
      %s111 = scalar_select %p108, %s109, %s110
      %p114 = pneg %p108
      %p115 = scmp.eq.s32.totalorder %s15, 1
      %p116 = por %p114, %p115
      %p117 = scmp.ne.s32.totalorder %s109, %s112
      %p118 = scmp.eq.s32.totalorder %s15, 0
      %p119 = por %p117, %p118
      %p120 = scmp.ne.s32.totalorder %s109, %s112
      %p121 = scmp.eq.s32.totalorder %s20, 1
      %p122 = por %p120, %p121
      %p123 = scmp.ne.s32.totalorder %s112, %s113
      %p124 = scmp.eq.s32.totalorder %s20, 0
      %p125 = por %p123, %p124
      %p126 = scmp.ne.s32.totalorder %s112, %s113
      %p127 = scmp.eq.s32.totalorder %s21, 1
      %p128 = por %p126, %p127
      %p130 = scmp.ne.s32.totalorder %s113, %s129
      %p131 = scmp.eq.s32.totalorder %s21, 0
      %p132 = por %p130, %p131
      %p133 = scmp.le.s32.totalorder 1, %s15
      %p134 = scmp.lt.s32.totalorder %s15, 3
      %p135 = pnand %p133, %p134
      %p136 = pneg %p135
      // Predicated region
      $region9: #{tpu_custom_call.1} parent=5 // pred_check
        _
      $region10: #{tpu_custom_call.1} parent=5 // pred_check_branch
        %138 = sbr.rel (%p135) target = $region12
      $region11: #{tpu_custom_call.1} parent=5 // pred_region
        %s139 = ssub.s32 %s15, 1
        // Predicated region
        $region13: #{tpu_custom_call.1} parent=11 // pred_check
          %p140 = pneg %p76
        $region14: #{tpu_custom_call.1} parent=11 // pred_check_branch
          %142 = sbr.rel (%p140) target = $region16
        $region15: #{tpu_custom_call.1} parent=11 // pred_region
          _
        $region16: #{tpu_custom_call.1} parent=11 // pred_fallthru
          _
        // Predicated region
        $region17: #{tpu_custom_call.1} parent=11 // pred_check
          %p143 = pneg %p97
        $region18: #{tpu_custom_call.1} parent=11 // pred_check_branch
          %145 = sbr.rel (%p143) target = $region20
        $region19: #{tpu_custom_call.1} parent=11 // pred_region
          _
        $region20: #{tpu_custom_call.1} parent=11 // pred_fallthru
          _
      $region12: #{tpu_custom_call.1} parent=5 // pred_fallthru
        _
      %p146 = scmp.lt.s32.totalorder %s15, 2
      // Predicated region
      $region21: #{tpu_custom_call.1} parent=5 // pred_check
        %p147 = pneg %p146
      $region22: #{tpu_custom_call.1} parent=5 // pred_check_branch
        %149 = sbr.rel (%p147) target = $region24
      $region23: #{tpu_custom_call.1} parent=5 // pred_region
        // Predicated region
        $region25: #{tpu_custom_call.1} parent=23 // pred_check
          %p150 = pneg %p49
        $region26: #{tpu_custom_call.1} parent=23 // pred_check_branch
          %152 = sbr.rel (%p150) target = $region28
        $region27: #{tpu_custom_call.1} parent=23 // pred_region
          %s153 = sand.u32 %s39, 1
          %s154 = scalar_lea.sflag [#allocation4], %s153
          %s155 = sand.u32 %s39, 1
          %s156 = smul.addr %s155, 384
          %s157 = scalar_lea.vmem [#allocation3], %s156
          %s158 = smul.u32 8, %s23
          %s160 = ssub.s32 6144, 6144
          %161 = vsyncadd %s154, %s160
          %s162 = smul.addr %s158, 6
          %s163 = sadd.s32 %s22, %s162
          %s164 = smul.addr %s163, 128
          %s165 = scalar_lea.hbm %s0, %s164
          %s166 = sshll.u32 %s157, 4
          %s167 = int_to_ptr.vmem [resolvable:$true] %s166
          %172 = dma.hbm_to_vmem [thread:$0]  %s165, 6144, %s167, %s154, 128, 128, 8
        $region28: #{tpu_custom_call.1} parent=23 // pred_fallthru
          _
      $region24: #{tpu_custom_call.1} parent=5 // pred_fallthru
        _
      %p173 = scmp.le.s32.totalorder 1, %s15
      %p174 = scmp.lt.s32.totalorder %s15, 3
      %p175 = pnand %p173, %p174
      %p176 = pneg %p175
      // Predicated region
      $region29: #{tpu_custom_call.1} parent=5 // pred_check
        _
      $region30: #{tpu_custom_call.1} parent=5 // pred_check_branch
        %178 = sbr.rel (%p175) target = $region32
      $region31: #{tpu_custom_call.1} parent=5 // pred_region
        %s179 = ssub.s32 %s15, 1
        %s180 = sand.u32 %s42, 1
        %s181 = scalar_lea.sflag [#allocation4], %s180
        %s182 = sand.u32 %s42, 1
        %s183 = smul.addr %s182, 384
        %s184 = scalar_lea.vmem [#allocation3], %s183
        // Predicated region
        $region33: #{tpu_custom_call.1} parent=31 // pred_check
          %p185 = pneg %p55
        $region34: #{tpu_custom_call.1} parent=31 // pred_check_branch
          %187 = sbr.rel (%p185) target = $region36
        $region35: #{tpu_custom_call.1} parent=31 // pred_region
          %188 = dma.done %s181, 6144
        $region36: #{tpu_custom_call.1} parent=31 // pred_fallthru
          _
        %s189 = sand.u32 %s42, 1
        %s190 = scalar_lea.sflag [#allocation4], %s189
        %s191 = sand.u32 %s42, 1
        %s192 = smul.addr %s191, 384
        %s193 = scalar_lea.vmem [#allocation3], %s192
        %p194 = pneg %p55
        %p195 = pneg %p52
        %p196 = pneg %p76
        %p197 = pneg %p73
        %p198 = pneg %p97
        %p199 = pneg %p94
        %p200 = pneg %p125
        %p201 = pneg %p122
        %s202 = sand.u32 %s112, 1
        %s203 = scalar_lea.sflag [#allocation5], %s202
        %s204 = sand.u32 %s112, 1
        %s205 = smul.addr %s204, 128
        %s206 = scalar_lea.vmem [#allocation6], %s205
        %s207 = smul.u32 8, %s25
        %s208 = smul.u32 8, %s25
        %p209 = scmp.eq.s32.totalorder %s25, 0
        // Predicated region
        $region37: #{tpu_custom_call.1} parent=31 // pred_check
          %p210 = pneg %p209
        $region38: #{tpu_custom_call.1} parent=31 // pred_check_branch
          %212 = sbr.rel (%p210) target = $region40
        $region39: #{tpu_custom_call.1} parent=31 // pred_region
          %213 = vst [vmem:[#allocation2] sm:$0xff] 0.0
          %214 = vst [vmem:[#allocation2 + $0x8] sm:$0xff] 0.0
        $region40: #{tpu_custom_call.1} parent=31 // pred_fallthru
          _
        %v215 = vld [vmem:[%s1] sm:$0xff]
        %v216 = vld [vmem:[%s1 + $0x8] sm:$0xff]
        %v217 = vld [vmem:[%s1 + $0x10] sm:$0xff]
        %v218 = vld [vmem:[%s1 + $0x18] sm:$0xff]
        %v219 = vld [vmem:[%s1 + $0x20] sm:$0xff]
        %v220 = vld [vmem:[%s1 + $0x28] sm:$0xff]
        %v221 = vld [vmem:[%s2] sm:$0xff]
        %v222 = vld [vmem:[%s2 + $0x8] sm:$0xff]
        %v223 = vld [vmem:[%s2 + $0x10] sm:$0xff]
        %v224 = vld [vmem:[%s2 + $0x18] sm:$0xff]
        %v225 = vld [vmem:[#allocation2] sm:$0xff]
        %v226 = vld [vmem:[#allocation2 + $0x8] sm:$0xff]
        %v227 = vld [vmem:[%s184] sm:$0xff]
        %v228 = vld [vmem:[%s184 + $0x8] sm:$0xff]
        %v229 = vld [vmem:[%s184 + $0x10] sm:$0xff]
        %v230 = vld [vmem:[%s184 + $0x18] sm:$0xff]
        %v231 = vld [vmem:[%s184 + $0x20] sm:$0xff]
        %v232 = vld [vmem:[%s184 + $0x28] sm:$0xff]
        %vm233 = vcmask 130048
        %v235 = vsel %vm233, %v215, 0
        %v238 = vsel %vm233, %v216, 0
        %v241 = vsel %vm233, %v217, 0
        %v244 = vsel %vm233, %v218, 0
        %v247 = vsel %vm233, %v219, 0
        %v250 = vsel %vm233, %v220, 0
        %252 = vmatprep.subr.mxu0 0.0
        %253 = vmatpush1.msra.mxu0 %v225
        %254 = vmatprep.subr.mxu0 0.0
        %255 = vmatpush1.msra.mxu0 %v226
        %256 = vmatprep.subr.mxu0 0.0
        %257 = vmatpush1.msra.mxu0 0.0
        %258 = vmatprep.subr.mxu0 0.0
        %259 = vmatpush1.msra.mxu0 0.0
        %260 = vmatprep.subr.mxu0 0.0
        %261 = vmatpush1.msra.mxu0 0.0
        %262 = vmatprep.subr.mxu0 0.0
        %263 = vmatpush1.msra.mxu0 0.0
        %264 = vmatprep.subr.mxu0 0.0
        %265 = vmatpush1.msra.mxu0 0.0
        %266 = vmatprep.subr.mxu0 0.0
        %267 = vmatpush1.msra.mxu0 0.0
        %268 = vmatprep.subr.mxu0 0.0
        %269 = vmatpush1.msra.mxu0 0.0
        %270 = vmatprep.subr.mxu0 0.0
        %271 = vmatpush1.msra.mxu0 0.0
        %272 = vmatprep.subr.mxu0 0.0
        %273 = vmatpush1.msra.mxu0 0.0
        %274 = vmatprep.subr.mxu0 0.0
        %275 = vmatpush1.msra.mxu0 0.0
        %276 = vmatprep.subr.mxu0 0.0
        %277 = vmatpush1.msra.mxu0 0.0
        %278 = vmatprep.subr.mxu0 0.0
        %279 = vmatpush1.msra.mxu0 0.0
        %280 = vmatprep.subr.mxu0 0.0
        %281 = vmatpush1.msra.mxu0 0.0
        %282 = vmatprep.subr.mxu0 0.0
        %283 = vmatpush1.msra.mxu0 0.0
        %284 = vmatprep.subr.mxu0 0.0
        %285 = vmatpush1.msra.mxu0 0.0
        %286 = vmatprep.subr.mxu0 0.0
        %287 = vmatpush1.msra.mxu0 0.0
        %288 = vmatprep.subr.mxu0 0.0
        %289 = vmatpush1.msra.mxu0 0.0
        %290 = vmatprep.subr.mxu0 0.0
        %291 = vmatpush1.msra.mxu0 0.0
        %292 = vmatprep.subr.mxu0 0.0
        %293 = vmatpush1.msra.mxu0 0.0
        %294 = vmatprep.subr.mxu0 0.0
        %295 = vmatpush1.msra.mxu0 0.0
        %296 = vmatprep.subr.mxu0 0.0
        %297 = vmatpush1.msra.mxu0 0.0
        %298 = vmatprep.subr.mxu0 0.0
        %299 = vmatpush1.msra.mxu0 0.0
        %300 = vmatprep.subr.mxu0 0.0
        %301 = vmatpush1.msra.mxu0 0.0
        %302 = vmatprep.subr.mxu0 0.0
        %303 = vmatpush1.msra.mxu0 0.0
        %304 = vmatprep.subr.mxu0 0.0
        %305 = vmatpush1.msra.mxu0 0.0
        %306 = vmatprep.subr.mxu0 0.0
        %307 = vmatpush1.msra.mxu0 0.0
        %308 = vmatprep.subr.mxu0 0.0
        %309 = vmatpush1.msra.mxu0 0.0
        %310 = vmatprep.subr.mxu0 0.0
        %311 = vmatpush1.msra.mxu0 0.0
        %312 = vmatprep.subr.mxu0 0.0
        %313 = vmatpush1.msra.mxu0 0.0
        %314 = vmatprep.subr.mxu0 0.0
        %315 = vmatpush1.msra.mxu0 0.0
        %316 = vmatprep.mubr.f32.mxu0 0.0
        %317 = vmatmul.mubr.f32.gmra.mrb[0].mxu0 %v235
        %v318 = vpop.f32.mrb[0].mxu0
        %v319 = vadd.f32 0.0, %v318
        %v320 = vpop.f32.mrb[0].mxu0
        %321 = vmatprep.mubr.f32.mxu0 0.0
        %322 = vmatmul.mubr.f32.gmra.mrb[0].mxu0 %v238
        %v323 = vpop.f32.mrb[0].mxu0
        %v324 = vadd.f32 0.0, %v323
        %v325 = vpop.f32.mrb[0].mxu0
        %326 = vmatprep.mubr.f32.mxu0 0.0
        %327 = vmatmul.mubr.f32.gmra.mrb[0].mxu0 %v241
        %v328 = vpop.f32.mrb[0].mxu0
        %v329 = vadd.f32 0.0, %v328
        %v330 = vpop.f32.mrb[0].mxu0
        %331 = vmatprep.mubr.f32.mxu0 0.0
        %332 = vmatmul.mubr.f32.gmra.mrb[0].mxu0 %v244
        %v333 = vpop.f32.mrb[0].mxu0
        %v334 = vadd.f32 0.0, %v333
        %v335 = vpop.f32.mrb[0].mxu0
        %336 = vmatprep.mubr.f32.mxu0 0.0
        %337 = vmatmul.mubr.f32.gmra.mrb[0].mxu0 %v247
        %v338 = vpop.f32.mrb[0].mxu0
        %v339 = vadd.f32 0.0, %v338
        %v340 = vpop.f32.mrb[0].mxu0
        %341 = vmatprep.mubr.f32.mxu0 0.0
        %342 = vmatmul.mubr.f32.gmra.mrb[0].mxu0 %v250
        %v343 = vpop.f32.mrb[0].mxu0
        %v344 = vadd.f32 0.0, %v343
        %v345 = vpop.f32.mrb[0].mxu0
        %346 = vdwg.mxu0
        %v347 = vadd.f32 %v227, %v319
        %v348 = vadd.f32 %v228, %v324
        %v349 = vadd.f32 %v229, %v329
        %v350 = vadd.f32 %v230, %v334
        %v351 = vxor.u32 %v347, 2147483648
        %v352 = vxor.u32 %v348, 2147483648
        %v353 = vmul.f32 %v351, 1.442695
        %v354 = vpow.pop %v353
        %v355 = vmul.f32 %v352, 1.442695
        %v356 = vpow.pop %v355
        %v357 = vadd.f32 %v354, 1.0
        %v358 = vadd.f32 %v356, 1.0
        %v359 = vrcp.pop %v357
        %v360 = vmul.f32 1.0, %v359
        %v361 = vrcp.pop %v358
        %v362 = vmul.f32 1.0, %v361
        %v363 = vxor.u32 %v349, 2147483648
        %v364 = vxor.u32 %v350, 2147483648
        %v365 = vmul.f32 %v363, 1.442695
        %v366 = vpow.pop %v365
        %v367 = vmul.f32 %v364, 1.442695
        %v368 = vpow.pop %v367
        %v369 = vadd.f32 %v366, 1.0
        %v370 = vadd.f32 %v368, 1.0
        %v371 = vrcp.pop %v369
        %v372 = vmul.f32 1.0, %v371
        %v373 = vrcp.pop %v370
        %v374 = vmul.f32 1.0, %v373
        %v375 = vmul.f32 %v360, %v339
        %v376 = vmul.f32 %v362, %v344
        %v377 = vadd.f32 %v231, %v375
        %v378 = vadd.f32 %v232, %v376
        %v379 = vtanh.pop %v377
        %v380 = vtanh.pop %v378
        %vm381 = vcmask 261120
        %v383 = vsel %vm381, %v221, 0
        %v386 = vsel %vm381, %v222, 0
        %v389 = vsel %vm381, %v223, 0
        %v392 = vsel %vm381, %v224, 0
        %394 = vmatprep.subr.mxu0 0.0
        %395 = vmatpush1.msra.mxu0 %v372
        %396 = vmatprep.subr.mxu0 0.0
        %397 = vmatpush1.msra.mxu0 %v374
        %398 = vmatprep.subr.mxu0 0.0
        %399 = vmatpush1.msra.mxu0 %v379
        %400 = vmatprep.subr.mxu0 0.0
        %401 = vmatpush1.msra.mxu0 %v380
        %402 = vmatprep.subr.mxu0 0.0
        %403 = vmatpush1.msra.mxu0 0.0
        %404 = vmatprep.subr.mxu0 0.0
        %405 = vmatpush1.msra.mxu0 0.0
        %406 = vmatprep.subr.mxu0 0.0
        %407 = vmatpush1.msra.mxu0 0.0
        %408 = vmatprep.subr.mxu0 0.0
        %409 = vmatpush1.msra.mxu0 0.0
        %410 = vmatprep.subr.mxu0 0.0
        %411 = vmatpush1.msra.mxu0 0.0
        %412 = vmatprep.subr.mxu0 0.0
        %413 = vmatpush1.msra.mxu0 0.0
        %414 = vmatprep.subr.mxu0 0.0
        %415 = vmatpush1.msra.mxu0 0.0
        %416 = vmatprep.subr.mxu0 0.0
        %417 = vmatpush1.msra.mxu0 0.0
        %418 = vmatprep.subr.mxu0 0.0
        %419 = vmatpush1.msra.mxu0 0.0
        %420 = vmatprep.subr.mxu0 0.0
        %421 = vmatpush1.msra.mxu0 0.0
        %422 = vmatprep.subr.mxu0 0.0
        %423 = vmatpush1.msra.mxu0 0.0
        %424 = vmatprep.subr.mxu0 0.0
        %425 = vmatpush1.msra.mxu0 0.0
        %426 = vmatprep.subr.mxu0 0.0
        %427 = vmatpush1.msra.mxu0 0.0
        %428 = vmatprep.subr.mxu0 0.0
        %429 = vmatpush1.msra.mxu0 0.0
        %430 = vmatprep.subr.mxu0 0.0
        %431 = vmatpush1.msra.mxu0 0.0
        %432 = vmatprep.subr.mxu0 0.0
        %433 = vmatpush1.msra.mxu0 0.0
        %434 = vmatprep.subr.mxu0 0.0
        %435 = vmatpush1.msra.mxu0 0.0
        %436 = vmatprep.subr.mxu0 0.0
        %437 = vmatpush1.msra.mxu0 0.0
        %438 = vmatprep.subr.mxu0 0.0
        %439 = vmatpush1.msra.mxu0 0.0
        %440 = vmatprep.subr.mxu0 0.0
        %441 = vmatpush1.msra.mxu0 0.0
        %442 = vmatprep.subr.mxu0 0.0
        %443 = vmatpush1.msra.mxu0 0.0
        %444 = vmatprep.subr.mxu0 0.0
        %445 = vmatpush1.msra.mxu0 0.0
        %446 = vmatprep.subr.mxu0 0.0
        %447 = vmatpush1.msra.mxu0 0.0
        %448 = vmatprep.subr.mxu0 0.0
        %449 = vmatpush1.msra.mxu0 0.0
        %450 = vmatprep.subr.mxu0 0.0
        %451 = vmatpush1.msra.mxu0 0.0
        %452 = vmatprep.subr.mxu0 0.0
        %453 = vmatpush1.msra.mxu0 0.0
        %454 = vmatprep.subr.mxu0 0.0
        %455 = vmatpush1.msra.mxu0 0.0
        %456 = vmatprep.subr.mxu0 0.0
        %457 = vmatpush1.msra.mxu0 0.0
        %458 = vmatprep.mubr.f32.mxu0 0.0
        %459 = vmatmul.mubr.f32.gmra.mrb[0].mxu0 %v383
        %v460 = vpop.f32.mrb[0].mxu0
        %v461 = vadd.f32 0.0, %v460
        %v462 = vpop.f32.mrb[0].mxu0
        %463 = vmatprep.mubr.f32.mxu0 0.0
        %464 = vmatmul.mubr.f32.gmra.mrb[0].mxu0 %v386
        %v465 = vpop.f32.mrb[0].mxu0
        %v466 = vadd.f32 0.0, %v465
        %v467 = vpop.f32.mrb[0].mxu0
        %468 = vmatprep.mubr.f32.mxu0 0.0
        %469 = vmatmul.mubr.f32.gmra.mrb[0].mxu0 %v389
        %v470 = vpop.f32.mrb[0].mxu0
        %v471 = vadd.f32 0.0, %v470
        %v472 = vpop.f32.mrb[0].mxu0
        %473 = vmatprep.mubr.f32.mxu0 0.0
        %474 = vmatmul.mubr.f32.gmra.mrb[0].mxu0 %v392
        %v475 = vpop.f32.mrb[0].mxu0
        %v476 = vadd.f32 0.0, %v475
        %v477 = vpop.f32.mrb[0].mxu0
        %478 = vdwg.mxu0
        %v479 = vsub.f32 1.0, %v461
        %v480 = vsub.f32 1.0, %v466
        %v481 = vmul.f32 %v479, %v471
        %v482 = vmul.f32 %v480, %v476
        %v483 = vmul.f32 %v461, %v225
        %v484 = vmul.f32 %v466, %v226
        %v485 = vadd.f32 %v481, %v483
        %v486 = vadd.f32 %v482, %v484
        %487 = vst [vmem:[%s206] sm:$0xff] %v485
        %488 = vst [vmem:[%s206 + $0x8] sm:$0xff] %v486
        %s489 = scalar_lea.vmem %s184, 48 [#allocation3]
        %v490 = vld [vmem:[%s489] sm:$0xff]
        %v491 = vld [vmem:[%s489 + $0x8] sm:$0xff]
        %v492 = vld [vmem:[%s489 + $0x10] sm:$0xff]
        %v493 = vld [vmem:[%s489 + $0x18] sm:$0xff]
        %v494 = vld [vmem:[%s489 + $0x20] sm:$0xff]
        %v495 = vld [vmem:[%s489 + $0x28] sm:$0xff]
        %496 = vmatprep.subr.mxu0 0.0
        %497 = vmatpush1.msra.mxu0 %v485
        %498 = vmatprep.subr.mxu0 0.0
        %499 = vmatpush1.msra.mxu0 %v486
        %500 = vmatprep.subr.mxu0 0.0
        %501 = vmatpush1.msra.mxu0 0.0
        %502 = vmatprep.subr.mxu0 0.0
        %503 = vmatpush1.msra.mxu0 0.0
        %504 = vmatprep.subr.mxu0 0.0
        %505 = vmatpush1.msra.mxu0 0.0
        %506 = vmatprep.subr.mxu0 0.0
        %507 = vmatpush1.msra.mxu0 0.0
        %508 = vmatprep.subr.mxu0 0.0
        %509 = vmatpush1.msra.mxu0 0.0
        %510 = vmatprep.subr.mxu0 0.0
        %511 = vmatpush1.msra.mxu0 0.0
        %512 = vmatprep.subr.mxu0 0.0
        %513 = vmatpush1.msra.mxu0 0.0
        %514 = vmatprep.subr.mxu0 0.0
        %515 = vmatpush1.msra.mxu0 0.0
        %516 = vmatprep.subr.mxu0 0.0
        %517 = vmatpush1.msra.mxu0 0.0
        %518 = vmatprep.subr.mxu0 0.0
        %519 = vmatpush1.msra.mxu0 0.0
        %520 = vmatprep.subr.mxu0 0.0
        %521 = vmatpush1.msra.mxu0 0.0
        %522 = vmatprep.subr.mxu0 0.0
        %523 = vmatpush1.msra.mxu0 0.0
        %524 = vmatprep.subr.mxu0 0.0
        %525 = vmatpush1.msra.mxu0 0.0
        %526 = vmatprep.subr.mxu0 0.0
        %527 = vmatpush1.msra.mxu0 0.0
        %528 = vmatprep.subr.mxu0 0.0
        %529 = vmatpush1.msra.mxu0 0.0
        %530 = vmatprep.subr.mxu0 0.0
        %531 = vmatpush1.msra.mxu0 0.0
        %532 = vmatprep.subr.mxu0 0.0
        %533 = vmatpush1.msra.mxu0 0.0
        %534 = vmatprep.subr.mxu0 0.0
        %535 = vmatpush1.msra.mxu0 0.0
        %536 = vmatprep.subr.mxu0 0.0
        %537 = vmatpush1.msra.mxu0 0.0
        %538 = vmatprep.subr.mxu0 0.0
        %539 = vmatpush1.msra.mxu0 0.0
        %540 = vmatprep.subr.mxu0 0.0
        %541 = vmatpush1.msra.mxu0 0.0
        %542 = vmatprep.subr.mxu0 0.0
        %543 = vmatpush1.msra.mxu0 0.0
        %544 = vmatprep.subr.mxu0 0.0
        %545 = vmatpush1.msra.mxu0 0.0
        %546 = vmatprep.subr.mxu0 0.0
        %547 = vmatpush1.msra.mxu0 0.0
        %548 = vmatprep.subr.mxu0 0.0
        %549 = vmatpush1.msra.mxu0 0.0
        %550 = vmatprep.subr.mxu0 0.0
        %551 = vmatpush1.msra.mxu0 0.0
        %552 = vmatprep.subr.mxu0 0.0
        %553 = vmatpush1.msra.mxu0 0.0
        %554 = vmatprep.subr.mxu0 0.0
        %555 = vmatpush1.msra.mxu0 0.0
        %556 = vmatprep.subr.mxu0 0.0
        %557 = vmatpush1.msra.mxu0 0.0
        %558 = vmatprep.subr.mxu0 0.0
        %559 = vmatpush1.msra.mxu0 0.0
        %560 = vmatprep.mubr.f32.mxu0 0.0
        %561 = vmatmul.mubr.f32.gmra.mrb[0].mxu0 %v235
        %v562 = vpop.f32.mrb[0].mxu0
        %v563 = vadd.f32 0.0, %v562
        %v564 = vpop.f32.mrb[0].mxu0
        %565 = vmatprep.mubr.f32.mxu0 0.0
        %566 = vmatmul.mubr.f32.gmra.mrb[0].mxu0 %v238
        %v567 = vpop.f32.mrb[0].mxu0
        %v568 = vadd.f32 0.0, %v567
        %v569 = vpop.f32.mrb[0].mxu0
        %570 = vmatprep.mubr.f32.mxu0 0.0
        %571 = vmatmul.mubr.f32.gmra.mrb[0].mxu0 %v241
        %v572 = vpop.f32.mrb[0].mxu0
        %v573 = vadd.f32 0.0, %v572
        %v574 = vpop.f32.mrb[0].mxu0
        %575 = vmatprep.mubr.f32.mxu0 0.0
        %576 = vmatmul.mubr.f32.gmra.mrb[0].mxu0 %v244
        %v577 = vpop.f32.mrb[0].mxu0
        %v578 = vadd.f32 0.0, %v577
        %v579 = vpop.f32.mrb[0].mxu0
        %580 = vmatprep.mubr.f32.mxu0 0.0
        %581 = vmatmul.mubr.f32.gmra.mrb[0].mxu0 %v247
        %v582 = vpop.f32.mrb[0].mxu0
        %v583 = vadd.f32 0.0, %v582
        %v584 = vpop.f32.mrb[0].mxu0
        %585 = vmatprep.mubr.f32.mxu0 0.0
        %586 = vmatmul.mubr.f32.gmra.mrb[0].mxu0 %v250
        %v587 = vpop.f32.mrb[0].mxu0
        %v588 = vadd.f32 0.0, %v587
        %v589 = vpop.f32.mrb[0].mxu0
        %590 = vdwg.mxu0
        %v591 = vadd.f32 %v490, %v563
        %v592 = vadd.f32 %v491, %v568
        %v593 = vadd.f32 %v492, %v573
        %v594 = vadd.f32 %v493, %v578
        %v595 = vxor.u32 %v591, 2147483648
        %v596 = vxor.u32 %v592, 2147483648
        %v597 = vmul.f32 %v595, 1.442695
        %v598 = vpow.pop %v597
        %v599 = vmul.f32 %v596, 1.442695
        %v600 = vpow.pop %v599
        %v601 = vadd.f32 %v598, 1.0
        %v602 = vadd.f32 %v600, 1.0
        %v603 = vrcp.pop %v601
        %v604 = vmul.f32 1.0, %v603
        %v605 = vrcp.pop %v602
        %v606 = vmul.f32 1.0, %v605
        %v607 = vxor.u32 %v593, 2147483648
        %v608 = vxor.u32 %v594, 2147483648
        %v609 = vmul.f32 %v607, 1.442695
        %v610 = vpow.pop %v609
        %v611 = vmul.f32 %v608, 1.442695
        %v612 = vpow.pop %v611
        %v613 = vadd.f32 %v610, 1.0
        %v614 = vadd.f32 %v612, 1.0
        %v615 = vrcp.pop %v613
        %v616 = vmul.f32 1.0, %v615
        %v617 = vrcp.pop %v614
        %v618 = vmul.f32 1.0, %v617
        %v619 = vmul.f32 %v604, %v583
        %v620 = vmul.f32 %v606, %v588
        %v621 = vadd.f32 %v494, %v619
        %v622 = vadd.f32 %v495, %v620
        %v623 = vtanh.pop %v621
        %v624 = vtanh.pop %v622
        %625 = vmatprep.subr.mxu0 0.0
        %626 = vmatpush1.msra.mxu0 %v616
        %627 = vmatprep.subr.mxu0 0.0
        %628 = vmatpush1.msra.mxu0 %v618
        %629 = vmatprep.subr.mxu0 0.0
        %630 = vmatpush1.msra.mxu0 %v623
        %631 = vmatprep.subr.mxu0 0.0
        %632 = vmatpush1.msra.mxu0 %v624
        %633 = vmatprep.subr.mxu0 0.0
        %634 = vmatpush1.msra.mxu0 0.0
        %635 = vmatprep.subr.mxu0 0.0
        %636 = vmatpush1.msra.mxu0 0.0
        %637 = vmatprep.subr.mxu0 0.0
        %638 = vmatpush1.msra.mxu0 0.0
        %639 = vmatprep.subr.mxu0 0.0
        %640 = vmatpush1.msra.mxu0 0.0
        %641 = vmatprep.subr.mxu0 0.0
        %642 = vmatpush1.msra.mxu0 0.0
        %643 = vmatprep.subr.mxu0 0.0
        %644 = vmatpush1.msra.mxu0 0.0
        %645 = vmatprep.subr.mxu0 0.0
        %646 = vmatpush1.msra.mxu0 0.0
        %647 = vmatprep.subr.mxu0 0.0
        %648 = vmatpush1.msra.mxu0 0.0
        %649 = vmatprep.subr.mxu0 0.0
        %650 = vmatpush1.msra.mxu0 0.0
        %651 = vmatprep.subr.mxu0 0.0
        %652 = vmatpush1.msra.mxu0 0.0
        %653 = vmatprep.subr.mxu0 0.0
        %654 = vmatpush1.msra.mxu0 0.0
        %655 = vmatprep.subr.mxu0 0.0
        %656 = vmatpush1.msra.mxu0 0.0
        %657 = vmatprep.subr.mxu0 0.0
        %658 = vmatpush1.msra.mxu0 0.0
        %659 = vmatprep.subr.mxu0 0.0
        %660 = vmatpush1.msra.mxu0 0.0
        %661 = vmatprep.subr.mxu0 0.0
        %662 = vmatpush1.msra.mxu0 0.0
        %663 = vmatprep.subr.mxu0 0.0
        %664 = vmatpush1.msra.mxu0 0.0
        %665 = vmatprep.subr.mxu0 0.0
        %666 = vmatpush1.msra.mxu0 0.0
        %667 = vmatprep.subr.mxu0 0.0
        %668 = vmatpush1.msra.mxu0 0.0
        %669 = vmatprep.subr.mxu0 0.0
        %670 = vmatpush1.msra.mxu0 0.0
        %671 = vmatprep.subr.mxu0 0.0
        %672 = vmatpush1.msra.mxu0 0.0
        %673 = vmatprep.subr.mxu0 0.0
        %674 = vmatpush1.msra.mxu0 0.0
        %675 = vmatprep.subr.mxu0 0.0
        %676 = vmatpush1.msra.mxu0 0.0
        %677 = vmatprep.subr.mxu0 0.0
        %678 = vmatpush1.msra.mxu0 0.0
        %679 = vmatprep.subr.mxu0 0.0
        %680 = vmatpush1.msra.mxu0 0.0
        %681 = vmatprep.subr.mxu0 0.0
        %682 = vmatpush1.msra.mxu0 0.0
        %683 = vmatprep.subr.mxu0 0.0
        %684 = vmatpush1.msra.mxu0 0.0
        %685 = vmatprep.subr.mxu0 0.0
        %686 = vmatpush1.msra.mxu0 0.0
        %687 = vmatprep.subr.mxu0 0.0
        %688 = vmatpush1.msra.mxu0 0.0
        %689 = vmatprep.mubr.f32.mxu0 0.0
        %690 = vmatmul.mubr.f32.gmra.mrb[0].mxu0 %v383
        %v691 = vpop.f32.mrb[0].mxu0
        %v692 = vadd.f32 0.0, %v691
        %v693 = vpop.f32.mrb[0].mxu0
        %694 = vmatprep.mubr.f32.mxu0 0.0
        %695 = vmatmul.mubr.f32.gmra.mrb[0].mxu0 %v386
        %v696 = vpop.f32.mrb[0].mxu0
        %v697 = vadd.f32 0.0, %v696
        %v698 = vpop.f32.mrb[0].mxu0
        %699 = vmatprep.mubr.f32.mxu0 0.0
        %700 = vmatmul.mubr.f32.gmra.mrb[0].mxu0 %v389
        %v701 = vpop.f32.mrb[0].mxu0
        %v702 = vadd.f32 0.0, %v701
        %v703 = vpop.f32.mrb[0].mxu0
        %704 = vmatprep.mubr.f32.mxu0 0.0
        %705 = vmatmul.mubr.f32.gmra.mrb[0].mxu0 %v392
        %v706 = vpop.f32.mrb[0].mxu0
        %v707 = vadd.f32 0.0, %v706
        %v708 = vpop.f32.mrb[0].mxu0
        %709 = vdwg.mxu0
        %v710 = vsub.f32 1.0, %v692
        %v711 = vsub.f32 1.0, %v697
        %v712 = vmul.f32 %v710, %v702
        %v713 = vmul.f32 %v711, %v707
        %v714 = vmul.f32 %v692, %v485
        %v715 = vmul.f32 %v697, %v486
        %v716 = vadd.f32 %v712, %v714
        %v717 = vadd.f32 %v713, %v715
        %s718 = scalar_lea.vmem %s206, 16 [#allocation6]
        %719 = vst [vmem:[%s718] sm:$0xff] %v716
        %720 = vst [vmem:[%s718 + $0x8] sm:$0xff] %v717
        %s721 = scalar_lea.vmem %s184, 96 [#allocation3]
        %v722 = vld [vmem:[%s721] sm:$0xff]
        %v723 = vld [vmem:[%s721 + $0x8] sm:$0xff]
        %v724 = vld [vmem:[%s721 + $0x10] sm:$0xff]
        %v725 = vld [vmem:[%s721 + $0x18] sm:$0xff]
        %v726 = vld [vmem:[%s721 + $0x20] sm:$0xff]
        %v727 = vld [vmem:[%s721 + $0x28] sm:$0xff]
        %728 = vmatprep.subr.mxu0 0.0
        %729 = vmatpush1.msra.mxu0 %v716
        %730 = vmatprep.subr.mxu0 0.0
        %731 = vmatpush1.msra.mxu0 %v717
        %732 = vmatprep.subr.mxu0 0.0
        %733 = vmatpush1.msra.mxu0 0.0
        %734 = vmatprep.subr.mxu0 0.0
        %735 = vmatpush1.msra.mxu0 0.0
        %736 = vmatprep.subr.mxu0 0.0
        %737 = vmatpush1.msra.mxu0 0.0
        %738 = vmatprep.subr.mxu0 0.0
        %739 = vmatpush1.msra.mxu0 0.0
        %740 = vmatprep.subr.mxu0 0.0
        %741 = vmatpush1.msra.mxu0 0.0
        %742 = vmatprep.subr.mxu0 0.0
        %743 = vmatpush1.msra.mxu0 0.0
        %744 = vmatprep.subr.mxu0 0.0
        %745 = vmatpush1.msra.mxu0 0.0
        %746 = vmatprep.subr.mxu0 0.0
        %747 = vmatpush1.msra.mxu0 0.0
        %748 = vmatprep.subr.mxu0 0.0
        %749 = vmatpush1.msra.mxu0 0.0
        %750 = vmatprep.subr.mxu0 0.0
        %751 = vmatpush1.msra.mxu0 0.0
        %752 = vmatprep.subr.mxu0 0.0
        %753 = vmatpush1.msra.mxu0 0.0
        %754 = vmatprep.subr.mxu0 0.0
        %755 = vmatpush1.msra.mxu0 0.0
        %756 = vmatprep.subr.mxu0 0.0
        %757 = vmatpush1.msra.mxu0 0.0
        %758 = vmatprep.subr.mxu0 0.0
        %759 = vmatpush1.msra.mxu0 0.0
        %760 = vmatprep.subr.mxu0 0.0
        %761 = vmatpush1.msra.mxu0 0.0
        %762 = vmatprep.subr.mxu0 0.0
        %763 = vmatpush1.msra.mxu0 0.0
        %764 = vmatprep.subr.mxu0 0.0
        %765 = vmatpush1.msra.mxu0 0.0
        %766 = vmatprep.subr.mxu0 0.0
        %767 = vmatpush1.msra.mxu0 0.0
        %768 = vmatprep.subr.mxu0 0.0
        %769 = vmatpush1.msra.mxu0 0.0
        %770 = vmatprep.subr.mxu0 0.0
        %771 = vmatpush1.msra.mxu0 0.0
        %772 = vmatprep.subr.mxu0 0.0
        %773 = vmatpush1.msra.mxu0 0.0
        %774 = vmatprep.subr.mxu0 0.0
        %775 = vmatpush1.msra.mxu0 0.0
        %776 = vmatprep.subr.mxu0 0.0
        %777 = vmatpush1.msra.mxu0 0.0
        %778 = vmatprep.subr.mxu0 0.0
        %779 = vmatpush1.msra.mxu0 0.0
        %780 = vmatprep.subr.mxu0 0.0
        %781 = vmatpush1.msra.mxu0 0.0
        %782 = vmatprep.subr.mxu0 0.0
        %783 = vmatpush1.msra.mxu0 0.0
        %784 = vmatprep.subr.mxu0 0.0
        %785 = vmatpush1.msra.mxu0 0.0
        %786 = vmatprep.subr.mxu0 0.0
        %787 = vmatpush1.msra.mxu0 0.0
        %788 = vmatprep.subr.mxu0 0.0
        %789 = vmatpush1.msra.mxu0 0.0
        %790 = vmatprep.subr.mxu0 0.0
        %791 = vmatpush1.msra.mxu0 0.0
        %792 = vmatprep.mubr.f32.mxu0 0.0
        %793 = vmatmul.mubr.f32.gmra.mrb[0].mxu0 %v235
        %v794 = vpop.f32.mrb[0].mxu0
        %v795 = vadd.f32 0.0, %v794
        %v796 = vpop.f32.mrb[0].mxu0
        %797 = vmatprep.mubr.f32.mxu0 0.0
        %798 = vmatmul.mubr.f32.gmra.mrb[0].mxu0 %v238
        %v799 = vpop.f32.mrb[0].mxu0
        %v800 = vadd.f32 0.0, %v799
        %v801 = vpop.f32.mrb[0].mxu0
        %802 = vmatprep.mubr.f32.mxu0 0.0
        %803 = vmatmul.mubr.f32.gmra.mrb[0].mxu0 %v241
        %v804 = vpop.f32.mrb[0].mxu0
        %v805 = vadd.f32 0.0, %v804
        %v806 = vpop.f32.mrb[0].mxu0
        %807 = vmatprep.mubr.f32.mxu0 0.0
        %808 = vmatmul.mubr.f32.gmra.mrb[0].mxu0 %v244
        %v809 = vpop.f32.mrb[0].mxu0
        %v810 = vadd.f32 0.0, %v809
        %v811 = vpop.f32.mrb[0].mxu0
        %812 = vmatprep.mubr.f32.mxu0 0.0
        %813 = vmatmul.mubr.f32.gmra.mrb[0].mxu0 %v247
        %v814 = vpop.f32.mrb[0].mxu0
        %v815 = vadd.f32 0.0, %v814
        %v816 = vpop.f32.mrb[0].mxu0
        %817 = vmatprep.mubr.f32.mxu0 0.0
        %818 = vmatmul.mubr.f32.gmra.mrb[0].mxu0 %v250
        %v819 = vpop.f32.mrb[0].mxu0
        %v820 = vadd.f32 0.0, %v819
        %v821 = vpop.f32.mrb[0].mxu0
        %822 = vdwg.mxu0
        %v823 = vadd.f32 %v722, %v795
        %v824 = vadd.f32 %v723, %v800
        %v825 = vadd.f32 %v724, %v805
        %v826 = vadd.f32 %v725, %v810
        %v827 = vxor.u32 %v823, 2147483648
        %v828 = vxor.u32 %v824, 2147483648
        %v829 = vmul.f32 %v827, 1.442695
        %v830 = vpow.pop %v829
        %v831 = vmul.f32 %v828, 1.442695
        %v832 = vpow.pop %v831
        %v833 = vadd.f32 %v830, 1.0
        %v834 = vadd.f32 %v832, 1.0
        %v835 = vrcp.pop %v833
        %v836 = vmul.f32 1.0, %v835
        %v837 = vrcp.pop %v834
        %v838 = vmul.f32 1.0, %v837
        %v839 = vxor.u32 %v825, 2147483648
        %v840 = vxor.u32 %v826, 2147483648
        %v841 = vmul.f32 %v839, 1.442695
        %v842 = vpow.pop %v841
        %v843 = vmul.f32 %v840, 1.442695
        %v844 = vpow.pop %v843
        %v845 = vadd.f32 %v842, 1.0
        %v846 = vadd.f32 %v844, 1.0
        %v847 = vrcp.pop %v845
        %v848 = vmul.f32 1.0, %v847
        %v849 = vrcp.pop %v846
        %v850 = vmul.f32 1.0, %v849
        %v851 = vmul.f32 %v836, %v815
        %v852 = vmul.f32 %v838, %v820
        %v853 = vadd.f32 %v726, %v851
        %v854 = vadd.f32 %v727, %v852
        %v855 = vtanh.pop %v853
        %v856 = vtanh.pop %v854
        %857 = vmatprep.subr.mxu0 0.0
        %858 = vmatpush1.msra.mxu0 %v848
        %859 = vmatprep.subr.mxu0 0.0
        %860 = vmatpush1.msra.mxu0 %v850
        %861 = vmatprep.subr.mxu0 0.0
        %862 = vmatpush1.msra.mxu0 %v855
        %863 = vmatprep.subr.mxu0 0.0
        %864 = vmatpush1.msra.mxu0 %v856
        %865 = vmatprep.subr.mxu0 0.0
        %866 = vmatpush1.msra.mxu0 0.0
        %867 = vmatprep.subr.mxu0 0.0
        %868 = vmatpush1.msra.mxu0 0.0
        %869 = vmatprep.subr.mxu0 0.0
        %870 = vmatpush1.msra.mxu0 0.0
        %871 = vmatprep.subr.mxu0 0.0
        %872 = vmatpush1.msra.mxu0 0.0
        %873 = vmatprep.subr.mxu0 0.0
        %874 = vmatpush1.msra.mxu0 0.0
        %875 = vmatprep.subr.mxu0 0.0
        %876 = vmatpush1.msra.mxu0 0.0
        %877 = vmatprep.subr.mxu0 0.0
        %878 = vmatpush1.msra.mxu0 0.0
        %879 = vmatprep.subr.mxu0 0.0
        %880 = vmatpush1.msra.mxu0 0.0
        %881 = vmatprep.subr.mxu0 0.0
        %882 = vmatpush1.msra.mxu0 0.0
        %883 = vmatprep.subr.mxu0 0.0
        %884 = vmatpush1.msra.mxu0 0.0
        %885 = vmatprep.subr.mxu0 0.0
        %886 = vmatpush1.msra.mxu0 0.0
        %887 = vmatprep.subr.mxu0 0.0
        %888 = vmatpush1.msra.mxu0 0.0
        %889 = vmatprep.subr.mxu0 0.0
        %890 = vmatpush1.msra.mxu0 0.0
        %891 = vmatprep.subr.mxu0 0.0
        %892 = vmatpush1.msra.mxu0 0.0
        %893 = vmatprep.subr.mxu0 0.0
        %894 = vmatpush1.msra.mxu0 0.0
        %895 = vmatprep.subr.mxu0 0.0
        %896 = vmatpush1.msra.mxu0 0.0
        %897 = vmatprep.subr.mxu0 0.0
        %898 = vmatpush1.msra.mxu0 0.0
        %899 = vmatprep.subr.mxu0 0.0
        %900 = vmatpush1.msra.mxu0 0.0
        %901 = vmatprep.subr.mxu0 0.0
        %902 = vmatpush1.msra.mxu0 0.0
        %903 = vmatprep.subr.mxu0 0.0
        %904 = vmatpush1.msra.mxu0 0.0
        %905 = vmatprep.subr.mxu0 0.0
        %906 = vmatpush1.msra.mxu0 0.0
        %907 = vmatprep.subr.mxu0 0.0
        %908 = vmatpush1.msra.mxu0 0.0
        %909 = vmatprep.subr.mxu0 0.0
        %910 = vmatpush1.msra.mxu0 0.0
        %911 = vmatprep.subr.mxu0 0.0
        %912 = vmatpush1.msra.mxu0 0.0
        %913 = vmatprep.subr.mxu0 0.0
        %914 = vmatpush1.msra.mxu0 0.0
        %915 = vmatprep.subr.mxu0 0.0
        %916 = vmatpush1.msra.mxu0 0.0
        %917 = vmatprep.subr.mxu0 0.0
        %918 = vmatpush1.msra.mxu0 0.0
        %919 = vmatprep.subr.mxu0 0.0
        %920 = vmatpush1.msra.mxu0 0.0
        %921 = vmatprep.mubr.f32.mxu0 0.0
        %922 = vmatmul.mubr.f32.gmra.mrb[0].mxu0 %v383
        %v923 = vpop.f32.mrb[0].mxu0
        %v924 = vadd.f32 0.0, %v923
        %v925 = vpop.f32.mrb[0].mxu0
        %926 = vmatprep.mubr.f32.mxu0 0.0
        %927 = vmatmul.mubr.f32.gmra.mrb[0].mxu0 %v386
        %v928 = vpop.f32.mrb[0].mxu0
        %v929 = vadd.f32 0.0, %v928
        %v930 = vpop.f32.mrb[0].mxu0
        %931 = vmatprep.mubr.f32.mxu0 0.0
        %932 = vmatmul.mubr.f32.gmra.mrb[0].mxu0 %v389
        %v933 = vpop.f32.mrb[0].mxu0
        %v934 = vadd.f32 0.0, %v933
        %v935 = vpop.f32.mrb[0].mxu0
        %936 = vmatprep.mubr.f32.mxu0 0.0
        %937 = vmatmul.mubr.f32.gmra.mrb[0].mxu0 %v392
        %v938 = vpop.f32.mrb[0].mxu0
        %v939 = vadd.f32 0.0, %v938
        %v940 = vpop.f32.mrb[0].mxu0
        %941 = vdwg.mxu0
        %v942 = vsub.f32 1.0, %v924
        %v943 = vsub.f32 1.0, %v929
        %v944 = vmul.f32 %v942, %v934
        %v945 = vmul.f32 %v943, %v939
        %v946 = vmul.f32 %v924, %v716
        %v947 = vmul.f32 %v929, %v717
        %v948 = vadd.f32 %v944, %v946
        %v949 = vadd.f32 %v945, %v947
        %s950 = scalar_lea.vmem %s206, 32 [#allocation6]
        %951 = vst [vmem:[%s950] sm:$0xff] %v948
        %952 = vst [vmem:[%s950 + $0x8] sm:$0xff] %v949
        %s953 = scalar_lea.vmem %s184, 144 [#allocation3]
        %v954 = vld [vmem:[%s953] sm:$0xff]
        %v955 = vld [vmem:[%s953 + $0x8] sm:$0xff]
        %v956 = vld [vmem:[%s953 + $0x10] sm:$0xff]
        %v957 = vld [vmem:[%s953 + $0x18] sm:$0xff]
        %v958 = vld [vmem:[%s953 + $0x20] sm:$0xff]
        %v959 = vld [vmem:[%s953 + $0x28] sm:$0xff]
        %960 = vmatprep.subr.mxu0 0.0
        %961 = vmatpush1.msra.mxu0 %v948
        %962 = vmatprep.subr.mxu0 0.0
        %963 = vmatpush1.msra.mxu0 %v949
        %964 = vmatprep.subr.mxu0 0.0
        %965 = vmatpush1.msra.mxu0 0.0
        %966 = vmatprep.subr.mxu0 0.0
        %967 = vmatpush1.msra.mxu0 0.0
        %968 = vmatprep.subr.mxu0 0.0
        %969 = vmatpush1.msra.mxu0 0.0
        %970 = vmatprep.subr.mxu0 0.0
        %971 = vmatpush1.msra.mxu0 0.0
        %972 = vmatprep.subr.mxu0 0.0
        %973 = vmatpush1.msra.mxu0 0.0
        %974 = vmatprep.subr.mxu0 0.0
        %975 = vmatpush1.msra.mxu0 0.0
        %976 = vmatprep.subr.mxu0 0.0
        %977 = vmatpush1.msra.mxu0 0.0
        %978 = vmatprep.subr.mxu0 0.0
        %979 = vmatpush1.msra.mxu0 0.0
        %980 = vmatprep.subr.mxu0 0.0
        %981 = vmatpush1.msra.mxu0 0.0
        %982 = vmatprep.subr.mxu0 0.0
        %983 = vmatpush1.msra.mxu0 0.0
        %984 = vmatprep.subr.mxu0 0.0
        %985 = vmatpush1.msra.mxu0 0.0
        %986 = vmatprep.subr.mxu0 0.0
        %987 = vmatpush1.msra.mxu0 0.0
        %988 = vmatprep.subr.mxu0 0.0
        %989 = vmatpush1.msra.mxu0 0.0
        %990 = vmatprep.subr.mxu0 0.0
        %991 = vmatpush1.msra.mxu0 0.0
        %992 = vmatprep.subr.mxu0 0.0
        %993 = vmatpush1.msra.mxu0 0.0
        %994 = vmatprep.subr.mxu0 0.0
        %995 = vmatpush1.msra.mxu0 0.0
        %996 = vmatprep.subr.mxu0 0.0
        %997 = vmatpush1.msra.mxu0 0.0
        %998 = vmatprep.subr.mxu0 0.0
        %999 = vmatpush1.msra.mxu0 0.0
        %1000 = vmatprep.subr.mxu0 0.0
        %1001 = vmatpush1.msra.mxu0 0.0
        %1002 = vmatprep.subr.mxu0 0.0
        %1003 = vmatpush1.msra.mxu0 0.0
        %1004 = vmatprep.subr.mxu0 0.0
        %1005 = vmatpush1.msra.mxu0 0.0
        %1006 = vmatprep.subr.mxu0 0.0
        %1007 = vmatpush1.msra.mxu0 0.0
        %1008 = vmatprep.subr.mxu0 0.0
        %1009 = vmatpush1.msra.mxu0 0.0
        %1010 = vmatprep.subr.mxu0 0.0
        %1011 = vmatpush1.msra.mxu0 0.0
        %1012 = vmatprep.subr.mxu0 0.0
        %1013 = vmatpush1.msra.mxu0 0.0
        %1014 = vmatprep.subr.mxu0 0.0
        %1015 = vmatpush1.msra.mxu0 0.0
        %1016 = vmatprep.subr.mxu0 0.0
        %1017 = vmatpush1.msra.mxu0 0.0
        %1018 = vmatprep.subr.mxu0 0.0
        %1019 = vmatpush1.msra.mxu0 0.0
        %1020 = vmatprep.subr.mxu0 0.0
        %1021 = vmatpush1.msra.mxu0 0.0
        %1022 = vmatprep.subr.mxu0 0.0
        %1023 = vmatpush1.msra.mxu0 0.0
        %1024 = vmatprep.mubr.f32.mxu0 0.0
        %1025 = vmatmul.mubr.f32.gmra.mrb[0].mxu0 %v235
        %v1026 = vpop.f32.mrb[0].mxu0
        %v1027 = vadd.f32 0.0, %v1026
        %v1028 = vpop.f32.mrb[0].mxu0
        %1029 = vmatprep.mubr.f32.mxu0 0.0
        %1030 = vmatmul.mubr.f32.gmra.mrb[0].mxu0 %v238
        %v1031 = vpop.f32.mrb[0].mxu0
        %v1032 = vadd.f32 0.0, %v1031
        %v1033 = vpop.f32.mrb[0].mxu0
        %1034 = vmatprep.mubr.f32.mxu0 0.0
        %1035 = vmatmul.mubr.f32.gmra.mrb[0].mxu0 %v241
        %v1036 = vpop.f32.mrb[0].mxu0
        %v1037 = vadd.f32 0.0, %v1036
        %v1038 = vpop.f32.mrb[0].mxu0
        %1039 = vmatprep.mubr.f32.mxu0 0.0
        %1040 = vmatmul.mubr.f32.gmra.mrb[0].mxu0 %v244
        %v1041 = vpop.f32.mrb[0].mxu0
        %v1042 = vadd.f32 0.0, %v1041
        %v1043 = vpop.f32.mrb[0].mxu0
        %1044 = vmatprep.mubr.f32.mxu0 0.0
        %1045 = vmatmul.mubr.f32.gmra.mrb[0].mxu0 %v247
        %v1046 = vpop.f32.mrb[0].mxu0
        %v1047 = vadd.f32 0.0, %v1046
        %v1048 = vpop.f32.mrb[0].mxu0
        %1049 = vmatprep.mubr.f32.mxu0 0.0
        %1050 = vmatmul.mubr.f32.gmra.mrb[0].mxu0 %v250
        %v1051 = vpop.f32.mrb[0].mxu0
        %v1052 = vadd.f32 0.0, %v1051
        %v1053 = vpop.f32.mrb[0].mxu0
        %1054 = vdwg.mxu0
        %v1055 = vadd.f32 %v954, %v1027
        %v1056 = vadd.f32 %v955, %v1032
        %v1057 = vadd.f32 %v956, %v1037
        %v1058 = vadd.f32 %v957, %v1042
        %v1059 = vxor.u32 %v1055, 2147483648
        %v1060 = vxor.u32 %v1056, 2147483648
        %v1061 = vmul.f32 %v1059, 1.442695
        %v1062 = vpow.pop %v1061
        %v1063 = vmul.f32 %v1060, 1.442695
        %v1064 = vpow.pop %v1063
        %v1065 = vadd.f32 %v1062, 1.0
        %v1066 = vadd.f32 %v1064, 1.0
        %v1067 = vrcp.pop %v1065
        %v1068 = vmul.f32 1.0, %v1067
        %v1069 = vrcp.pop %v1066
        %v1070 = vmul.f32 1.0, %v1069
        %v1071 = vxor.u32 %v1057, 2147483648
        %v1072 = vxor.u32 %v1058, 2147483648
        %v1073 = vmul.f32 %v1071, 1.442695
        %v1074 = vpow.pop %v1073
        %v1075 = vmul.f32 %v1072, 1.442695
        %v1076 = vpow.pop %v1075
        %v1077 = vadd.f32 %v1074, 1.0
        %v1078 = vadd.f32 %v1076, 1.0
        %v1079 = vrcp.pop %v1077
        %v1080 = vmul.f32 1.0, %v1079
        %v1081 = vrcp.pop %v1078
        %v1082 = vmul.f32 1.0, %v1081
        %v1083 = vmul.f32 %v1068, %v1047
        %v1084 = vmul.f32 %v1070, %v1052
        %v1085 = vadd.f32 %v958, %v1083
        %v1086 = vadd.f32 %v959, %v1084
        %v1087 = vtanh.pop %v1085
        %v1088 = vtanh.pop %v1086
        %1089 = vmatprep.subr.mxu0 0.0
        %1090 = vmatpush1.msra.mxu0 %v1080
        %1091 = vmatprep.subr.mxu0 0.0
        %1092 = vmatpush1.msra.mxu0 %v1082
        %1093 = vmatprep.subr.mxu0 0.0
        %1094 = vmatpush1.msra.mxu0 %v1087
        %1095 = vmatprep.subr.mxu0 0.0
        %1096 = vmatpush1.msra.mxu0 %v1088
        %1097 = vmatprep.subr.mxu0 0.0
        %1098 = vmatpush1.msra.mxu0 0.0
        %1099 = vmatprep.subr.mxu0 0.0
        %1100 = vmatpush1.msra.mxu0 0.0
        %1101 = vmatprep.subr.mxu0 0.0
        %1102 = vmatpush1.msra.mxu0 0.0
        %1103 = vmatprep.subr.mxu0 0.0
        %1104 = vmatpush1.msra.mxu0 0.0
        %1105 = vmatprep.subr.mxu0 0.0
        %1106 = vmatpush1.msra.mxu0 0.0
        %1107 = vmatprep.subr.mxu0 0.0
        %1108 = vmatpush1.msra.mxu0 0.0
        %1109 = vmatprep.subr.mxu0 0.0
        %1110 = vmatpush1.msra.mxu0 0.0
        %1111 = vmatprep.subr.mxu0 0.0
        %1112 = vmatpush1.msra.mxu0 0.0
        %1113 = vmatprep.subr.mxu0 0.0
        %1114 = vmatpush1.msra.mxu0 0.0
        %1115 = vmatprep.subr.mxu0 0.0
        %1116 = vmatpush1.msra.mxu0 0.0
        %1117 = vmatprep.subr.mxu0 0.0
        %1118 = vmatpush1.msra.mxu0 0.0
        %1119 = vmatprep.subr.mxu0 0.0
        %1120 = vmatpush1.msra.mxu0 0.0
        %1121 = vmatprep.subr.mxu0 0.0
        %1122 = vmatpush1.msra.mxu0 0.0
        %1123 = vmatprep.subr.mxu0 0.0
        %1124 = vmatpush1.msra.mxu0 0.0
        %1125 = vmatprep.subr.mxu0 0.0
        %1126 = vmatpush1.msra.mxu0 0.0
        %1127 = vmatprep.subr.mxu0 0.0
        %1128 = vmatpush1.msra.mxu0 0.0
        %1129 = vmatprep.subr.mxu0 0.0
        %1130 = vmatpush1.msra.mxu0 0.0
        %1131 = vmatprep.subr.mxu0 0.0
        %1132 = vmatpush1.msra.mxu0 0.0
        %1133 = vmatprep.subr.mxu0 0.0
        %1134 = vmatpush1.msra.mxu0 0.0
        %1135 = vmatprep.subr.mxu0 0.0
        %1136 = vmatpush1.msra.mxu0 0.0
        %1137 = vmatprep.subr.mxu0 0.0
        %1138 = vmatpush1.msra.mxu0 0.0
        %1139 = vmatprep.subr.mxu0 0.0
        %1140 = vmatpush1.msra.mxu0 0.0
        %1141 = vmatprep.subr.mxu0 0.0
        %1142 = vmatpush1.msra.mxu0 0.0
        %1143 = vmatprep.subr.mxu0 0.0
        %1144 = vmatpush1.msra.mxu0 0.0
        %1145 = vmatprep.subr.mxu0 0.0
        %1146 = vmatpush1.msra.mxu0 0.0
        %1147 = vmatprep.subr.mxu0 0.0
        %1148 = vmatpush1.msra.mxu0 0.0
        %1149 = vmatprep.subr.mxu0 0.0
        %1150 = vmatpush1.msra.mxu0 0.0
        %1151 = vmatprep.subr.mxu0 0.0
        %1152 = vmatpush1.msra.mxu0 0.0
        %1153 = vmatprep.mubr.f32.mxu0 0.0
        %1154 = vmatmul.mubr.f32.gmra.mrb[0].mxu0 %v383
        %v1155 = vpop.f32.mrb[0].mxu0
        %v1156 = vadd.f32 0.0, %v1155
        %v1157 = vpop.f32.mrb[0].mxu0
        %1158 = vmatprep.mubr.f32.mxu0 0.0
        %1159 = vmatmul.mubr.f32.gmra.mrb[0].mxu0 %v386
        %v1160 = vpop.f32.mrb[0].mxu0
        %v1161 = vadd.f32 0.0, %v1160
        %v1162 = vpop.f32.mrb[0].mxu0
        %1163 = vmatprep.mubr.f32.mxu0 0.0
        %1164 = vmatmul.mubr.f32.gmra.mrb[0].mxu0 %v389
        %v1165 = vpop.f32.mrb[0].mxu0
        %v1166 = vadd.f32 0.0, %v1165
        %v1167 = vpop.f32.mrb[0].mxu0
        %1168 = vmatprep.mubr.f32.mxu0 0.0
        %1169 = vmatmul.mubr.f32.gmra.mrb[0].mxu0 %v392
        %v1170 = vpop.f32.mrb[0].mxu0
        %v1171 = vadd.f32 0.0, %v1170
        %v1172 = vpop.f32.mrb[0].mxu0
        %1173 = vdwg.mxu0
        %v1174 = vsub.f32 1.0, %v1156
        %v1175 = vsub.f32 1.0, %v1161
        %v1176 = vmul.f32 %v1174, %v1166
        %v1177 = vmul.f32 %v1175, %v1171
        %v1178 = vmul.f32 %v1156, %v948
        %v1179 = vmul.f32 %v1161, %v949
        %v1180 = vadd.f32 %v1176, %v1178
        %v1181 = vadd.f32 %v1177, %v1179
        %s1182 = scalar_lea.vmem %s206, 48 [#allocation6]
        %1183 = vst [vmem:[%s1182] sm:$0xff] %v1180
        %1184 = vst [vmem:[%s1182 + $0x8] sm:$0xff] %v1181
        %s1185 = scalar_lea.vmem %s184, 192 [#allocation3]
        %v1186 = vld [vmem:[%s1185] sm:$0xff]
        %v1187 = vld [vmem:[%s1185 + $0x8] sm:$0xff]
        %v1188 = vld [vmem:[%s1185 + $0x10] sm:$0xff]
        %v1189 = vld [vmem:[%s1185 + $0x18] sm:$0xff]
        %v1190 = vld [vmem:[%s1185 + $0x20] sm:$0xff]
        %v1191 = vld [vmem:[%s1185 + $0x28] sm:$0xff]
        %1192 = vmatprep.subr.mxu0 0.0
        %1193 = vmatpush1.msra.mxu0 %v1180
        %1194 = vmatprep.subr.mxu0 0.0
        %1195 = vmatpush1.msra.mxu0 %v1181
        %1196 = vmatprep.subr.mxu0 0.0
        %1197 = vmatpush1.msra.mxu0 0.0
        %1198 = vmatprep.subr.mxu0 0.0
        %1199 = vmatpush1.msra.mxu0 0.0
        %1200 = vmatprep.subr.mxu0 0.0
        %1201 = vmatpush1.msra.mxu0 0.0
        %1202 = vmatprep.subr.mxu0 0.0
        %1203 = vmatpush1.msra.mxu0 0.0
        %1204 = vmatprep.subr.mxu0 0.0
        %1205 = vmatpush1.msra.mxu0 0.0
        %1206 = vmatprep.subr.mxu0 0.0
        %1207 = vmatpush1.msra.mxu0 0.0
        %1208 = vmatprep.subr.mxu0 0.0
        %1209 = vmatpush1.msra.mxu0 0.0
        %1210 = vmatprep.subr.mxu0 0.0
        %1211 = vmatpush1.msra.mxu0 0.0
        %1212 = vmatprep.subr.mxu0 0.0
        %1213 = vmatpush1.msra.mxu0 0.0
        %1214 = vmatprep.subr.mxu0 0.0
        %1215 = vmatpush1.msra.mxu0 0.0
        %1216 = vmatprep.subr.mxu0 0.0
        %1217 = vmatpush1.msra.mxu0 0.0
        %1218 = vmatprep.subr.mxu0 0.0
        %1219 = vmatpush1.msra.mxu0 0.0
        %1220 = vmatprep.subr.mxu0 0.0
        %1221 = vmatpush1.msra.mxu0 0.0
        %1222 = vmatprep.subr.mxu0 0.0
        %1223 = vmatpush1.msra.mxu0 0.0
        %1224 = vmatprep.subr.mxu0 0.0
        %1225 = vmatpush1.msra.mxu0 0.0
        %1226 = vmatprep.subr.mxu0 0.0
        %1227 = vmatpush1.msra.mxu0 0.0
        %1228 = vmatprep.subr.mxu0 0.0
        %1229 = vmatpush1.msra.mxu0 0.0
        %1230 = vmatprep.subr.mxu0 0.0
        %1231 = vmatpush1.msra.mxu0 0.0
        %1232 = vmatprep.subr.mxu0 0.0
        %1233 = vmatpush1.msra.mxu0 0.0
        %1234 = vmatprep.subr.mxu0 0.0
        %1235 = vmatpush1.msra.mxu0 0.0
        %1236 = vmatprep.subr.mxu0 0.0
        %1237 = vmatpush1.msra.mxu0 0.0
        %1238 = vmatprep.subr.mxu0 0.0
        %1239 = vmatpush1.msra.mxu0 0.0
        %1240 = vmatprep.subr.mxu0 0.0
        %1241 = vmatpush1.msra.mxu0 0.0
        %1242 = vmatprep.subr.mxu0 0.0
        %1243 = vmatpush1.msra.mxu0 0.0
        %1244 = vmatprep.subr.mxu0 0.0
        %1245 = vmatpush1.msra.mxu0 0.0
        %1246 = vmatprep.subr.mxu0 0.0
        %1247 = vmatpush1.msra.mxu0 0.0
        %1248 = vmatprep.subr.mxu0 0.0
        %1249 = vmatpush1.msra.mxu0 0.0
        %1250 = vmatprep.subr.mxu0 0.0
        %1251 = vmatpush1.msra.mxu0 0.0
        %1252 = vmatprep.subr.mxu0 0.0
        %1253 = vmatpush1.msra.mxu0 0.0
        %1254 = vmatprep.subr.mxu0 0.0
        %1255 = vmatpush1.msra.mxu0 0.0
        %1256 = vmatprep.mubr.f32.mxu0 0.0
        %1257 = vmatmul.mubr.f32.gmra.mrb[0].mxu0 %v235
        %v1258 = vpop.f32.mrb[0].mxu0
        %v1259 = vadd.f32 0.0, %v1258
        %v1260 = vpop.f32.mrb[0].mxu0
        %1261 = vmatprep.mubr.f32.mxu0 0.0
        %1262 = vmatmul.mubr.f32.gmra.mrb[0].mxu0 %v238
        %v1263 = vpop.f32.mrb[0].mxu0
        %v1264 = vadd.f32 0.0, %v1263
        %v1265 = vpop.f32.mrb[0].mxu0
        %1266 = vmatprep.mubr.f32.mxu0 0.0
        %1267 = vmatmul.mubr.f32.gmra.mrb[0].mxu0 %v241
        %v1268 = vpop.f32.mrb[0].mxu0
        %v1269 = vadd.f32 0.0, %v1268
        %v1270 = vpop.f32.mrb[0].mxu0
        %1271 = vmatprep.mubr.f32.mxu0 0.0
        %1272 = vmatmul.mubr.f32.gmra.mrb[0].mxu0 %v244
        %v1273 = vpop.f32.mrb[0].mxu0
        %v1274 = vadd.f32 0.0, %v1273
        %v1275 = vpop.f32.mrb[0].mxu0
        %1276 = vmatprep.mubr.f32.mxu0 0.0
        %1277 = vmatmul.mubr.f32.gmra.mrb[0].mxu0 %v247
        %v1278 = vpop.f32.mrb[0].mxu0
        %v1279 = vadd.f32 0.0, %v1278
        %v1280 = vpop.f32.mrb[0].mxu0
        %1281 = vmatprep.mubr.f32.mxu0 0.0
        %1282 = vmatmul.mubr.f32.gmra.mrb[0].mxu0 %v250
        %v1283 = vpop.f32.mrb[0].mxu0
        %v1284 = vadd.f32 0.0, %v1283
        %v1285 = vpop.f32.mrb[0].mxu0
        %1286 = vdwg.mxu0
        %v1287 = vadd.f32 %v1186, %v1259
        %v1288 = vadd.f32 %v1187, %v1264
        %v1289 = vadd.f32 %v1188, %v1269
        %v1290 = vadd.f32 %v1189, %v1274
        %v1291 = vxor.u32 %v1287, 2147483648
        %v1292 = vxor.u32 %v1288, 2147483648
        %v1293 = vmul.f32 %v1291, 1.442695
        %v1294 = vpow.pop %v1293
        %v1295 = vmul.f32 %v1292, 1.442695
        %v1296 = vpow.pop %v1295
        %v1297 = vadd.f32 %v1294, 1.0
        %v1298 = vadd.f32 %v1296, 1.0
        %v1299 = vrcp.pop %v1297
        %v1300 = vmul.f32 1.0, %v1299
        %v1301 = vrcp.pop %v1298
        %v1302 = vmul.f32 1.0, %v1301
        %v1303 = vxor.u32 %v1289, 2147483648
        %v1304 = vxor.u32 %v1290, 2147483648
        %v1305 = vmul.f32 %v1303, 1.442695
        %v1306 = vpow.pop %v1305
        %v1307 = vmul.f32 %v1304, 1.442695
        %v1308 = vpow.pop %v1307
        %v1309 = vadd.f32 %v1306, 1.0
        %v1310 = vadd.f32 %v1308, 1.0
        %v1311 = vrcp.pop %v1309
        %v1312 = vmul.f32 1.0, %v1311
        %v1313 = vrcp.pop %v1310
        %v1314 = vmul.f32 1.0, %v1313
        %v1315 = vmul.f32 %v1300, %v1279
        %v1316 = vmul.f32 %v1302, %v1284
        %v1317 = vadd.f32 %v1190, %v1315
        %v1318 = vadd.f32 %v1191, %v1316
        %v1319 = vtanh.pop %v1317
        %v1320 = vtanh.pop %v1318
        %1321 = vmatprep.subr.mxu0 0.0
        %1322 = vmatpush1.msra.mxu0 %v1312
        %1323 = vmatprep.subr.mxu0 0.0
        %1324 = vmatpush1.msra.mxu0 %v1314
        %1325 = vmatprep.subr.mxu0 0.0
        %1326 = vmatpush1.msra.mxu0 %v1319
        %1327 = vmatprep.subr.mxu0 0.0
        %1328 = vmatpush1.msra.mxu0 %v1320
        %1329 = vmatprep.subr.mxu0 0.0
        %1330 = vmatpush1.msra.mxu0 0.0
        %1331 = vmatprep.subr.mxu0 0.0
        %1332 = vmatpush1.msra.mxu0 0.0
        %1333 = vmatprep.subr.mxu0 0.0
        %1334 = vmatpush1.msra.mxu0 0.0
        %1335 = vmatprep.subr.mxu0 0.0
        %1336 = vmatpush1.msra.mxu0 0.0
        %1337 = vmatprep.subr.mxu0 0.0
        %1338 = vmatpush1.msra.mxu0 0.0
        %1339 = vmatprep.subr.mxu0 0.0
        %1340 = vmatpush1.msra.mxu0 0.0
        %1341 = vmatprep.subr.mxu0 0.0
        %1342 = vmatpush1.msra.mxu0 0.0
        %1343 = vmatprep.subr.mxu0 0.0
        %1344 = vmatpush1.msra.mxu0 0.0
        %1345 = vmatprep.subr.mxu0 0.0
        %1346 = vmatpush1.msra.mxu0 0.0
        %1347 = vmatprep.subr.mxu0 0.0
        %1348 = vmatpush1.msra.mxu0 0.0
        %1349 = vmatprep.subr.mxu0 0.0
        %1350 = vmatpush1.msra.mxu0 0.0
        %1351 = vmatprep.subr.mxu0 0.0
        %1352 = vmatpush1.msra.mxu0 0.0
        %1353 = vmatprep.subr.mxu0 0.0
        %1354 = vmatpush1.msra.mxu0 0.0
        %1355 = vmatprep.subr.mxu0 0.0
        %1356 = vmatpush1.msra.mxu0 0.0
        %1357 = vmatprep.subr.mxu0 0.0
        %1358 = vmatpush1.msra.mxu0 0.0
        %1359 = vmatprep.subr.mxu0 0.0
        %1360 = vmatpush1.msra.mxu0 0.0
        %1361 = vmatprep.subr.mxu0 0.0
        %1362 = vmatpush1.msra.mxu0 0.0
        %1363 = vmatprep.subr.mxu0 0.0
        %1364 = vmatpush1.msra.mxu0 0.0
        %1365 = vmatprep.subr.mxu0 0.0
        %1366 = vmatpush1.msra.mxu0 0.0
        %1367 = vmatprep.subr.mxu0 0.0
        %1368 = vmatpush1.msra.mxu0 0.0
        %1369 = vmatprep.subr.mxu0 0.0
        %1370 = vmatpush1.msra.mxu0 0.0
        %1371 = vmatprep.subr.mxu0 0.0
        %1372 = vmatpush1.msra.mxu0 0.0
        %1373 = vmatprep.subr.mxu0 0.0
        %1374 = vmatpush1.msra.mxu0 0.0
        %1375 = vmatprep.subr.mxu0 0.0
        %1376 = vmatpush1.msra.mxu0 0.0
        %1377 = vmatprep.subr.mxu0 0.0
        %1378 = vmatpush1.msra.mxu0 0.0
        %1379 = vmatprep.subr.mxu0 0.0
        %1380 = vmatpush1.msra.mxu0 0.0
        %1381 = vmatprep.subr.mxu0 0.0
        %1382 = vmatpush1.msra.mxu0 0.0
        %1383 = vmatprep.subr.mxu0 0.0
        %1384 = vmatpush1.msra.mxu0 0.0
        %1385 = vmatprep.mubr.f32.mxu0 0.0
        %1386 = vmatmul.mubr.f32.gmra.mrb[0].mxu0 %v383
        %v1387 = vpop.f32.mrb[0].mxu0
        %v1388 = vadd.f32 0.0, %v1387
        %v1389 = vpop.f32.mrb[0].mxu0
        %1390 = vmatprep.mubr.f32.mxu0 0.0
        %1391 = vmatmul.mubr.f32.gmra.mrb[0].mxu0 %v386
        %v1392 = vpop.f32.mrb[0].mxu0
        %v1393 = vadd.f32 0.0, %v1392
        %v1394 = vpop.f32.mrb[0].mxu0
        %1395 = vmatprep.mubr.f32.mxu0 0.0
        %1396 = vmatmul.mubr.f32.gmra.mrb[0].mxu0 %v389
        %v1397 = vpop.f32.mrb[0].mxu0
        %v1398 = vadd.f32 0.0, %v1397
        %v1399 = vpop.f32.mrb[0].mxu0
        %1400 = vmatprep.mubr.f32.mxu0 0.0
        %1401 = vmatmul.mubr.f32.gmra.mrb[0].mxu0 %v392
        %v1402 = vpop.f32.mrb[0].mxu0
        %v1403 = vadd.f32 0.0, %v1402
        %v1404 = vpop.f32.mrb[0].mxu0
        %1405 = vdwg.mxu0
        %v1406 = vsub.f32 1.0, %v1388
        %v1407 = vsub.f32 1.0, %v1393
        %v1408 = vmul.f32 %v1406, %v1398
        %v1409 = vmul.f32 %v1407, %v1403
        %v1410 = vmul.f32 %v1388, %v1180
        %v1411 = vmul.f32 %v1393, %v1181
        %v1412 = vadd.f32 %v1408, %v1410
        %v1413 = vadd.f32 %v1409, %v1411
        %s1414 = scalar_lea.vmem %s206, 64 [#allocation6]
        %1415 = vst [vmem:[%s1414] sm:$0xff] %v1412
        %1416 = vst [vmem:[%s1414 + $0x8] sm:$0xff] %v1413
        %s1417 = scalar_lea.vmem %s184, 240 [#allocation3]
        %v1418 = vld [vmem:[%s1417] sm:$0xff]
        %v1419 = vld [vmem:[%s1417 + $0x8] sm:$0xff]
        %v1420 = vld [vmem:[%s1417 + $0x10] sm:$0xff]
        %v1421 = vld [vmem:[%s1417 + $0x18] sm:$0xff]
        %v1422 = vld [vmem:[%s1417 + $0x20] sm:$0xff]
        %v1423 = vld [vmem:[%s1417 + $0x28] sm:$0xff]
        %1424 = vmatprep.subr.mxu0 0.0
        %1425 = vmatpush1.msra.mxu0 %v1412
        %1426 = vmatprep.subr.mxu0 0.0
        %1427 = vmatpush1.msra.mxu0 %v1413
        %1428 = vmatprep.subr.mxu0 0.0
        %1429 = vmatpush1.msra.mxu0 0.0
        %1430 = vmatprep.subr.mxu0 0.0
        %1431 = vmatpush1.msra.mxu0 0.0
        %1432 = vmatprep.subr.mxu0 0.0
        %1433 = vmatpush1.msra.mxu0 0.0
        %1434 = vmatprep.subr.mxu0 0.0
        %1435 = vmatpush1.msra.mxu0 0.0
        %1436 = vmatprep.subr.mxu0 0.0
        %1437 = vmatpush1.msra.mxu0 0.0
        %1438 = vmatprep.subr.mxu0 0.0
        %1439 = vmatpush1.msra.mxu0 0.0
        %1440 = vmatprep.subr.mxu0 0.0
        %1441 = vmatpush1.msra.mxu0 0.0
        %1442 = vmatprep.subr.mxu0 0.0
        %1443 = vmatpush1.msra.mxu0 0.0
        %1444 = vmatprep.subr.mxu0 0.0
        %1445 = vmatpush1.msra.mxu0 0.0
        %1446 = vmatprep.subr.mxu0 0.0
        %1447 = vmatpush1.msra.mxu0 0.0
        %1448 = vmatprep.subr.mxu0 0.0
        %1449 = vmatpush1.msra.mxu0 0.0
        %1450 = vmatprep.subr.mxu0 0.0
        %1451 = vmatpush1.msra.mxu0 0.0
        %1452 = vmatprep.subr.mxu0 0.0
        %1453 = vmatpush1.msra.mxu0 0.0
        %1454 = vmatprep.subr.mxu0 0.0
        %1455 = vmatpush1.msra.mxu0 0.0
        %1456 = vmatprep.subr.mxu0 0.0
        %1457 = vmatpush1.msra.mxu0 0.0
        %1458 = vmatprep.subr.mxu0 0.0
        %1459 = vmatpush1.msra.mxu0 0.0
        %1460 = vmatprep.subr.mxu0 0.0
        %1461 = vmatpush1.msra.mxu0 0.0
        %1462 = vmatprep.subr.mxu0 0.0
        %1463 = vmatpush1.msra.mxu0 0.0
        %1464 = vmatprep.subr.mxu0 0.0
        %1465 = vmatpush1.msra.mxu0 0.0
        %1466 = vmatprep.subr.mxu0 0.0
        %1467 = vmatpush1.msra.mxu0 0.0
        %1468 = vmatprep.subr.mxu0 0.0
        %1469 = vmatpush1.msra.mxu0 0.0
        %1470 = vmatprep.subr.mxu0 0.0
        %1471 = vmatpush1.msra.mxu0 0.0
        %1472 = vmatprep.subr.mxu0 0.0
        %1473 = vmatpush1.msra.mxu0 0.0
        %1474 = vmatprep.subr.mxu0 0.0
        %1475 = vmatpush1.msra.mxu0 0.0
        %1476 = vmatprep.subr.mxu0 0.0
        %1477 = vmatpush1.msra.mxu0 0.0
        %1478 = vmatprep.subr.mxu0 0.0
        %1479 = vmatpush1.msra.mxu0 0.0
        %1480 = vmatprep.subr.mxu0 0.0
        %1481 = vmatpush1.msra.mxu0 0.0
        %1482 = vmatprep.subr.mxu0 0.0
        %1483 = vmatpush1.msra.mxu0 0.0
        %1484 = vmatprep.subr.mxu0 0.0
        %1485 = vmatpush1.msra.mxu0 0.0
        %1486 = vmatprep.subr.mxu0 0.0
        %1487 = vmatpush1.msra.mxu0 0.0
        %1488 = vmatprep.mubr.f32.mxu0 0.0
        %1489 = vmatmul.mubr.f32.gmra.mrb[0].mxu0 %v235
        %v1490 = vpop.f32.mrb[0].mxu0
        %v1491 = vadd.f32 0.0, %v1490
        %v1492 = vpop.f32.mrb[0].mxu0
        %1493 = vmatprep.mubr.f32.mxu0 0.0
        %1494 = vmatmul.mubr.f32.gmra.mrb[0].mxu0 %v238
        %v1495 = vpop.f32.mrb[0].mxu0
        %v1496 = vadd.f32 0.0, %v1495
        %v1497 = vpop.f32.mrb[0].mxu0
        %1498 = vmatprep.mubr.f32.mxu0 0.0
        %1499 = vmatmul.mubr.f32.gmra.mrb[0].mxu0 %v241
        %v1500 = vpop.f32.mrb[0].mxu0
        %v1501 = vadd.f32 0.0, %v1500
        %v1502 = vpop.f32.mrb[0].mxu0
        %1503 = vmatprep.mubr.f32.mxu0 0.0
        %1504 = vmatmul.mubr.f32.gmra.mrb[0].mxu0 %v244
        %v1505 = vpop.f32.mrb[0].mxu0
        %v1506 = vadd.f32 0.0, %v1505
        %v1507 = vpop.f32.mrb[0].mxu0
        %1508 = vmatprep.mubr.f32.mxu0 0.0
        %1509 = vmatmul.mubr.f32.gmra.mrb[0].mxu0 %v247
        %v1510 = vpop.f32.mrb[0].mxu0
        %v1511 = vadd.f32 0.0, %v1510
        %v1512 = vpop.f32.mrb[0].mxu0
        %1513 = vmatprep.mubr.f32.mxu0 0.0
        %1514 = vmatmul.mubr.f32.gmra.mrb[0].mxu0 %v250
        %v1515 = vpop.f32.mrb[0].mxu0
        %v1516 = vadd.f32 0.0, %v1515
        %v1517 = vpop.f32.mrb[0].mxu0
        %1518 = vdwg.mxu0
        %v1519 = vadd.f32 %v1418, %v1491
        %v1520 = vadd.f32 %v1419, %v1496
        %v1521 = vadd.f32 %v1420, %v1501
        %v1522 = vadd.f32 %v1421, %v1506
        %v1523 = vxor.u32 %v1519, 2147483648
        %v1524 = vxor.u32 %v1520, 2147483648
        %v1525 = vmul.f32 %v1523, 1.442695
        %v1526 = vpow.pop %v1525
        %v1527 = vmul.f32 %v1524, 1.442695
        %v1528 = vpow.pop %v1527
        %v1529 = vadd.f32 %v1526, 1.0
        %v1530 = vadd.f32 %v1528, 1.0
        %v1531 = vrcp.pop %v1529
        %v1532 = vmul.f32 1.0, %v1531
        %v1533 = vrcp.pop %v1530
        %v1534 = vmul.f32 1.0, %v1533
        %v1535 = vxor.u32 %v1521, 2147483648
        %v1536 = vxor.u32 %v1522, 2147483648
        %v1537 = vmul.f32 %v1535, 1.442695
        %v1538 = vpow.pop %v1537
        %v1539 = vmul.f32 %v1536, 1.442695
        %v1540 = vpow.pop %v1539
        %v1541 = vadd.f32 %v1538, 1.0
        %v1542 = vadd.f32 %v1540, 1.0
        %v1543 = vrcp.pop %v1541
        %v1544 = vmul.f32 1.0, %v1543
        %v1545 = vrcp.pop %v1542
        %v1546 = vmul.f32 1.0, %v1545
        %v1547 = vmul.f32 %v1532, %v1511
        %v1548 = vmul.f32 %v1534, %v1516
        %v1549 = vadd.f32 %v1422, %v1547
        %v1550 = vadd.f32 %v1423, %v1548
        %v1551 = vtanh.pop %v1549
        %v1552 = vtanh.pop %v1550
        %1553 = vmatprep.subr.mxu0 0.0
        %1554 = vmatpush1.msra.mxu0 %v1544
        %1555 = vmatprep.subr.mxu0 0.0
        %1556 = vmatpush1.msra.mxu0 %v1546
        %1557 = vmatprep.subr.mxu0 0.0
        %1558 = vmatpush1.msra.mxu0 %v1551
        %1559 = vmatprep.subr.mxu0 0.0
        %1560 = vmatpush1.msra.mxu0 %v1552
        %1561 = vmatprep.subr.mxu0 0.0
        %1562 = vmatpush1.msra.mxu0 0.0
        %1563 = vmatprep.subr.mxu0 0.0
        %1564 = vmatpush1.msra.mxu0 0.0
        %1565 = vmatprep.subr.mxu0 0.0
        %1566 = vmatpush1.msra.mxu0 0.0
        %1567 = vmatprep.subr.mxu0 0.0
        %1568 = vmatpush1.msra.mxu0 0.0
        %1569 = vmatprep.subr.mxu0 0.0
        %1570 = vmatpush1.msra.mxu0 0.0
        %1571 = vmatprep.subr.mxu0 0.0
        %1572 = vmatpush1.msra.mxu0 0.0
        %1573 = vmatprep.subr.mxu0 0.0
        %1574 = vmatpush1.msra.mxu0 0.0
        %1575 = vmatprep.subr.mxu0 0.0
        %1576 = vmatpush1.msra.mxu0 0.0
        %1577 = vmatprep.subr.mxu0 0.0
        %1578 = vmatpush1.msra.mxu0 0.0
        %1579 = vmatprep.subr.mxu0 0.0
        %1580 = vmatpush1.msra.mxu0 0.0
        %1581 = vmatprep.subr.mxu0 0.0
        %1582 = vmatpush1.msra.mxu0 0.0
        %1583 = vmatprep.subr.mxu0 0.0
        %1584 = vmatpush1.msra.mxu0 0.0
        %1585 = vmatprep.subr.mxu0 0.0
        %1586 = vmatpush1.msra.mxu0 0.0
        %1587 = vmatprep.subr.mxu0 0.0
        %1588 = vmatpush1.msra.mxu0 0.0
        %1589 = vmatprep.subr.mxu0 0.0
        %1590 = vmatpush1.msra.mxu0 0.0
        %1591 = vmatprep.subr.mxu0 0.0
        %1592 = vmatpush1.msra.mxu0 0.0
        %1593 = vmatprep.subr.mxu0 0.0
        %1594 = vmatpush1.msra.mxu0 0.0
        %1595 = vmatprep.subr.mxu0 0.0
        %1596 = vmatpush1.msra.mxu0 0.0
        %1597 = vmatprep.subr.mxu0 0.0
        %1598 = vmatpush1.msra.mxu0 0.0
        %1599 = vmatprep.subr.mxu0 0.0
        %1600 = vmatpush1.msra.mxu0 0.0
        %1601 = vmatprep.subr.mxu0 0.0
        %1602 = vmatpush1.msra.mxu0 0.0
        %1603 = vmatprep.subr.mxu0 0.0
        %1604 = vmatpush1.msra.mxu0 0.0
        %1605 = vmatprep.subr.mxu0 0.0
        %1606 = vmatpush1.msra.mxu0 0.0
        %1607 = vmatprep.subr.mxu0 0.0
        %1608 = vmatpush1.msra.mxu0 0.0
        %1609 = vmatprep.subr.mxu0 0.0
        %1610 = vmatpush1.msra.mxu0 0.0
        %1611 = vmatprep.subr.mxu0 0.0
        %1612 = vmatpush1.msra.mxu0 0.0
        %1613 = vmatprep.subr.mxu0 0.0
        %1614 = vmatpush1.msra.mxu0 0.0
        %1615 = vmatprep.subr.mxu0 0.0
        %1616 = vmatpush1.msra.mxu0 0.0
        %1617 = vmatprep.mubr.f32.mxu0 0.0
        %1618 = vmatmul.mubr.f32.gmra.mrb[0].mxu0 %v383
        %v1619 = vpop.f32.mrb[0].mxu0
        %v1620 = vadd.f32 0.0, %v1619
        %v1621 = vpop.f32.mrb[0].mxu0
        %1622 = vmatprep.mubr.f32.mxu0 0.0
        %1623 = vmatmul.mubr.f32.gmra.mrb[0].mxu0 %v386
        %v1624 = vpop.f32.mrb[0].mxu0
        %v1625 = vadd.f32 0.0, %v1624
        %v1626 = vpop.f32.mrb[0].mxu0
        %1627 = vmatprep.mubr.f32.mxu0 0.0
        %1628 = vmatmul.mubr.f32.gmra.mrb[0].mxu0 %v389
        %v1629 = vpop.f32.mrb[0].mxu0
        %v1630 = vadd.f32 0.0, %v1629
        %v1631 = vpop.f32.mrb[0].mxu0
        %1632 = vmatprep.mubr.f32.mxu0 0.0
        %1633 = vmatmul.mubr.f32.gmra.mrb[0].mxu0 %v392
        %v1634 = vpop.f32.mrb[0].mxu0
        %v1635 = vadd.f32 0.0, %v1634
        %v1636 = vpop.f32.mrb[0].mxu0
        %1637 = vdwg.mxu0
        %v1638 = vsub.f32 1.0, %v1620
        %v1639 = vsub.f32 1.0, %v1625
        %v1640 = vmul.f32 %v1638, %v1630
        %v1641 = vmul.f32 %v1639, %v1635
        %v1642 = vmul.f32 %v1620, %v1412
        %v1643 = vmul.f32 %v1625, %v1413
        %v1644 = vadd.f32 %v1640, %v1642
        %v1645 = vadd.f32 %v1641, %v1643
        %s1646 = scalar_lea.vmem %s206, 80 [#allocation6]
        %1647 = vst [vmem:[%s1646] sm:$0xff] %v1644
        %1648 = vst [vmem:[%s1646 + $0x8] sm:$0xff] %v1645
        %s1649 = scalar_lea.vmem %s184, 288 [#allocation3]
        %v1650 = vld [vmem:[%s1649] sm:$0xff]
        %v1651 = vld [vmem:[%s1649 + $0x8] sm:$0xff]
        %v1652 = vld [vmem:[%s1649 + $0x10] sm:$0xff]
        %v1653 = vld [vmem:[%s1649 + $0x18] sm:$0xff]
        %v1654 = vld [vmem:[%s1649 + $0x20] sm:$0xff]
        %v1655 = vld [vmem:[%s1649 + $0x28] sm:$0xff]
        %1656 = vmatprep.subr.mxu0 0.0
        %1657 = vmatpush1.msra.mxu0 %v1644
        %1658 = vmatprep.subr.mxu0 0.0
        %1659 = vmatpush1.msra.mxu0 %v1645
        %1660 = vmatprep.subr.mxu0 0.0
        %1661 = vmatpush1.msra.mxu0 0.0
        %1662 = vmatprep.subr.mxu0 0.0
        %1663 = vmatpush1.msra.mxu0 0.0
        %1664 = vmatprep.subr.mxu0 0.0
        %1665 = vmatpush1.msra.mxu0 0.0
        %1666 = vmatprep.subr.mxu0 0.0
        %1667 = vmatpush1.msra.mxu0 0.0
        %1668 = vmatprep.subr.mxu0 0.0
        %1669 = vmatpush1.msra.mxu0 0.0
        %1670 = vmatprep.subr.mxu0 0.0
        %1671 = vmatpush1.msra.mxu0 0.0
        %1672 = vmatprep.subr.mxu0 0.0
        %1673 = vmatpush1.msra.mxu0 0.0
        %1674 = vmatprep.subr.mxu0 0.0
        %1675 = vmatpush1.msra.mxu0 0.0
        %1676 = vmatprep.subr.mxu0 0.0
        %1677 = vmatpush1.msra.mxu0 0.0
        %1678 = vmatprep.subr.mxu0 0.0
        %1679 = vmatpush1.msra.mxu0 0.0
        %1680 = vmatprep.subr.mxu0 0.0
        %1681 = vmatpush1.msra.mxu0 0.0
        %1682 = vmatprep.subr.mxu0 0.0
        %1683 = vmatpush1.msra.mxu0 0.0
        %1684 = vmatprep.subr.mxu0 0.0
        %1685 = vmatpush1.msra.mxu0 0.0
        %1686 = vmatprep.subr.mxu0 0.0
        %1687 = vmatpush1.msra.mxu0 0.0
        %1688 = vmatprep.subr.mxu0 0.0
        %1689 = vmatpush1.msra.mxu0 0.0
        %1690 = vmatprep.subr.mxu0 0.0
        %1691 = vmatpush1.msra.mxu0 0.0
        %1692 = vmatprep.subr.mxu0 0.0
        %1693 = vmatpush1.msra.mxu0 0.0
        %1694 = vmatprep.subr.mxu0 0.0
        %1695 = vmatpush1.msra.mxu0 0.0
        %1696 = vmatprep.subr.mxu0 0.0
        %1697 = vmatpush1.msra.mxu0 0.0
        %1698 = vmatprep.subr.mxu0 0.0
        %1699 = vmatpush1.msra.mxu0 0.0
        %1700 = vmatprep.subr.mxu0 0.0
        %1701 = vmatpush1.msra.mxu0 0.0
        %1702 = vmatprep.subr.mxu0 0.0
        %1703 = vmatpush1.msra.mxu0 0.0
        %1704 = vmatprep.subr.mxu0 0.0
        %1705 = vmatpush1.msra.mxu0 0.0
        %1706 = vmatprep.subr.mxu0 0.0
        %1707 = vmatpush1.msra.mxu0 0.0
        %1708 = vmatprep.subr.mxu0 0.0
        %1709 = vmatpush1.msra.mxu0 0.0
        %1710 = vmatprep.subr.mxu0 0.0
        %1711 = vmatpush1.msra.mxu0 0.0
        %1712 = vmatprep.subr.mxu0 0.0
        %1713 = vmatpush1.msra.mxu0 0.0
        %1714 = vmatprep.subr.mxu0 0.0
        %1715 = vmatpush1.msra.mxu0 0.0
        %1716 = vmatprep.subr.mxu0 0.0
        %1717 = vmatpush1.msra.mxu0 0.0
        %1718 = vmatprep.subr.mxu0 0.0
        %1719 = vmatpush1.msra.mxu0 0.0
        %1720 = vmatprep.mubr.f32.mxu0 0.0
        %1721 = vmatmul.mubr.f32.gmra.mrb[0].mxu0 %v235
        %v1722 = vpop.f32.mrb[0].mxu0
        %v1723 = vadd.f32 0.0, %v1722
        %v1724 = vpop.f32.mrb[0].mxu0
        %1725 = vmatprep.mubr.f32.mxu0 0.0
        %1726 = vmatmul.mubr.f32.gmra.mrb[0].mxu0 %v238
        %v1727 = vpop.f32.mrb[0].mxu0
        %v1728 = vadd.f32 0.0, %v1727
        %v1729 = vpop.f32.mrb[0].mxu0
        %1730 = vmatprep.mubr.f32.mxu0 0.0
        %1731 = vmatmul.mubr.f32.gmra.mrb[0].mxu0 %v241
        %v1732 = vpop.f32.mrb[0].mxu0
        %v1733 = vadd.f32 0.0, %v1732
        %v1734 = vpop.f32.mrb[0].mxu0
        %1735 = vmatprep.mubr.f32.mxu0 0.0
        %1736 = vmatmul.mubr.f32.gmra.mrb[0].mxu0 %v244
        %v1737 = vpop.f32.mrb[0].mxu0
        %v1738 = vadd.f32 0.0, %v1737
        %v1739 = vpop.f32.mrb[0].mxu0
        %1740 = vmatprep.mubr.f32.mxu0 0.0
        %1741 = vmatmul.mubr.f32.gmra.mrb[0].mxu0 %v247
        %v1742 = vpop.f32.mrb[0].mxu0
        %v1743 = vadd.f32 0.0, %v1742
        %v1744 = vpop.f32.mrb[0].mxu0
        %1745 = vmatprep.mubr.f32.mxu0 0.0
        %1746 = vmatmul.mubr.f32.gmra.mrb[0].mxu0 %v250
        %v1747 = vpop.f32.mrb[0].mxu0
        %v1748 = vadd.f32 0.0, %v1747
        %v1749 = vpop.f32.mrb[0].mxu0
        %1750 = vdwg.mxu0
        %v1751 = vadd.f32 %v1650, %v1723
        %v1752 = vadd.f32 %v1651, %v1728
        %v1753 = vadd.f32 %v1652, %v1733
        %v1754 = vadd.f32 %v1653, %v1738
        %v1755 = vxor.u32 %v1751, 2147483648
        %v1756 = vxor.u32 %v1752, 2147483648
        %v1757 = vmul.f32 %v1755, 1.442695
        %v1758 = vpow.pop %v1757
        %v1759 = vmul.f32 %v1756, 1.442695
        %v1760 = vpow.pop %v1759
        %v1761 = vadd.f32 %v1758, 1.0
        %v1762 = vadd.f32 %v1760, 1.0
        %v1763 = vrcp.pop %v1761
        %v1764 = vmul.f32 1.0, %v1763
        %v1765 = vrcp.pop %v1762
        %v1766 = vmul.f32 1.0, %v1765
        %v1767 = vxor.u32 %v1753, 2147483648
        %v1768 = vxor.u32 %v1754, 2147483648
        %v1769 = vmul.f32 %v1767, 1.442695
        %v1770 = vpow.pop %v1769
        %v1771 = vmul.f32 %v1768, 1.442695
        %v1772 = vpow.pop %v1771
        %v1773 = vadd.f32 %v1770, 1.0
        %v1774 = vadd.f32 %v1772, 1.0
        %v1775 = vrcp.pop %v1773
        %v1776 = vmul.f32 1.0, %v1775
        %v1777 = vrcp.pop %v1774
        %v1778 = vmul.f32 1.0, %v1777
        %v1779 = vmul.f32 %v1764, %v1743
        %v1780 = vmul.f32 %v1766, %v1748
        %v1781 = vadd.f32 %v1654, %v1779
        %v1782 = vadd.f32 %v1655, %v1780
        %v1783 = vtanh.pop %v1781
        %v1784 = vtanh.pop %v1782
        %1785 = vmatprep.subr.mxu0 0.0
        %1786 = vmatpush1.msra.mxu0 %v1776
        %1787 = vmatprep.subr.mxu0 0.0
        %1788 = vmatpush1.msra.mxu0 %v1778
        %1789 = vmatprep.subr.mxu0 0.0
        %1790 = vmatpush1.msra.mxu0 %v1783
        %1791 = vmatprep.subr.mxu0 0.0
        %1792 = vmatpush1.msra.mxu0 %v1784
        %1793 = vmatprep.subr.mxu0 0.0
        %1794 = vmatpush1.msra.mxu0 0.0
        %1795 = vmatprep.subr.mxu0 0.0
        %1796 = vmatpush1.msra.mxu0 0.0
        %1797 = vmatprep.subr.mxu0 0.0
        %1798 = vmatpush1.msra.mxu0 0.0
        %1799 = vmatprep.subr.mxu0 0.0
        %1800 = vmatpush1.msra.mxu0 0.0
        %1801 = vmatprep.subr.mxu0 0.0
        %1802 = vmatpush1.msra.mxu0 0.0
        %1803 = vmatprep.subr.mxu0 0.0
        %1804 = vmatpush1.msra.mxu0 0.0
        %1805 = vmatprep.subr.mxu0 0.0
        %1806 = vmatpush1.msra.mxu0 0.0
        %1807 = vmatprep.subr.mxu0 0.0
        %1808 = vmatpush1.msra.mxu0 0.0
        %1809 = vmatprep.subr.mxu0 0.0
        %1810 = vmatpush1.msra.mxu0 0.0
        %1811 = vmatprep.subr.mxu0 0.0
        %1812 = vmatpush1.msra.mxu0 0.0
        %1813 = vmatprep.subr.mxu0 0.0
        %1814 = vmatpush1.msra.mxu0 0.0
        %1815 = vmatprep.subr.mxu0 0.0
        %1816 = vmatpush1.msra.mxu0 0.0
        %1817 = vmatprep.subr.mxu0 0.0
        %1818 = vmatpush1.msra.mxu0 0.0
        %1819 = vmatprep.subr.mxu0 0.0
        %1820 = vmatpush1.msra.mxu0 0.0
        %1821 = vmatprep.subr.mxu0 0.0
        %1822 = vmatpush1.msra.mxu0 0.0
        %1823 = vmatprep.subr.mxu0 0.0
        %1824 = vmatpush1.msra.mxu0 0.0
        %1825 = vmatprep.subr.mxu0 0.0
        %1826 = vmatpush1.msra.mxu0 0.0
        %1827 = vmatprep.subr.mxu0 0.0
        %1828 = vmatpush1.msra.mxu0 0.0
        %1829 = vmatprep.subr.mxu0 0.0
        %1830 = vmatpush1.msra.mxu0 0.0
        %1831 = vmatprep.subr.mxu0 0.0
        %1832 = vmatpush1.msra.mxu0 0.0
        %1833 = vmatprep.subr.mxu0 0.0
        %1834 = vmatpush1.msra.mxu0 0.0
        %1835 = vmatprep.subr.mxu0 0.0
        %1836 = vmatpush1.msra.mxu0 0.0
        %1837 = vmatprep.subr.mxu0 0.0
        %1838 = vmatpush1.msra.mxu0 0.0
        %1839 = vmatprep.subr.mxu0 0.0
        %1840 = vmatpush1.msra.mxu0 0.0
        %1841 = vmatprep.subr.mxu0 0.0
        %1842 = vmatpush1.msra.mxu0 0.0
        %1843 = vmatprep.subr.mxu0 0.0
        %1844 = vmatpush1.msra.mxu0 0.0
        %1845 = vmatprep.subr.mxu0 0.0
        %1846 = vmatpush1.msra.mxu0 0.0
        %1847 = vmatprep.subr.mxu0 0.0
        %1848 = vmatpush1.msra.mxu0 0.0
        %1849 = vmatprep.mubr.f32.mxu0 0.0
        %1850 = vmatmul.mubr.f32.gmra.mrb[0].mxu0 %v383
        %v1851 = vpop.f32.mrb[0].mxu0
        %v1852 = vadd.f32 0.0, %v1851
        %v1853 = vpop.f32.mrb[0].mxu0
        %1854 = vmatprep.mubr.f32.mxu0 0.0
        %1855 = vmatmul.mubr.f32.gmra.mrb[0].mxu0 %v386
        %v1856 = vpop.f32.mrb[0].mxu0
        %v1857 = vadd.f32 0.0, %v1856
        %v1858 = vpop.f32.mrb[0].mxu0
        %1859 = vmatprep.mubr.f32.mxu0 0.0
        %1860 = vmatmul.mubr.f32.gmra.mrb[0].mxu0 %v389
        %v1861 = vpop.f32.mrb[0].mxu0
        %v1862 = vadd.f32 0.0, %v1861
        %v1863 = vpop.f32.mrb[0].mxu0
        %1864 = vmatprep.mubr.f32.mxu0 0.0
        %1865 = vmatmul.mubr.f32.gmra.mrb[0].mxu0 %v392
        %v1866 = vpop.f32.mrb[0].mxu0
        %v1867 = vadd.f32 0.0, %v1866
        %v1868 = vpop.f32.mrb[0].mxu0
        %1869 = vdwg.mxu0
        %v1870 = vsub.f32 1.0, %v1852
        %v1871 = vsub.f32 1.0, %v1857
        %v1872 = vmul.f32 %v1870, %v1862
        %v1873 = vmul.f32 %v1871, %v1867
        %v1874 = vmul.f32 %v1852, %v1644
        %v1875 = vmul.f32 %v1857, %v1645
        %v1876 = vadd.f32 %v1872, %v1874
        %v1877 = vadd.f32 %v1873, %v1875
        %s1878 = scalar_lea.vmem %s206, 96 [#allocation6]
        %1879 = vst [vmem:[%s1878] sm:$0xff] %v1876
        %1880 = vst [vmem:[%s1878 + $0x8] sm:$0xff] %v1877
        %s1881 = scalar_lea.vmem %s184, 336 [#allocation3]
        %v1882 = vld [vmem:[%s1881] sm:$0xff]
        %v1883 = vld [vmem:[%s1881 + $0x8] sm:$0xff]
        %v1884 = vld [vmem:[%s1881 + $0x10] sm:$0xff]
        %v1885 = vld [vmem:[%s1881 + $0x18] sm:$0xff]
        %v1886 = vld [vmem:[%s1881 + $0x20] sm:$0xff]
        %v1887 = vld [vmem:[%s1881 + $0x28] sm:$0xff]
        %1888 = vmatprep.subr.mxu0 0.0
        %1889 = vmatpush1.msra.mxu0 %v1876
        %1890 = vmatprep.subr.mxu0 0.0
        %1891 = vmatpush1.msra.mxu0 %v1877
        %1892 = vmatprep.subr.mxu0 0.0
        %1893 = vmatpush1.msra.mxu0 0.0
        %1894 = vmatprep.subr.mxu0 0.0
        %1895 = vmatpush1.msra.mxu0 0.0
        %1896 = vmatprep.subr.mxu0 0.0
        %1897 = vmatpush1.msra.mxu0 0.0
        %1898 = vmatprep.subr.mxu0 0.0
        %1899 = vmatpush1.msra.mxu0 0.0
        %1900 = vmatprep.subr.mxu0 0.0
        %1901 = vmatpush1.msra.mxu0 0.0
        %1902 = vmatprep.subr.mxu0 0.0
        %1903 = vmatpush1.msra.mxu0 0.0
        %1904 = vmatprep.subr.mxu0 0.0
        %1905 = vmatpush1.msra.mxu0 0.0
        %1906 = vmatprep.subr.mxu0 0.0
        %1907 = vmatpush1.msra.mxu0 0.0
        %1908 = vmatprep.subr.mxu0 0.0
        %1909 = vmatpush1.msra.mxu0 0.0
        %1910 = vmatprep.subr.mxu0 0.0
        %1911 = vmatpush1.msra.mxu0 0.0
        %1912 = vmatprep.subr.mxu0 0.0
        %1913 = vmatpush1.msra.mxu0 0.0
        %1914 = vmatprep.subr.mxu0 0.0
        %1915 = vmatpush1.msra.mxu0 0.0
        %1916 = vmatprep.subr.mxu0 0.0
        %1917 = vmatpush1.msra.mxu0 0.0
        %1918 = vmatprep.subr.mxu0 0.0
        %1919 = vmatpush1.msra.mxu0 0.0
        %1920 = vmatprep.subr.mxu0 0.0
        %1921 = vmatpush1.msra.mxu0 0.0
        %1922 = vmatprep.subr.mxu0 0.0
        %1923 = vmatpush1.msra.mxu0 0.0
        %1924 = vmatprep.subr.mxu0 0.0
        %1925 = vmatpush1.msra.mxu0 0.0
        %1926 = vmatprep.subr.mxu0 0.0
        %1927 = vmatpush1.msra.mxu0 0.0
        %1928 = vmatprep.subr.mxu0 0.0
        %1929 = vmatpush1.msra.mxu0 0.0
        %1930 = vmatprep.subr.mxu0 0.0
        %1931 = vmatpush1.msra.mxu0 0.0
        %1932 = vmatprep.subr.mxu0 0.0
        %1933 = vmatpush1.msra.mxu0 0.0
        %1934 = vmatprep.subr.mxu0 0.0
        %1935 = vmatpush1.msra.mxu0 0.0
        %1936 = vmatprep.subr.mxu0 0.0
        %1937 = vmatpush1.msra.mxu0 0.0
        %1938 = vmatprep.subr.mxu0 0.0
        %1939 = vmatpush1.msra.mxu0 0.0
        %1940 = vmatprep.subr.mxu0 0.0
        %1941 = vmatpush1.msra.mxu0 0.0
        %1942 = vmatprep.subr.mxu0 0.0
        %1943 = vmatpush1.msra.mxu0 0.0
        %1944 = vmatprep.subr.mxu0 0.0
        %1945 = vmatpush1.msra.mxu0 0.0
        %1946 = vmatprep.subr.mxu0 0.0
        %1947 = vmatpush1.msra.mxu0 0.0
        %1948 = vmatprep.subr.mxu0 0.0
        %1949 = vmatpush1.msra.mxu0 0.0
        %1950 = vmatprep.subr.mxu0 0.0
        %1951 = vmatpush1.msra.mxu0 0.0
        %1952 = vmatprep.mubr.f32.mxu0 0.0
        %1953 = vmatmul.mubr.f32.gmra.mrb[0].mxu0 %v235
        %v1954 = vpop.f32.mrb[0].mxu0
        %v1955 = vadd.f32 0.0, %v1954
        %v1956 = vpop.f32.mrb[0].mxu0
        %1957 = vmatprep.mubr.f32.mxu0 0.0
        %1958 = vmatmul.mubr.f32.gmra.mrb[0].mxu0 %v238
        %v1959 = vpop.f32.mrb[0].mxu0
        %v1960 = vadd.f32 0.0, %v1959
        %v1961 = vpop.f32.mrb[0].mxu0
        %1962 = vmatprep.mubr.f32.mxu0 0.0
        %1963 = vmatmul.mubr.f32.gmra.mrb[0].mxu0 %v241
        %v1964 = vpop.f32.mrb[0].mxu0
        %v1965 = vadd.f32 0.0, %v1964
        %v1966 = vpop.f32.mrb[0].mxu0
        %1967 = vmatprep.mubr.f32.mxu0 0.0
        %1968 = vmatmul.mubr.f32.gmra.mrb[0].mxu0 %v244
        %v1969 = vpop.f32.mrb[0].mxu0
        %v1970 = vadd.f32 0.0, %v1969
        %v1971 = vpop.f32.mrb[0].mxu0
        %1972 = vmatprep.mubr.f32.mxu0 0.0
        %1973 = vmatmul.mubr.f32.gmra.mrb[0].mxu0 %v247
        %v1974 = vpop.f32.mrb[0].mxu0
        %v1975 = vadd.f32 0.0, %v1974
        %v1976 = vpop.f32.mrb[0].mxu0
        %1977 = vmatprep.mubr.f32.mxu0 0.0
        %1978 = vmatmul.mubr.f32.gmra.mrb[0].mxu0 %v250
        %v1979 = vpop.f32.mrb[0].mxu0
        %v1980 = vadd.f32 0.0, %v1979
        %v1981 = vpop.f32.mrb[0].mxu0
        %1982 = vdwg.mxu0
        %v1983 = vadd.f32 %v1882, %v1955
        %v1984 = vadd.f32 %v1883, %v1960
        %v1985 = vadd.f32 %v1884, %v1965
        %v1986 = vadd.f32 %v1885, %v1970
        %v1987 = vxor.u32 %v1983, 2147483648
        %v1988 = vxor.u32 %v1984, 2147483648
        %v1989 = vmul.f32 %v1987, 1.442695
        %v1990 = vpow.pop %v1989
        %v1991 = vmul.f32 %v1988, 1.442695
        %v1992 = vpow.pop %v1991
        %v1993 = vadd.f32 %v1990, 1.0
        %v1994 = vadd.f32 %v1992, 1.0
        %v1995 = vrcp.pop %v1993
        %v1996 = vmul.f32 1.0, %v1995
        %v1997 = vrcp.pop %v1994
        %v1998 = vmul.f32 1.0, %v1997
        %v1999 = vxor.u32 %v1985, 2147483648
        %v2000 = vxor.u32 %v1986, 2147483648
        %v2001 = vmul.f32 %v1999, 1.442695
        %v2002 = vpow.pop %v2001
        %v2003 = vmul.f32 %v2000, 1.442695
        %v2004 = vpow.pop %v2003
        %v2005 = vadd.f32 %v2002, 1.0
        %v2006 = vadd.f32 %v2004, 1.0
        %v2007 = vrcp.pop %v2005
        %v2008 = vmul.f32 1.0, %v2007
        %v2009 = vrcp.pop %v2006
        %v2010 = vmul.f32 1.0, %v2009
        %v2011 = vmul.f32 %v1996, %v1975
        %v2012 = vmul.f32 %v1998, %v1980
        %v2013 = vadd.f32 %v1886, %v2011
        %v2014 = vadd.f32 %v1887, %v2012
        %v2015 = vtanh.pop %v2013
        %v2016 = vtanh.pop %v2014
        %2017 = vmatprep.subr.mxu0 0.0
        %2018 = vmatpush1.msra.mxu0 %v2008
        %2019 = vmatprep.subr.mxu0 0.0
        %2020 = vmatpush1.msra.mxu0 %v2010
        %2021 = vmatprep.subr.mxu0 0.0
        %2022 = vmatpush1.msra.mxu0 %v2015
        %2023 = vmatprep.subr.mxu0 0.0
        %2024 = vmatpush1.msra.mxu0 %v2016
        %2025 = vmatprep.subr.mxu0 0.0
        %2026 = vmatpush1.msra.mxu0 0.0
        %2027 = vmatprep.subr.mxu0 0.0
        %2028 = vmatpush1.msra.mxu0 0.0
        %2029 = vmatprep.subr.mxu0 0.0
        %2030 = vmatpush1.msra.mxu0 0.0
        %2031 = vmatprep.subr.mxu0 0.0
        %2032 = vmatpush1.msra.mxu0 0.0
        %2033 = vmatprep.subr.mxu0 0.0
        %2034 = vmatpush1.msra.mxu0 0.0
        %2035 = vmatprep.subr.mxu0 0.0
        %2036 = vmatpush1.msra.mxu0 0.0
        %2037 = vmatprep.subr.mxu0 0.0
        %2038 = vmatpush1.msra.mxu0 0.0
        %2039 = vmatprep.subr.mxu0 0.0
        %2040 = vmatpush1.msra.mxu0 0.0
        %2041 = vmatprep.subr.mxu0 0.0
        %2042 = vmatpush1.msra.mxu0 0.0
        %2043 = vmatprep.subr.mxu0 0.0
        %2044 = vmatpush1.msra.mxu0 0.0
        %2045 = vmatprep.subr.mxu0 0.0
        %2046 = vmatpush1.msra.mxu0 0.0
        %2047 = vmatprep.subr.mxu0 0.0
        %2048 = vmatpush1.msra.mxu0 0.0
        %2049 = vmatprep.subr.mxu0 0.0
        %2050 = vmatpush1.msra.mxu0 0.0
        %2051 = vmatprep.subr.mxu0 0.0
        %2052 = vmatpush1.msra.mxu0 0.0
        %2053 = vmatprep.subr.mxu0 0.0
        %2054 = vmatpush1.msra.mxu0 0.0
        %2055 = vmatprep.subr.mxu0 0.0
        %2056 = vmatpush1.msra.mxu0 0.0
        %2057 = vmatprep.subr.mxu0 0.0
        %2058 = vmatpush1.msra.mxu0 0.0
        %2059 = vmatprep.subr.mxu0 0.0
        %2060 = vmatpush1.msra.mxu0 0.0
        %2061 = vmatprep.subr.mxu0 0.0
        %2062 = vmatpush1.msra.mxu0 0.0
        %2063 = vmatprep.subr.mxu0 0.0
        %2064 = vmatpush1.msra.mxu0 0.0
        %2065 = vmatprep.subr.mxu0 0.0
        %2066 = vmatpush1.msra.mxu0 0.0
        %2067 = vmatprep.subr.mxu0 0.0
        %2068 = vmatpush1.msra.mxu0 0.0
        %2069 = vmatprep.subr.mxu0 0.0
        %2070 = vmatpush1.msra.mxu0 0.0
        %2071 = vmatprep.subr.mxu0 0.0
        %2072 = vmatpush1.msra.mxu0 0.0
        %2073 = vmatprep.subr.mxu0 0.0
        %2074 = vmatpush1.msra.mxu0 0.0
        %2075 = vmatprep.subr.mxu0 0.0
        %2076 = vmatpush1.msra.mxu0 0.0
        %2077 = vmatprep.subr.mxu0 0.0
        %2078 = vmatpush1.msra.mxu0 0.0
        %2079 = vmatprep.subr.mxu0 0.0
        %2080 = vmatpush1.msra.mxu0 0.0
        %2081 = vmatprep.mubr.f32.mxu0 0.0
        %2082 = vmatmul.mubr.f32.gmra.mrb[0].mxu0 %v383
        %v2083 = vpop.f32.mrb[0].mxu0
        %v2084 = vadd.f32 0.0, %v2083
        %v2085 = vpop.f32.mrb[0].mxu0
        %2086 = vmatprep.mubr.f32.mxu0 0.0
        %2087 = vmatmul.mubr.f32.gmra.mrb[0].mxu0 %v386
        %v2088 = vpop.f32.mrb[0].mxu0
        %v2089 = vadd.f32 0.0, %v2088
        %v2090 = vpop.f32.mrb[0].mxu0
        %2091 = vmatprep.mubr.f32.mxu0 0.0
        %2092 = vmatmul.mubr.f32.gmra.mrb[0].mxu0 %v389
        %v2093 = vpop.f32.mrb[0].mxu0
        %v2094 = vadd.f32 0.0, %v2093
        %v2095 = vpop.f32.mrb[0].mxu0
        %2096 = vmatprep.mubr.f32.mxu0 0.0
        %2097 = vmatmul.mubr.f32.gmra.mrb[0].mxu0 %v392
        %v2098 = vpop.f32.mrb[0].mxu0
        %v2099 = vadd.f32 0.0, %v2098
        %v2100 = vpop.f32.mrb[0].mxu0
        %2101 = vdwg.mxu0
        %v2102 = vsub.f32 1.0, %v2084
        %v2103 = vsub.f32 1.0, %v2089
        %v2104 = vmul.f32 %v2102, %v2094
        %v2105 = vmul.f32 %v2103, %v2099
        %v2106 = vmul.f32 %v2084, %v1876
        %v2107 = vmul.f32 %v2089, %v1877
        %v2108 = vadd.f32 %v2104, %v2106
        %v2109 = vadd.f32 %v2105, %v2107
        %s2110 = scalar_lea.vmem %s206, 112 [#allocation6]
        %2111 = vst [vmem:[%s2110] sm:$0xff] %v2108
        %2112 = vst [vmem:[%s2110 + $0x8] sm:$0xff] %v2109
        %2113 = vst [vmem:[#allocation2] sm:$0xff] %v2108
        %2114 = vst [vmem:[#allocation2 + $0x8] sm:$0xff] %v2109
        %s2115 = sand.u32 %s112, 1
        %s2116 = scalar_lea.sflag [#allocation5], %s2115
        %s2117 = sand.u32 %s112, 1
        %s2118 = smul.addr %s2117, 128
        %s2119 = scalar_lea.vmem [#allocation6], %s2118
        // Predicated region
        $region41: #{tpu_custom_call.1} parent=31 // pred_check
          %p2120 = pneg %p122
        $region42: #{tpu_custom_call.1} parent=31 // pred_check_branch
          %2122 = sbr.rel (%p2120) target = $region44
        $region43: #{tpu_custom_call.1} parent=31 // pred_region
          %s2123 = smul.u32 8, %s25
          %s2125 = ssub.s32 2048, 2048
          %2126 = vsyncadd %s2116, %s2125
          %s2127 = smul.addr %s2123, 2
          %s2128 = sadd.s32 %s24, %s2127
          %s2129 = smul.addr %s2128, 128
          %s2130 = scalar_lea.hbm %s3, %s2129
          %s2131 = sshll.u32 %s2119, 4
          %s2132 = int_to_ptr.vmem [resolvable:$true] %s2131
          %2137 = dma.vmem_to_hbm [thread:$0]  %s2132, 2048, %s2130, %s2116, 128, 128, 8
        $region44: #{tpu_custom_call.1} parent=31 // pred_fallthru
          _
      $region32: #{tpu_custom_call.1} parent=5 // pred_fallthru
        _
      %p2138 = scmp.le.s32.totalorder 2, %s15
      // Predicated region
      $region45: #{tpu_custom_call.1} parent=5 // pred_check
        %p2139 = pneg %p2138
      $region46: #{tpu_custom_call.1} parent=5 // pred_check_branch
        %2141 = sbr.rel (%p2139) target = $region48
      $region47: #{tpu_custom_call.1} parent=5 // pred_region
        %s2142 = ssub.s32 %s15, 2
        // Predicated region
        $region49: #{tpu_custom_call.1} parent=47 // pred_check
          %p2143 = pneg %p128
        $region50: #{tpu_custom_call.1} parent=47 // pred_check_branch
          %2145 = sbr.rel (%p2143) target = $region52
        $region51: #{tpu_custom_call.1} parent=47 // pred_region
          %s2146 = sand.u32 %s113, 1
          %s2147 = scalar_lea.sflag [#allocation5], %s2146
          %s2148 = sand.u32 %s113, 1
          %s2149 = smul.addr %s2148, 128
          %s2150 = scalar_lea.vmem [#allocation6], %s2149
          %2151 = dma.done %s2147, 2048
        $region52: #{tpu_custom_call.1} parent=47 // pred_fallthru
          _
      $region48: #{tpu_custom_call.1} parent=5 // pred_fallthru
        _
    $region6: #{tpu_custom_call.1} parent=1 // loop_footer
      %s19 = sadd.s32 1, %s15
    $region7: #{tpu_custom_call.1} parent=1 // loop_footer_branch
      %14 = sbr.rel target = $region3
    $region8: #{tpu_custom_call.1} parent=1 // loop_exit
      _
    %2152 = vsyncpa [#allocation4], 1
    %s2153 = scalar_lea.sflag [#allocation4], 1
    %2154 = vsyncpa %s2153, 1
    %2155 = vsyncpa [#allocation5], 1
    %s2156 = scalar_lea.sflag [#allocation5], 1
    %2157 = vsyncpa %s2156, 1

</llo_original>
